<compile_context>
chip_gen: v7x
topology: tpu7x:2x2x1
jax: 0.10.0
libtpu: 0.0.40
codegen_flags: <defaults>
</compile_context>

<pallas_src>
import functools

import jax
import jax.numpy as jnp
from jax import lax
from jax.experimental import pallas as pl
from jax.experimental.pallas import tpu as pltpu


_NEG_SLOPE = 0.1
_LANE = 128


def _round_up(v, m):
    return ((v + m - 1) // m) * m


def _vmem_limit_bytes():
    """Per-generation scoped-VMEM request (v5e/v6e: 128 MiB phys, v7x: 64 MiB)."""
    cap = 64 * 1024 * 1024
    try:
        cap = int(getattr(pltpu.get_tpu_info(), "vmem_capacity_bytes", cap))
    except Exception:
        pass
    return max(32 * 1024 * 1024, min(cap - 16 * 1024 * 1024, 96 * 1024 * 1024))


def _pick_tiles(N, H, W, Cin_p, Cmid_p, Cout_p, vmem_limit):
    """Pick (row-tile TH, padded width Wp8, output-channel chunk)."""
    Wp8 = _round_up(W + 2, 8)                    # zero col left/right + sublane alignment
    c_chunk = 256 if (Cout_p % 256 == 0) else 128  # fill 256-wide MXUs when possible
    c_chunk = min(c_chunk, Cout_p)

    # (a) keep the per-chunk f32 conv2 partials (TH*Wp8, c_chunk) around ~0.5 MiB
    th_acc = max(1, (512 * 1024) // (Wp8 * c_chunk * 4))

    # (b) stay inside the per-generation VMEM budget (double-buffered activation and
    #     output tiles + weights + the flat conv1 slab scratch).
    fixed = 2 * (9 * Cmid_p * Cout_p * 2 + Cin_p * Cmid_p * 2 + (Cmid_p + Cout_p) * 4)
    fixed += 2 * (2 * Wp8 * Cin_p * 2) + 2 * Wp8 * Cmid_p * 2   # halo blocks + slab halo
    per_row = (2 * Wp8 * Cin_p * 2        # input row tile (double buffered, bf16)
               + 2 * W * Cout_p * 4       # f32 output tile (double buffered)
               + Wp8 * Cmid_p * 2)        # conv1 slab scratch (bf16)
    th_vmem = max(1, (int(vmem_limit * 0.6) - fixed) // per_row)

    TH = max(1, min(th_acc, th_vmem, H, 256))
    # v7x megacore: keep >= 2 parallel grid blocks even for batch == 1.
    if N == 1 and TH >= H and H >= 2:
        TH = (H + 1) // 2
    return TH, Wp8, c_chunk


# ------------------------------- fused kernel -------------------------------

def _fused_bottleneck_kernel(x_top_ref, x_mid_ref, x_bot_ref,
                             w1_ref, b1_ref, w2_ref, b2_ref,
                             o_ref, y_ref, *,
                             H, W, TH, Wp8, c_chunk, shortcut):
    """One (batch, row-tile) grid step of the fused DarknetBottleneck.

    x_*_ref : (1, rows, Wp8, Cin_p) bf16 slices of the zero-padded NHWC input
              (mid = TH output rows; top/bot = 1-row halos, clamped + masked).
    w1_ref  : (Cin_p, Cmid_p)      bf16, BN1 scale folded.
    b1_ref  : (1, Cmid_p)          f32.
    w2_ref  : (9, Cmid_p, Cout_p)  bf16, BN2 scale folded, tap index = kh*3 + kw.
    b2_ref  : (1, Cout_p)          f32.
    o_ref   : (1, TH, W, Cout_p)   f32 output tile.
    y_ref   : ((TH+2)*Wp8, Cmid_p) bf16 VMEM scratch — conv1 output for the tile + halo,
              stored flat (row-major over (rows, padded width)).
    """
    i = pl.program_id(1)
    cmid = w1_ref.shape[1]
    cout = w2_ref.shape[2]

    # Padded column j holds image column j - 1; cols 0 and > W are conv2's zero padding.
    col = lax.broadcasted_iota(jnp.int32, (1, Wp8, 1), 1)
    col_valid = (col >= 1) & (col <= W)

    def conv1_rows(x_block, row0, rows):
        # 1x1 conv + folded BN + leaky_relu on `rows` padded-width rows; out-of-image
        # rows/cols are forced to zero so the 3x3 conv sees proper zero padding.
        x2d = x_block.reshape(rows * Wp8, x_block.shape[-1])
        y = jnp.dot(x2d, w1_ref[...], preferred_element_type=jnp.float32)
        y = y + b1_ref[...]
        y = jnp.where(y > 0, y, _NEG_SLOPE * y)
        y = y.reshape(rows, Wp8, cmid)
        r = row0 + lax.broadcasted_iota(jnp.int32, (rows, 1, 1), 0)
        y = jnp.where((r >= 0) & (r < H) & col_valid, y, 0.0)
        return y.reshape(rows * Wp8, cmid).astype(y_ref.dtype)

    row0 = i * TH
    # conv1 for the TH-row tile plus its two halo rows, written straight into the flat
    # VMEM slab (no HBM round trip for the intermediate, no concatenate).
    y_ref[pl.ds(0, Wp8), :] = conv1_rows(x_top_ref[0], row0 - 1, 1)
    y_ref[pl.ds(Wp8, TH * Wp8), :] = conv1_rows(x_mid_ref[0], row0, TH)
    y_ref[pl.ds((TH + 1) * Wp8, Wp8), :] = conv1_rows(x_bot_ref[0], row0 + TH, 1)

    # conv2 (3x3, pad=1): for each kernel row dh the LHS is a contiguous, sublane-aligned
    # slice of the flat slab (rows dh..dh+TH at full padded width) — no per-tap patch
    # gathers.  The kw (dw) shift is applied to the 3 f32 partial sums when slicing back
    # to width W.  Output channels are processed in c_chunk-wide chunks.
    for oc in range(cout // c_chunk):
        cs = slice(oc * c_chunk, (oc + 1) * c_chunk)
        out3 = None
        for dw in range(3):
            q = None
            for dh in range(3):
                lhs = y_ref[pl.ds(dh * Wp8, TH * Wp8), :]
                p = jnp.dot(lhs, w2_ref[dh * 3 + dw, :, cs],
                            preferred_element_type=jnp.float32)
                q = p if q is None else q + p
            q3 = q.reshape(TH, Wp8, c_chunk)[:, dw:dw + W, :]
            out3 = q3 if out3 is None else out3 + q3
        out3 = out3 + b2_ref[0, cs]
        out3 = jnp.where(out3 > 0, out3, _NEG_SLOPE * out3)
        if shortcut:
            # Residual straight from the already-resident input tile (no extra padded
            # f32 residual array in HBM).  bf16 residual is within the accuracy budget.
            out3 = out3 + x_mid_ref[0, :, 1:1 + W, cs].astype(jnp.float32)
        o_ref[0, :, :, cs] = out3.astype(o_ref.dtype)


# --------------------------------- module glue ----------------------------------

def _kaiming_normal_conv(key, out_ch, in_ch, kh, kw):
    # nn.init.kaiming_normal_(mode='fan_in', nonlinearity='leaky_relu') (a=0.01 default)
    fan_in = in_ch * kh * kw
    gain = (2.0 / (1.0 + 0.01 ** 2)) ** 0.5
    std = gain / (fan_in ** 0.5)
    return std * jax.random.normal(key, (out_ch, in_ch, kh, kw), dtype=jnp.float32)


def _bn_fold(out_ch, eps=1e-5):
    # fresh BatchNorm2d: weight=1, bias=0, running_mean=0, running_var=1
    gamma = jnp.ones((out_ch,), jnp.float32)
    beta = jnp.zeros((out_ch,), jnp.float32)
    mean = jnp.zeros((out_ch,), jnp.float32)
    var = jnp.ones((out_ch,), jnp.float32)
    scale = gamma / jnp.sqrt(var + eps)
    bias = beta - mean * scale
    return scale.reshape(1, out_ch), bias.reshape(1, out_ch)


def make_darknet_bottleneck_params(key, in_channels, out_channels):
    mid_channels = out_channels // 2
    k1, k2 = jax.random.split(key)
    w1 = _kaiming_normal_conv(k1, mid_channels, in_channels, 1, 1)   # (Cmid, Cin, 1, 1)
    w2 = _kaiming_normal_conv(k2, out_channels, mid_channels, 3, 3)  # (Cout, Cmid, 3, 3)
    s1, b1 = _bn_fold(mid_channels)
    s2, b2 = _bn_fold(out_channels)
    return dict(w1=w1, s1=s1, b1=b1, w2=w2, s2=s2, b2=b2)


def darknet_bottleneck_forward(params, x_nchw, shortcut=True):
    """x_nchw: (N, C_in, H, W) float32. Returns (N, C_out, H, W) float32."""
    N, Cin, H, W = x_nchw.shape
    w1, w2 = params["w1"], params["w2"]
    Cmid = w1.shape[0]
    Cout = w2.shape[0]
    if shortcut:
        assert Cin == Cout, "shortcut requires in_channels == out_channels"

    Cin_p = _round_up(Cin, _LANE)
    Cmid_p = _round_up(Cmid, _LANE)
    Cout_p = _round_up(Cout, _LANE)

    vmem_limit = _vmem_limit_bytes()
    TH, Wp8, c_chunk = _pick_tiles(N, H, W, Cin_p, Cmid_p, Cout_p, vmem_limit)
    H_w = _round_up(H, TH)

    # Single prep pass: NCHW->NHWC, left zero column + right pad to Wp8, bottom row pad
    # to H_w, channel pad to Cin_p, bf16 cast (one fused XLA op).
    x_nhwc = jnp.transpose(x_nchw, (0, 2, 3, 1))               # (N, H, W, Cin)
    x_prep = jnp.pad(
        x_nhwc,
        ((0, 0), (0, H_w - H), (1, Wp8 - W - 1), (0, Cin_p - Cin)),
    ).astype(jnp.bfloat16)                                     # (N, H_w, Wp8, Cin_p)

    # BN scales folded into the weight matrices; biases kept in f32 for the epilogue.
    w1_mat = (w1.reshape(Cmid, Cin).T * params["s1"])          # (Cin, Cmid)
    w1_mat = jnp.pad(w1_mat, ((0, Cin_p - Cin), (0, Cmid_p - Cmid))).astype(jnp.bfloat16)
    b1 = jnp.pad(params["b1"], ((0, 0), (0, Cmid_p - Cmid)))   # (1, Cmid_p) f32

    w2_mat = jnp.transpose(w2, (2, 3, 1, 0)) * params["s2"].reshape(1, 1, 1, Cout)
    w2_mat = jnp.pad(w2_mat.reshape(9, Cmid, Cout),
                     ((0, 0), (0, Cmid_p - Cmid), (0, Cout_p - Cout))).astype(jnp.bfloat16)
    b2 = jnp.pad(params["b2"], ((0, 0), (0, Cout_p - Cout)))   # (1, Cout_p) f32

    grid = (N, H_w // TH)
    kernel = functools.partial(_fused_bottleneck_kernel, H=H, W=W, TH=TH,
                               Wp8=Wp8, c_chunk=c_chunk, shortcut=shortcut)

    out = pl.pallas_call(
        kernel,
        out_shape=jax.ShapeDtypeStruct((N, H_w, W, Cout_p), jnp.float32),
        grid=grid,
        in_specs=[
            # top halo row (clamped; masked in-kernel when it is image row -1)
            pl.BlockSpec((1, 1, Wp8, Cin_p),
                         lambda n, i: (n, jnp.maximum(i * TH - 1, 0), 0, 0)),
            # the TH-row tile (also used as the residual)
            pl.BlockSpec((1, TH, Wp8, Cin_p), lambda n, i: (n, i, 0, 0)),
            # bottom halo row (clamped; masked in-kernel when past the image)
            pl.BlockSpec((1, 1, Wp8, Cin_p),
                         lambda n, i: (n, jnp.minimum(i * TH + TH, H_w - 1), 0, 0)),
            pl.BlockSpec((Cin_p, Cmid_p), lambda n, i: (0, 0)),
            pl.BlockSpec((1, Cmid_p), lambda n, i: (0, 0)),
            pl.BlockSpec((9, Cmid_p, Cout_p), lambda n, i: (0, 0, 0)),
            pl.BlockSpec((1, Cout_p), lambda n, i: (0, 0)),
        ],
        out_specs=pl.BlockSpec((1, TH, W, Cout_p), lambda n, i: (n, i, 0, 0)),
        scratch_shapes=[pltpu.VMEM(((TH + 2) * Wp8, Cmid_p), jnp.bfloat16)],
        compiler_params=pltpu.CompilerParams(
            dimension_semantics=("parallel", "parallel"),
            vmem_limit_bytes=vmem_limit),
    )(x_prep, x_prep, x_prep, w1_mat, b1, w2_mat, b2)

    out = out[:, :H, :, :Cout]
    return jnp.transpose(out, (0, 3, 1, 2))                    # back to NCHW


# ------------------------------ pure-JAX reference -------------------------------

def _reference_forward(params, x_nchw, shortcut=True):
    def convbn(x, w, scale, bias, pad):
        y = lax.conv_general_dilated(
            x, w, window_strides=(1, 1), padding=[(pad, pad), (pad, pad)],
            dimension_numbers=("NCHW", "OIHW", "NCHW"))
        y = y * scale.reshape(1, -1, 1, 1) + bias.reshape(1, -1, 1, 1)
        return jnp.where(y > 0, y, _NEG_SLOPE * y)

    y = convbn(x_nchw, params["w1"], params["s1"], params["b1"], 0)
    y = convbn(y, params["w2"], params["s2"], params["b2"], 1)
    if shortcut:
        y = y + x_nchw
    return y


# -------------------------------------- main --------------------------------------

if __name__ == "__main__":
    key = jax.random.PRNGKey(0)
    k_x, k_p = jax.random.split(key)

    N, C, H, W = 2, 4, 16, 16  # in_channels == out_channels so shortcut is valid
    x = jax.random.normal(k_x, (N, C, H, W), dtype=jnp.float32)

    params = make_darknet_bottleneck_params(k_p, in_channels=C, out_channels=C)

    fwd = jax.jit(functools.partial(darknet_bottleneck_forward, shortcut=True))
    out = fwd(params, x)
    jax.block_until_ready(out)

    assert out.shape == (N, C, H, W), out.shape
    assert out.dtype == jnp.float32

    # Kernel uses bf16 operands with f32 accumulation (inference precision), so the
    # tolerance vs. the f32 reference is bf16-level, not exact.
    ref = _reference_forward(params, x, shortcut=True)
    assert jnp.allclose(out, ref, atol=1e-1, rtol=5e-2), (
        float(jnp.max(jnp.abs(out - ref))))

    print("KERNEL_OK")
</pallas_src>

<mosaic_0001>
module attributes {stable_mosaic.version = 11 : i64} {
  func.func @_fused_bottleneck_kernel(%arg0: i32, %arg1: i32, %arg2: memref<1x1x24x128xbf16, #tpu.memory_space<vmem>>, %arg3: memref<1x16x24x128xbf16, #tpu.memory_space<vmem>>, %arg4: memref<1x1x24x128xbf16, #tpu.memory_space<vmem>>, %arg5: memref<128x128xbf16, #tpu.memory_space<vmem>>, %arg6: memref<1x128xf32, #tpu.memory_space<vmem>>, %arg7: memref<9x128x128xbf16, #tpu.memory_space<vmem>>, %arg8: memref<1x128xf32, #tpu.memory_space<vmem>>, %arg9: memref<1x16x16x128xf32, #tpu.memory_space<vmem>>, %arg10: memref<432x128xbf16, #tpu.memory_space<vmem>>) attributes {dimension_semantics = [#tpu.dimension_semantics<parallel>, #tpu.dimension_semantics<parallel>], iteration_bounds = array<i64: 2, 1>, scalar_prefetch = 0 : i64, scratch_operands = 1 : i64, tpu.core_type = #tpu.core_type<tc>, window_params = [{transform_indices = @transform_0, window_bounds = array<i64: 1, 1, 24, 128>}, {transform_indices = @transform_1, window_bounds = array<i64: 1, 16, 24, 128>}, {transform_indices = @transform_2, window_bounds = array<i64: 1, 1, 24, 128>}, {pipeline_mode = #tpu.pipeline_mode<synchronous>, transform_indices = @transform_3, window_bounds = array<i64: 128, 128>}, {pipeline_mode = #tpu.pipeline_mode<synchronous>, transform_indices = @transform_4, window_bounds = array<i64: 1, 128>}, {pipeline_mode = #tpu.pipeline_mode<synchronous>, transform_indices = @transform_5, window_bounds = array<i64: 9, 128, 128>}, {pipeline_mode = #tpu.pipeline_mode<synchronous>, transform_indices = @transform_6, window_bounds = array<i64: 1, 128>}, {transform_indices = @transform_7, window_bounds = array<i64: 1, 16, 16, 128>}]} {
    %0 = tpu.iota {dimensions = array<i32: 1>} : vector<1x24x1xi32>
    %c1_i32 = arith.constant 1 : i32
    %1 = vector.broadcast %c1_i32 : i32 to vector<1x24x1xi32>
    %2 = arith.cmpi sge, %0, %1 : vector<1x24x1xi32>
    %c16_i32 = arith.constant 16 : i32
    %3 = vector.broadcast %c16_i32 : i32 to vector<1x24x1xi32>
    %4 = arith.cmpi sle, %0, %3 : vector<1x24x1xi32>
    %5 = arith.andi %2, %4 : vector<1x24x1xi1>
    %c16_i32_0 = arith.constant 16 : i32
    %6 = arith.muli %arg1, %c16_i32_0 : i32
    %c0 = arith.constant 0 : index
    %c0_1 = arith.constant 0 : index
    %c0_2 = arith.constant 0 : index
    %c0_3 = arith.constant 0 : index
    %7 = vector.load %arg2[%c0, %c0_1, %c0_2, %c0_3] : memref<1x1x24x128xbf16, #tpu.memory_space<vmem>>, vector<1x1x24x128xbf16>
    %8 = vector.shape_cast %7 : vector<1x1x24x128xbf16> to vector<1x24x128xbf16>
    %c1_i32_4 = arith.constant 1 : i32
    %9 = arith.subi %6, %c1_i32_4 : i32
    %10 = vector.shape_cast %8 : vector<1x24x128xbf16> to vector<24x128xbf16>
    %c0_5 = arith.constant 0 : index
    %c0_6 = arith.constant 0 : index
    %11 = vector.load %arg5[%c0_5, %c0_6] : memref<128x128xbf16, #tpu.memory_space<vmem>>, vector<128x128xbf16>
    %cst = arith.constant dense<0.000000e+00> : vector<24x128xf32>
    %12 = tpu.matmul %10, %11, %cst {dimension_numbers = #tpu.dot_dimension_numbers<[1], [0], [0], [1], [0, 0, 1, 1], [], []>} : vector<24x128xbf16>, vector<128x128xbf16>, vector<24x128xf32> -> vector<24x128xf32>
    %c0_7 = arith.constant 0 : index
    %c0_8 = arith.constant 0 : index
    %13 = vector.load %arg6[%c0_7, %c0_8] : memref<1x128xf32, #tpu.memory_space<vmem>>, vector<1x128xf32>
    %14 = vector.broadcast %13 : vector<1x128xf32> to vector<24x128xf32>
    %15 = arith.addf %12, %14 : vector<24x128xf32>
    %cst_9 = arith.constant 0.000000e+00 : f32
    %16 = vector.broadcast %cst_9 : f32 to vector<24x128xf32>
    %17 = arith.cmpf ogt, %15, %16 : vector<24x128xf32>
    %cst_10 = arith.constant 1.000000e-01 : f32
    %18 = vector.broadcast %cst_10 : f32 to vector<24x128xf32>
    %19 = arith.mulf %18, %15 : vector<24x128xf32>
    %20 = arith.select %17, %15, %19 : vector<24x128xi1>, vector<24x128xf32>
    %21 = vector.shape_cast %20 : vector<24x128xf32> to vector<1x24x128xf32>
    %22 = tpu.iota {dimensions = array<i32: 0>} : vector<1x1x1xi32>
    %23 = vector.broadcast %9 : i32 to vector<1x1x1xi32>
    %24 = arith.addi %23, %22 : vector<1x1x1xi32>
    %c0_i32 = arith.constant 0 : i32
    %25 = vector.broadcast %c0_i32 : i32 to vector<1x1x1xi32>
    %26 = arith.cmpi sge, %24, %25 : vector<1x1x1xi32>
    %c16_i32_11 = arith.constant 16 : i32
    %27 = vector.broadcast %c16_i32_11 : i32 to vector<1x1x1xi32>
    %28 = arith.cmpi slt, %24, %27 : vector<1x1x1xi32>
    %29 = arith.andi %26, %28 : vector<1x1x1xi1>
    %30 = vector.broadcast %29 : vector<1x1x1xi1> to vector<1x24x1xi1>
    %31 = arith.andi %30, %5 : vector<1x24x1xi1>
    %cst_12 = arith.constant 0.000000e+00 : f32
    %32 = vector.shape_cast %31 : vector<1x24x1xi1> to vector<1x24x1xi1>
    %33 = vector.broadcast %32 : vector<1x24x1xi1> to vector<1x24x128xi1>
    %34 = vector.broadcast %cst_12 : f32 to vector<1x24x128xf32>
    %35 = arith.select %33, %21, %34 : vector<1x24x128xi1>, vector<1x24x128xf32>
    %36 = vector.shape_cast %35 : vector<1x24x128xf32> to vector<24x128xf32>
    %37 = arith.truncf %36 : vector<24x128xf32> to vector<24x128xbf16>
    %c0_13 = arith.constant 0 : index
    %c0_14 = arith.constant 0 : index
    %38 = vector.load %arg10[%c0_13, %c0_14] : memref<432x128xbf16, #tpu.memory_space<vmem>>, vector<24x128xbf16>
    tpu.vector_store %arg10[%c0_13, %c0_14], %37 {strides = array<i32>} : memref<432x128xbf16, #tpu.memory_space<vmem>>, vector<24x128xbf16>,
    %c0_15 = arith.constant 0 : index
    %c0_16 = arith.constant 0 : index
    %c0_17 = arith.constant 0 : index
    %c0_18 = arith.constant 0 : index
    %39 = vector.load %arg3[%c0_15, %c0_16, %c0_17, %c0_18] : memref<1x16x24x128xbf16, #tpu.memory_space<vmem>>, vector<1x16x24x128xbf16>
    %40 = vector.shape_cast %39 : vector<1x16x24x128xbf16> to vector<16x24x128xbf16>
    %41 = vector.shape_cast %40 : vector<16x24x128xbf16> to vector<384x128xbf16>
    %c0_19 = arith.constant 0 : index
    %c0_20 = arith.constant 0 : index
    %42 = vector.load %arg5[%c0_19, %c0_20] : memref<128x128xbf16, #tpu.memory_space<vmem>>, vector<128x128xbf16>
    %cst_21 = arith.constant dense<0.000000e+00> : vector<384x128xf32>
    %43 = tpu.matmul %41, %42, %cst_21 {dimension_numbers = #tpu.dot_dimension_numbers<[1], [0], [0], [1], [0, 0, 1, 1], [], []>} : vector<384x128xbf16>, vector<128x128xbf16>, vector<384x128xf32> -> vector<384x128xf32>
    %c0_22 = arith.constant 0 : index
    %c0_23 = arith.constant 0 : index
    %44 = vector.load %arg6[%c0_22, %c0_23] : memref<1x128xf32, #tpu.memory_space<vmem>>, vector<1x128xf32>
    %45 = vector.broadcast %44 : vector<1x128xf32> to vector<384x128xf32>
    %46 = arith.addf %43, %45 : vector<384x128xf32>
    %cst_24 = arith.constant 0.000000e+00 : f32
    %47 = vector.broadcast %cst_24 : f32 to vector<384x128xf32>
    %48 = arith.cmpf ogt, %46, %47 : vector<384x128xf32>
    %cst_25 = arith.constant 1.000000e-01 : f32
    %49 = vector.broadcast %cst_25 : f32 to vector<384x128xf32>
    %50 = arith.mulf %49, %46 : vector<384x128xf32>
    %51 = arith.select %48, %46, %50 : vector<384x128xi1>, vector<384x128xf32>
    %52 = vector.shape_cast %51 : vector<384x128xf32> to vector<16x24x128xf32>
    %53 = tpu.iota {dimensions = array<i32: 0>} : vector<16x1x1xi32>
    %54 = vector.broadcast %6 : i32 to vector<16x1x1xi32>
    %55 = arith.addi %54, %53 : vector<16x1x1xi32>
    %c0_i32_26 = arith.constant 0 : i32
    %56 = vector.broadcast %c0_i32_26 : i32 to vector<16x1x1xi32>
    %57 = arith.cmpi sge, %55, %56 : vector<16x1x1xi32>
    %c16_i32_27 = arith.constant 16 : i32
    %58 = vector.broadcast %c16_i32_27 : i32 to vector<16x1x1xi32>
    %59 = arith.cmpi slt, %55, %58 : vector<16x1x1xi32>
    %60 = arith.andi %57, %59 : vector<16x1x1xi1>
    %61 = vector.broadcast %60 : vector<16x1x1xi1> to vector<16x24x1xi1>
    %62 = vector.broadcast %5 : vector<1x24x1xi1> to vector<16x24x1xi1>
    %63 = arith.andi %61, %62 : vector<16x24x1xi1>
    %cst_28 = arith.constant 0.000000e+00 : f32
    %64 = vector.shape_cast %63 : vector<16x24x1xi1> to vector<16x24x1xi1>
    %65 = vector.broadcast %64 : vector<16x24x1xi1> to vector<16x24x128xi1>
    %66 = vector.broadcast %cst_28 : f32 to vector<16x24x128xf32>
    %67 = arith.select %65, %52, %66 : vector<16x24x128xi1>, vector<16x24x128xf32>
    %68 = vector.shape_cast %67 : vector<16x24x128xf32> to vector<384x128xf32>
    %69 = arith.truncf %68 : vector<384x128xf32> to vector<384x128xbf16>
    %c24 = arith.constant 24 : index
    %c0_29 = arith.constant 0 : index
    %70 = vector.load %arg10[%c24, %c0_29] : memref<432x128xbf16, #tpu.memory_space<vmem>>, vector<384x128xbf16>
    tpu.vector_store %arg10[%c24, %c0_29], %69 {strides = array<i32>} : memref<432x128xbf16, #tpu.memory_space<vmem>>, vector<384x128xbf16>,
    %c0_30 = arith.constant 0 : index
    %c0_31 = arith.constant 0 : index
    %c0_32 = arith.constant 0 : index
    %c0_33 = arith.constant 0 : index
    %71 = vector.load %arg4[%c0_30, %c0_31, %c0_32, %c0_33] : memref<1x1x24x128xbf16, #tpu.memory_space<vmem>>, vector<1x1x24x128xbf16>
    %72 = vector.shape_cast %71 : vector<1x1x24x128xbf16> to vector<1x24x128xbf16>
    %c16_i32_34 = arith.constant 16 : i32
    %73 = arith.addi %6, %c16_i32_34 : i32
    %74 = vector.shape_cast %72 : vector<1x24x128xbf16> to vector<24x128xbf16>
    %c0_35 = arith.constant 0 : index
    %c0_36 = arith.constant 0 : index
    %75 = vector.load %arg5[%c0_35, %c0_36] : memref<128x128xbf16, #tpu.memory_space<vmem>>, vector<128x128xbf16>
    %cst_37 = arith.constant dense<0.000000e+00> : vector<24x128xf32>
    %76 = tpu.matmul %74, %75, %cst_37 {dimension_numbers = #tpu.dot_dimension_numbers<[1], [0], [0], [1], [0, 0, 1, 1], [], []>} : vector<24x128xbf16>, vector<128x128xbf16>, vector<24x128xf32> -> vector<24x128xf32>
    %c0_38 = arith.constant 0 : index
    %c0_39 = arith.constant 0 : index
    %77 = vector.load %arg6[%c0_38, %c0_39] : memref<1x128xf32, #tpu.memory_space<vmem>>, vector<1x128xf32>
    %78 = vector.broadcast %77 : vector<1x128xf32> to vector<24x128xf32>
    %79 = arith.addf %76, %78 : vector<24x128xf32>
    %cst_40 = arith.constant 0.000000e+00 : f32
    %80 = vector.broadcast %cst_40 : f32 to vector<24x128xf32>
    %81 = arith.cmpf ogt, %79, %80 : vector<24x128xf32>
    %cst_41 = arith.constant 1.000000e-01 : f32
    %82 = vector.broadcast %cst_41 : f32 to vector<24x128xf32>
    %83 = arith.mulf %82, %79 : vector<24x128xf32>
    %84 = arith.select %81, %79, %83 : vector<24x128xi1>, vector<24x128xf32>
    %85 = vector.shape_cast %84 : vector<24x128xf32> to vector<1x24x128xf32>
    %86 = tpu.iota {dimensions = array<i32: 0>} : vector<1x1x1xi32>
    %87 = vector.broadcast %73 : i32 to vector<1x1x1xi32>
    %88 = arith.addi %87, %86 : vector<1x1x1xi32>
    %c0_i32_42 = arith.constant 0 : i32
    %89 = vector.broadcast %c0_i32_42 : i32 to vector<1x1x1xi32>
    %90 = arith.cmpi sge, %88, %89 : vector<1x1x1xi32>
    %c16_i32_43 = arith.constant 16 : i32
    %91 = vector.broadcast %c16_i32_43 : i32 to vector<1x1x1xi32>
    %92 = arith.cmpi slt, %88, %91 : vector<1x1x1xi32>
    %93 = arith.andi %90, %92 : vector<1x1x1xi1>
    %94 = vector.broadcast %93 : vector<1x1x1xi1> to vector<1x24x1xi1>
    %95 = arith.andi %94, %5 : vector<1x24x1xi1>
    %cst_44 = arith.constant 0.000000e+00 : f32
    %96 = vector.shape_cast %95 : vector<1x24x1xi1> to vector<1x24x1xi1>
    %97 = vector.broadcast %96 : vector<1x24x1xi1> to vector<1x24x128xi1>
    %98 = vector.broadcast %cst_44 : f32 to vector<1x24x128xf32>
    %99 = arith.select %97, %85, %98 : vector<1x24x128xi1>, vector<1x24x128xf32>
    %100 = vector.shape_cast %99 : vector<1x24x128xf32> to vector<24x128xf32>
    %101 = arith.truncf %100 : vector<24x128xf32> to vector<24x128xbf16>
    %c408 = arith.constant 408 : index
    %c0_45 = arith.constant 0 : index
    %102 = vector.load %arg10[%c408, %c0_45] : memref<432x128xbf16, #tpu.memory_space<vmem>>, vector<24x128xbf16>
    tpu.vector_store %arg10[%c408, %c0_45], %101 {strides = array<i32>} : memref<432x128xbf16, #tpu.memory_space<vmem>>, vector<24x128xbf16>,
    %c0_46 = arith.constant 0 : index
    %c0_47 = arith.constant 0 : index
    %103 = vector.load %arg10[%c0_46, %c0_47] : memref<432x128xbf16, #tpu.memory_space<vmem>>, vector<384x128xbf16>
    %c0_48 = arith.constant 0 : index
    %c0_49 = arith.constant 0 : index
    %c0_50 = arith.constant 0 : index
    %104 = vector.load %arg7[%c0_48, %c0_49, %c0_50] : memref<9x128x128xbf16, #tpu.memory_space<vmem>>, vector<1x128x128xbf16>
    %105 = vector.shape_cast %104 : vector<1x128x128xbf16> to vector<128x128xbf16>
    %cst_51 = arith.constant dense<0.000000e+00> : vector<384x128xf32>
    %106 = tpu.matmul %103, %105, %cst_51 {dimension_numbers = #tpu.dot_dimension_numbers<[1], [0], [0], [1], [0, 0, 1, 1], [], []>} : vector<384x128xbf16>, vector<128x128xbf16>, vector<384x128xf32> -> vector<384x128xf32>
    %c24_52 = arith.constant 24 : index
    %c0_53 = arith.constant 0 : index
    %107 = vector.load %arg10[%c24_52, %c0_53] : memref<432x128xbf16, #tpu.memory_space<vmem>>, vector<384x128xbf16>
    %c3 = arith.constant 3 : index
    %c0_54 = arith.constant 0 : index
    %c0_55 = arith.constant 0 : index
    %108 = vector.load %arg7[%c3, %c0_54, %c0_55] : memref<9x128x128xbf16, #tpu.memory_space<vmem>>, vector<1x128x128xbf16>
    %109 = vector.shape_cast %108 : vector<1x128x128xbf16> to vector<128x128xbf16>
    %cst_56 = arith.constant dense<0.000000e+00> : vector<384x128xf32>
    %110 = tpu.matmul %107, %109, %cst_56 {dimension_numbers = #tpu.dot_dimension_numbers<[1], [0], [0], [1], [0, 0, 1, 1], [], []>} : vector<384x128xbf16>, vector<128x128xbf16>, vector<384x128xf32> -> vector<384x128xf32>
    %111 = arith.addf %106, %110 : vector<384x128xf32>
    %c48 = arith.constant 48 : index
    %c0_57 = arith.constant 0 : index
    %112 = vector.load %arg10[%c48, %c0_57] : memref<432x128xbf16, #tpu.memory_space<vmem>>, vector<384x128xbf16>
    %c6 = arith.constant 6 : index
    %c0_58 = arith.constant 0 : index
    %c0_59 = arith.constant 0 : index
    %113 = vector.load %arg7[%c6, %c0_58, %c0_59] : memref<9x128x128xbf16, #tpu.memory_space<vmem>>, vector<1x128x128xbf16>
    %114 = vector.shape_cast %113 : vector<1x128x128xbf16> to vector<128x128xbf16>
    %cst_60 = arith.constant dense<0.000000e+00> : vector<384x128xf32>
    %115 = tpu.matmul %112, %114, %cst_60 {dimension_numbers = #tpu.dot_dimension_numbers<[1], [0], [0], [1], [0, 0, 1, 1], [], []>} : vector<384x128xbf16>, vector<128x128xbf16>, vector<384x128xf32> -> vector<384x128xf32>
    %116 = arith.addf %111, %115 : vector<384x128xf32>
    %117 = vector.shape_cast %116 : vector<384x128xf32> to vector<16x24x128xf32>
    %118 = vector.extract_strided_slice %117 {offsets = [0, 0, 0], sizes = [16, 16, 128], strides = [1, 1, 1]} : vector<16x24x128xf32> to vector<16x16x128xf32>
    %c0_61 = arith.constant 0 : index
    %c0_62 = arith.constant 0 : index
    %119 = vector.load %arg10[%c0_61, %c0_62] : memref<432x128xbf16, #tpu.memory_space<vmem>>, vector<384x128xbf16>
    %c1 = arith.constant 1 : index
    %c0_63 = arith.constant 0 : index
    %c0_64 = arith.constant 0 : index
    %120 = vector.load %arg7[%c1, %c0_63, %c0_64] : memref<9x128x128xbf16, #tpu.memory_space<vmem>>, vector<1x128x128xbf16>
    %121 = vector.shape_cast %120 : vector<1x128x128xbf16> to vector<128x128xbf16>
    %cst_65 = arith.constant dense<0.000000e+00> : vector<384x128xf32>
    %122 = tpu.matmul %119, %121, %cst_65 {dimension_numbers = #tpu.dot_dimension_numbers<[1], [0], [0], [1], [0, 0, 1, 1], [], []>} : vector<384x128xbf16>, vector<128x128xbf16>, vector<384x128xf32> -> vector<384x128xf32>
    %c24_66 = arith.constant 24 : index
    %c0_67 = arith.constant 0 : index
    %123 = vector.load %arg10[%c24_66, %c0_67] : memref<432x128xbf16, #tpu.memory_space<vmem>>, vector<384x128xbf16>
    %c4 = arith.constant 4 : index
    %c0_68 = arith.constant 0 : index
    %c0_69 = arith.constant 0 : index
    %124 = vector.load %arg7[%c4, %c0_68, %c0_69] : memref<9x128x128xbf16, #tpu.memory_space<vmem>>, vector<1x128x128xbf16>
    %125 = vector.shape_cast %124 : vector<1x128x128xbf16> to vector<128x128xbf16>
    %cst_70 = arith.constant dense<0.000000e+00> : vector<384x128xf32>
    %126 = tpu.matmul %123, %125, %cst_70 {dimension_numbers = #tpu.dot_dimension_numbers<[1], [0], [0], [1], [0, 0, 1, 1], [], []>} : vector<384x128xbf16>, vector<128x128xbf16>, vector<384x128xf32> -> vector<384x128xf32>
    %127 = arith.addf %122, %126 : vector<384x128xf32>
    %c48_71 = arith.constant 48 : index
    %c0_72 = arith.constant 0 : index
    %128 = vector.load %arg10[%c48_71, %c0_72] : memref<432x128xbf16, #tpu.memory_space<vmem>>, vector<384x128xbf16>
    %c7 = arith.constant 7 : index
    %c0_73 = arith.constant 0 : index
    %c0_74 = arith.constant 0 : index
    %129 = vector.load %arg7[%c7, %c0_73, %c0_74] : memref<9x128x128xbf16, #tpu.memory_space<vmem>>, vector<1x128x128xbf16>
    %130 = vector.shape_cast %129 : vector<1x128x128xbf16> to vector<128x128xbf16>
    %cst_75 = arith.constant dense<0.000000e+00> : vector<384x128xf32>
    %131 = tpu.matmul %128, %130, %cst_75 {dimension_numbers = #tpu.dot_dimension_numbers<[1], [0], [0], [1], [0, 0, 1, 1], [], []>} : vector<384x128xbf16>, vector<128x128xbf16>, vector<384x128xf32> -> vector<384x128xf32>
    %132 = arith.addf %127, %131 : vector<384x128xf32>
    %133 = vector.shape_cast %132 : vector<384x128xf32> to vector<16x24x128xf32>
    %134 = vector.extract_strided_slice %133 {offsets = [0, 1, 0], sizes = [16, 16, 128], strides = [1, 1, 1]} : vector<16x24x128xf32> to vector<16x16x128xf32>
    %135 = arith.addf %118, %134 : vector<16x16x128xf32>
    %c0_76 = arith.constant 0 : index
    %c0_77 = arith.constant 0 : index
    %136 = vector.load %arg10[%c0_76, %c0_77] : memref<432x128xbf16, #tpu.memory_space<vmem>>, vector<384x128xbf16>
    %c2 = arith.constant 2 : index
    %c0_78 = arith.constant 0 : index
    %c0_79 = arith.constant 0 : index
    %137 = vector.load %arg7[%c2, %c0_78, %c0_79] : memref<9x128x128xbf16, #tpu.memory_space<vmem>>, vector<1x128x128xbf16>
    %138 = vector.shape_cast %137 : vector<1x128x128xbf16> to vector<128x128xbf16>
    %cst_80 = arith.constant dense<0.000000e+00> : vector<384x128xf32>
    %139 = tpu.matmul %136, %138, %cst_80 {dimension_numbers = #tpu.dot_dimension_numbers<[1], [0], [0], [1], [0, 0, 1, 1], [], []>} : vector<384x128xbf16>, vector<128x128xbf16>, vector<384x128xf32> -> vector<384x128xf32>
    %c24_81 = arith.constant 24 : index
    %c0_82 = arith.constant 0 : index
    %140 = vector.load %arg10[%c24_81, %c0_82] : memref<432x128xbf16, #tpu.memory_space<vmem>>, vector<384x128xbf16>
    %c5 = arith.constant 5 : index
    %c0_83 = arith.constant 0 : index
    %c0_84 = arith.constant 0 : index
    %141 = vector.load %arg7[%c5, %c0_83, %c0_84] : memref<9x128x128xbf16, #tpu.memory_space<vmem>>, vector<1x128x128xbf16>
    %142 = vector.shape_cast %141 : vector<1x128x128xbf16> to vector<128x128xbf16>
    %cst_85 = arith.constant dense<0.000000e+00> : vector<384x128xf32>
    %143 = tpu.matmul %140, %142, %cst_85 {dimension_numbers = #tpu.dot_dimension_numbers<[1], [0], [0], [1], [0, 0, 1, 1], [], []>} : vector<384x128xbf16>, vector<128x128xbf16>, vector<384x128xf32> -> vector<384x128xf32>
    %144 = arith.addf %139, %143 : vector<384x128xf32>
    %c48_86 = arith.constant 48 : index
    %c0_87 = arith.constant 0 : index
    %145 = vector.load %arg10[%c48_86, %c0_87] : memref<432x128xbf16, #tpu.memory_space<vmem>>, vector<384x128xbf16>
    %c8 = arith.constant 8 : index
    %c0_88 = arith.constant 0 : index
    %c0_89 = arith.constant 0 : index
    %146 = vector.load %arg7[%c8, %c0_88, %c0_89] : memref<9x128x128xbf16, #tpu.memory_space<vmem>>, vector<1x128x128xbf16>
    %147 = vector.shape_cast %146 : vector<1x128x128xbf16> to vector<128x128xbf16>
    %cst_90 = arith.constant dense<0.000000e+00> : vector<384x128xf32>
    %148 = tpu.matmul %145, %147, %cst_90 {dimension_numbers = #tpu.dot_dimension_numbers<[1], [0], [0], [1], [0, 0, 1, 1], [], []>} : vector<384x128xbf16>, vector<128x128xbf16>, vector<384x128xf32> -> vector<384x128xf32>
    %149 = arith.addf %144, %148 : vector<384x128xf32>
    %150 = vector.shape_cast %149 : vector<384x128xf32> to vector<16x24x128xf32>
    %151 = vector.extract_strided_slice %150 {offsets = [0, 2, 0], sizes = [16, 16, 128], strides = [1, 1, 1]} : vector<16x24x128xf32> to vector<16x16x128xf32>
    %152 = arith.addf %135, %151 : vector<16x16x128xf32>
    %c0_91 = arith.constant 0 : index
    %c0_92 = arith.constant 0 : index
    %153 = vector.load %arg8[%c0_91, %c0_92] : memref<1x128xf32, #tpu.memory_space<vmem>>, vector<1x128xf32>
    %154 = vector.shape_cast %153 : vector<1x128xf32> to vector<128xf32>
    %155 = vector.shape_cast %154 : vector<128xf32> to vector<1x1x128xf32>
    %156 = vector.broadcast %155 : vector<1x1x128xf32> to vector<16x16x128xf32>
    %157 = arith.addf %152, %156 : vector<16x16x128xf32>
    %cst_93 = arith.constant 0.000000e+00 : f32
    %158 = vector.broadcast %cst_93 : f32 to vector<16x16x128xf32>
    %159 = arith.cmpf ogt, %157, %158 : vector<16x16x128xf32>
    %cst_94 = arith.constant 1.000000e-01 : f32
    %160 = vector.broadcast %cst_94 : f32 to vector<16x16x128xf32>
    %161 = arith.mulf %160, %157 : vector<16x16x128xf32>
    %162 = arith.select %159, %157, %161 : vector<16x16x128xi1>, vector<16x16x128xf32>
    %c0_95 = arith.constant 0 : index
    %c0_96 = arith.constant 0 : index
    %c1_97 = arith.constant 1 : index
    %c0_98 = arith.constant 0 : index
    %163 = vector.load %arg3[%c0_95, %c0_96, %c1_97, %c0_98] : memref<1x16x24x128xbf16, #tpu.memory_space<vmem>>, vector<1x16x16x128xbf16>
    %164 = vector.shape_cast %163 : vector<1x16x16x128xbf16> to vector<16x16x128xbf16>
    %165 = arith.extf %164 : vector<16x16x128xbf16> to vector<16x16x128xf32>
    %166 = arith.addf %162, %165 : vector<16x16x128xf32>
    %c0_99 = arith.constant 0 : index
    %c0_100 = arith.constant 0 : index
    %c0_101 = arith.constant 0 : index
    %c0_102 = arith.constant 0 : index
    %167 = vector.load %arg9[%c0_99, %c0_100, %c0_101, %c0_102] : memref<1x16x16x128xf32, #tpu.memory_space<vmem>>, vector<1x16x16x128xf32>
    %168 = vector.shape_cast %167 : vector<1x16x16x128xf32> to vector<16x16x128xf32>
    %169 = vector.shape_cast %166 : vector<16x16x128xf32> to vector<1x16x16x128xf32>
    tpu.vector_store %arg9[%c0_99, %c0_100, %c0_101, %c0_102], %169 {strides = array<i32>} : memref<1x16x16x128xf32, #tpu.memory_space<vmem>>, vector<1x16x16x128xf32>,
    return
  }
  func.func @transform_0(%arg0: i32, %arg1: i32) -> (i32, i32, i32, i32) {
    %c16_i32 = arith.constant 16 : i32
    %0 = arith.muli %arg1, %c16_i32 : i32
    %c1_i32 = arith.constant 1 : i32
    %1 = arith.subi %0, %c1_i32 : i32
    %c0_i32 = arith.constant 0 : i32
    %2 = arith.maxsi %1, %c0_i32 : i32
    %c0_i32_0 = arith.constant 0 : i32
    %c0_i32_1 = arith.constant 0 : i32
    %c0_i32_2 = arith.constant 0 : i32
    return %arg0, %2, %c0_i32_0, %c0_i32_1 : i32, i32, i32, i32
  }
  func.func @transform_1(%arg0: i32, %arg1: i32) -> (i32, i32, i32, i32) {
    %c0_i32 = arith.constant 0 : i32
    %c0_i32_0 = arith.constant 0 : i32
    %c0_i32_1 = arith.constant 0 : i32
    return %arg0, %arg1, %c0_i32, %c0_i32_0 : i32, i32, i32, i32
  }
  func.func @transform_2(%arg0: i32, %arg1: i32) -> (i32, i32, i32, i32) {
    %c16_i32 = arith.constant 16 : i32
    %0 = arith.muli %arg1, %c16_i32 : i32
    %c16_i32_0 = arith.constant 16 : i32
    %1 = arith.addi %0, %c16_i32_0 : i32
    %c15_i32 = arith.constant 15 : i32
    %2 = arith.minsi %1, %c15_i32 : i32
    %c0_i32 = arith.constant 0 : i32
    %c0_i32_1 = arith.constant 0 : i32
    %c0_i32_2 = arith.constant 0 : i32
    return %arg0, %2, %c0_i32, %c0_i32_1 : i32, i32, i32, i32
  }
  func.func @transform_3(%arg0: i32, %arg1: i32) -> (i32, i32) {
    %c0_i32 = arith.constant 0 : i32
    %c0_i32_0 = arith.constant 0 : i32
    %c0_i32_1 = arith.constant 0 : i32
    return %c0_i32, %c0_i32_0 : i32, i32
  }
  func.func @transform_4(%arg0: i32, %arg1: i32) -> (i32, i32) {
    %c0_i32 = arith.constant 0 : i32
    %c0_i32_0 = arith.constant 0 : i32
    %c0_i32_1 = arith.constant 0 : i32
    return %c0_i32, %c0_i32_0 : i32, i32
  }
  func.func @transform_5(%arg0: i32, %arg1: i32) -> (i32, i32, i32) {
    %c0_i32 = arith.constant 0 : i32
    %c0_i32_0 = arith.constant 0 : i32
    %c0_i32_1 = arith.constant 0 : i32
    %c0_i32_2 = arith.constant 0 : i32
    return %c0_i32, %c0_i32_0, %c0_i32_1 : i32, i32, i32
  }
  func.func @transform_6(%arg0: i32, %arg1: i32) -> (i32, i32) {
    %c0_i32 = arith.constant 0 : i32
    %c0_i32_0 = arith.constant 0 : i32
    %c0_i32_1 = arith.constant 0 : i32
    return %c0_i32, %c0_i32_0 : i32, i32
  }
  func.func @transform_7(%arg0: i32, %arg1: i32) -> (i32, i32, i32, i32) {
    %c0_i32 = arith.constant 0 : i32
    %c0_i32_0 = arith.constant 0 : i32
    %c0_i32_1 = arith.constant 0 : i32
    return %arg0, %arg1, %c0_i32, %c0_i32_0 : i32, i32, i32, i32
  }
}

</mosaic_0001>

<llo_original>
// kernel: darknet_bottleneck_forward.1
$region0: #{darknet_bottleneck_forward.1}
  #allocation0 [shape = 'u32[]', space=smem, size = 0x4, offset = 0x4, fixed_abs, tag = 'smem constant byte address 0x4 - core index']
  #allocation1 [shape = 'u32[144,128]{1,0:T(1,128)}', space=vmem, size = 0x12000, scoped, tag = 'internal scratch']
  #allocation2 [shape = 'bf16[432,128]{1,0:T(16,128)(2,1)}', space=vmem, size = 0x1b000, scoped, tag = 'scratch operand']
  %s0 = inlined_call_operand.vmem [shape: bf16[2,16,24,128], index: 0, kind: input, shape index: {}, may-alias: {0,1,2}]
  %s1 = inlined_call_operand.vmem [shape: bf16[2,16,24,128], index: 1, kind: input, shape index: {}, may-alias: {0,1,2}]
  %s2 = inlined_call_operand.vmem [shape: bf16[2,16,24,128], index: 2, kind: input, shape index: {}, may-alias: {0,1,2}]
  %s3 = inlined_call_operand.vmem [shape: bf16[128,128], index: 3, kind: input, shape index: {}]
  %s4 = inlined_call_operand.vmem [shape: f32[1,128], index: 4, kind: input, shape index: {}]
  %s5 = inlined_call_operand.vmem [shape: bf16[9,128,128], index: 5, kind: input, shape index: {}]
  %s6 = inlined_call_operand.vmem [shape: f32[1,128], index: 6, kind: input, shape index: {}]
  %s7 = inlined_call_operand.vmem [shape: f32[2,16,16,128], index: 7, kind: output, shape index: {}]
  %s8 = sld [smem:[#allocation0]]
  $region61: #{darknet_bottleneck_forward.1} parent=0
    _
  %s10 = ssub.s32 1, %s8
  %s11 = scalar_select 0, %s10, %s8
  loop: start=0, step=1, limit=4
  $region2: #{darknet_bottleneck_forward.1} parent=0 // loop_pre_header
    _
  $region3: #{darknet_bottleneck_forward.1} parent=0 // loop_header
    %s13 = sphi 0, %s17
    %p14 = scmp.ge.s32.totalorder %s13, 4
    %s20 = sphi 0, %s32
    %s21 = sphi 0, %s28
    %s22 = sphi 0, %s20
    %s23 = sphi 0, %s21
    %s24 = sphi 0, %s22
    %s25 = sphi 0, %s23
    %s45 = sphi 0, %s47
    %s48 = sphi 0, %s45
    %s49 = sphi 0, %s48
    %s65 = sphi 0, %s49
    %s73 = sphi 0, %s75
    %s76 = sphi 0, %s73
    %s77 = sphi 0, %s76
    %s93 = sphi 0, %s77
    %s109 = sphi 0, %s111
    %s112 = sphi 0, %s109
    %s113 = sphi 0, %s112
    %s129 = sphi 0, %s113
    %s133 = sphi 0, %s133
    %s135 = sphi 0, %s133
    %s136 = sphi 0, %s135
    %s150 = sphi 0, %s136
    %s154 = sphi 0, %s154
    %s156 = sphi 0, %s154
    %s157 = sphi 0, %s156
    %s171 = sphi 0, %s157
    %s175 = sphi 0, %s175
    %s177 = sphi 0, %s175
    %s178 = sphi 0, %s177
    %s192 = sphi 0, %s178
    %s196 = sphi 0, %s196
    %s198 = sphi 0, %s196
    %s199 = sphi 0, %s198
    %s213 = sphi 0, %s199
    %s221 = sphi 0, %s223
    %s224 = sphi 0, %s221
    %s225 = sphi 0, %s224
    %s241 = sphi 0, %s225
  $region4: #{darknet_bottleneck_forward.1} parent=0 // loop_header_branch
    %16 = sbr.rel (%p14) target = $region8
  $region5: #{darknet_bottleneck_forward.1} parent=0 // loop_body
    %s18 = ssub.s32 %s13, 1
    %s19 = ssub.s32 %s13, 2
    %s26 = sadd.s32 1, %s21
    %p27 = scmp.ge.s32.totalorder %s26, 1
    %s28 = scalar_select %p27, 0, %s26
    %s29 = sadd.s32 1, %s20
    %s30 = scalar_select %p27, %s29, %s20
    %p31 = scmp.ge.s32.totalorder %s30, 2
    %s32 = scalar_select %p31, 0, %s30
    %s33 = smul.u32 %s21, 16
    %s34 = ssub.s32 %s33, 1
    %p35 = scmp.gt.s32.totalorder %s34, 0
    %s36 = scalar_select %p35, %s34, 0
    %s37 = smul.u32 %s28, 16
    %s38 = ssub.s32 %s37, 1
    %p39 = scmp.gt.s32.totalorder %s38, 0
    %s40 = scalar_select %p39, %s38, 0
    %s41 = ssub.s32 %s20, %s32
    %s42 = ssub.s32 %s36, %s40
    %s43 = sor.u32 %s41, %s42
    %p44 = scmp.eq.s32.totalorder %s43, 0
    %s46 = sadd.s32 %s45, 1
    %s47 = scalar_select %p44, %s45, %s46
    %p50 = pneg %p44
    %p51 = scmp.eq.s32.totalorder %s13, 1
    %p52 = por %p50, %p51
    %p53 = scmp.ne.s32.totalorder %s45, %s48
    %p54 = scmp.eq.s32.totalorder %s13, 0
    %p55 = por %p53, %p54
    %p56 = scmp.ne.s32.totalorder %s45, %s48
    %p57 = scmp.eq.s32.totalorder %s18, 1
    %p58 = por %p56, %p57
    %p59 = scmp.ne.s32.totalorder %s48, %s49
    %p60 = scmp.eq.s32.totalorder %s18, 0
    %p61 = por %p59, %p60
    %p62 = scmp.ne.s32.totalorder %s48, %s49
    %p63 = scmp.eq.s32.totalorder %s19, 1
    %p64 = por %p62, %p63
    %p66 = scmp.ne.s32.totalorder %s49, %s65
    %p67 = scmp.eq.s32.totalorder %s19, 0
    %p68 = por %p66, %p67
    %s69 = ssub.s32 %s20, %s32
    %s70 = ssub.s32 %s21, %s28
    %s71 = sor.u32 %s69, %s70
    %p72 = scmp.eq.s32.totalorder %s71, 0
    %s74 = sadd.s32 %s73, 1
    %s75 = scalar_select %p72, %s73, %s74
    %p78 = pneg %p72
    %p79 = scmp.eq.s32.totalorder %s13, 1
    %p80 = por %p78, %p79
    %p81 = scmp.ne.s32.totalorder %s73, %s76
    %p82 = scmp.eq.s32.totalorder %s13, 0
    %p83 = por %p81, %p82
    %p84 = scmp.ne.s32.totalorder %s73, %s76
    %p85 = scmp.eq.s32.totalorder %s18, 1
    %p86 = por %p84, %p85
    %p87 = scmp.ne.s32.totalorder %s76, %s77
    %p88 = scmp.eq.s32.totalorder %s18, 0
    %p89 = por %p87, %p88
    %p90 = scmp.ne.s32.totalorder %s76, %s77
    %p91 = scmp.eq.s32.totalorder %s19, 1
    %p92 = por %p90, %p91
    %p94 = scmp.ne.s32.totalorder %s77, %s93
    %p95 = scmp.eq.s32.totalorder %s19, 0
    %p96 = por %p94, %p95
    %s97 = smul.u32 %s21, 16
    %s98 = sadd.s32 %s97, 16
    %p99 = scmp.lt.s32.totalorder %s98, 15
    %s100 = scalar_select %p99, %s98, 15
    %s101 = smul.u32 %s28, 16
    %s102 = sadd.s32 %s101, 16
    %p103 = scmp.lt.s32.totalorder %s102, 15
    %s104 = scalar_select %p103, %s102, 15
    %s105 = ssub.s32 %s20, %s32
    %s106 = ssub.s32 %s100, %s104
    %s107 = sor.u32 %s105, %s106
    %p108 = scmp.eq.s32.totalorder %s107, 0
    %s110 = sadd.s32 %s109, 1
    %s111 = scalar_select %p108, %s109, %s110
    %p114 = pneg %p108
    %p115 = scmp.eq.s32.totalorder %s13, 1
    %p116 = por %p114, %p115
    %p117 = scmp.ne.s32.totalorder %s109, %s112
    %p118 = scmp.eq.s32.totalorder %s13, 0
    %p119 = por %p117, %p118
    %p120 = scmp.ne.s32.totalorder %s109, %s112
    %p121 = scmp.eq.s32.totalorder %s18, 1
    %p122 = por %p120, %p121
    %p123 = scmp.ne.s32.totalorder %s112, %s113
    %p124 = scmp.eq.s32.totalorder %s18, 0
    %p125 = por %p123, %p124
    %p126 = scmp.ne.s32.totalorder %s112, %s113
    %p127 = scmp.eq.s32.totalorder %s19, 1
    %p128 = por %p126, %p127
    %p130 = scmp.ne.s32.totalorder %s113, %s129
    %p131 = scmp.eq.s32.totalorder %s19, 0
    %p132 = por %p130, %p131
    %s134 = sadd.s32 %s133, 1
    %p137 = scmp.eq.s32.totalorder %s13, 1
    %p138 = scmp.ne.s32.totalorder %s133, %s135
    %p139 = scmp.eq.s32.totalorder %s13, 0
    %p140 = por %p138, %p139
    %p141 = scmp.ne.s32.totalorder %s133, %s135
    %p142 = scmp.eq.s32.totalorder %s18, 1
    %p143 = por %p141, %p142
    %p144 = scmp.ne.s32.totalorder %s135, %s136
    %p145 = scmp.eq.s32.totalorder %s18, 0
    %p146 = por %p144, %p145
    %p147 = scmp.ne.s32.totalorder %s135, %s136
    %p148 = scmp.eq.s32.totalorder %s19, 1
    %p149 = por %p147, %p148
    %p151 = scmp.ne.s32.totalorder %s136, %s150
    %p152 = scmp.eq.s32.totalorder %s19, 0
    %p153 = por %p151, %p152
    %s155 = sadd.s32 %s154, 1
    %p158 = scmp.eq.s32.totalorder %s13, 1
    %p159 = scmp.ne.s32.totalorder %s154, %s156
    %p160 = scmp.eq.s32.totalorder %s13, 0
    %p161 = por %p159, %p160
    %p162 = scmp.ne.s32.totalorder %s154, %s156
    %p163 = scmp.eq.s32.totalorder %s18, 1
    %p164 = por %p162, %p163
    %p165 = scmp.ne.s32.totalorder %s156, %s157
    %p166 = scmp.eq.s32.totalorder %s18, 0
    %p167 = por %p165, %p166
    %p168 = scmp.ne.s32.totalorder %s156, %s157
    %p169 = scmp.eq.s32.totalorder %s19, 1
    %p170 = por %p168, %p169
    %p172 = scmp.ne.s32.totalorder %s157, %s171
    %p173 = scmp.eq.s32.totalorder %s19, 0
    %p174 = por %p172, %p173
    %s176 = sadd.s32 %s175, 1
    %p179 = scmp.eq.s32.totalorder %s13, 1
    %p180 = scmp.ne.s32.totalorder %s175, %s177
    %p181 = scmp.eq.s32.totalorder %s13, 0
    %p182 = por %p180, %p181
    %p183 = scmp.ne.s32.totalorder %s175, %s177
    %p184 = scmp.eq.s32.totalorder %s18, 1
    %p185 = por %p183, %p184
    %p186 = scmp.ne.s32.totalorder %s177, %s178
    %p187 = scmp.eq.s32.totalorder %s18, 0
    %p188 = por %p186, %p187
    %p189 = scmp.ne.s32.totalorder %s177, %s178
    %p190 = scmp.eq.s32.totalorder %s19, 1
    %p191 = por %p189, %p190
    %p193 = scmp.ne.s32.totalorder %s178, %s192
    %p194 = scmp.eq.s32.totalorder %s19, 0
    %p195 = por %p193, %p194
    %s197 = sadd.s32 %s196, 1
    %p200 = scmp.eq.s32.totalorder %s13, 1
    %p201 = scmp.ne.s32.totalorder %s196, %s198
    %p202 = scmp.eq.s32.totalorder %s13, 0
    %p203 = por %p201, %p202
    %p204 = scmp.ne.s32.totalorder %s196, %s198
    %p205 = scmp.eq.s32.totalorder %s18, 1
    %p206 = por %p204, %p205
    %p207 = scmp.ne.s32.totalorder %s198, %s199
    %p208 = scmp.eq.s32.totalorder %s18, 0
    %p209 = por %p207, %p208
    %p210 = scmp.ne.s32.totalorder %s198, %s199
    %p211 = scmp.eq.s32.totalorder %s19, 1
    %p212 = por %p210, %p211
    %p214 = scmp.ne.s32.totalorder %s199, %s213
    %p215 = scmp.eq.s32.totalorder %s19, 0
    %p216 = por %p214, %p215
    %s217 = ssub.s32 %s20, %s32
    %s218 = ssub.s32 %s21, %s28
    %s219 = sor.u32 %s217, %s218
    %p220 = scmp.eq.s32.totalorder %s219, 0
    %s222 = sadd.s32 %s221, 1
    %s223 = scalar_select %p220, %s221, %s222
    %p226 = pneg %p220
    %p227 = scmp.eq.s32.totalorder %s13, 1
    %p228 = por %p226, %p227
    %p229 = scmp.ne.s32.totalorder %s221, %s224
    %p230 = scmp.eq.s32.totalorder %s13, 0
    %p231 = por %p229, %p230
    %p232 = scmp.ne.s32.totalorder %s221, %s224
    %p233 = scmp.eq.s32.totalorder %s18, 1
    %p234 = por %p232, %p233
    %p235 = scmp.ne.s32.totalorder %s224, %s225
    %p236 = scmp.eq.s32.totalorder %s18, 0
    %p237 = por %p235, %p236
    %p238 = scmp.ne.s32.totalorder %s224, %s225
    %p239 = scmp.eq.s32.totalorder %s19, 1
    %p240 = por %p238, %p239
    %p242 = scmp.ne.s32.totalorder %s225, %s241
    %p243 = scmp.eq.s32.totalorder %s19, 0
    %p244 = por %p242, %p243
    %p245 = scmp.le.s32.totalorder 1, %s13
    %p246 = scmp.lt.s32.totalorder %s13, 3
    %p247 = pnand %p245, %p246
    %p248 = pneg %p247
    // Predicated region
    $region9: #{darknet_bottleneck_forward.1} parent=5 // pred_check
      _
    $region10: #{darknet_bottleneck_forward.1} parent=5 // pred_check_branch
      %250 = sbr.rel (%p247) target = $region12
    $region11: #{darknet_bottleneck_forward.1} parent=5 // pred_region
      %s251 = ssub.s32 %s13, 1
      // Predicated region
      $region13: #{darknet_bottleneck_forward.1} parent=11 // pred_check
        %p252 = pneg %p146
      $region14: #{darknet_bottleneck_forward.1} parent=11 // pred_check_branch
        %254 = sbr.rel (%p252) target = $region16
      $region15: #{darknet_bottleneck_forward.1} parent=11 // pred_region
        _
      $region16: #{darknet_bottleneck_forward.1} parent=11 // pred_fallthru
        _
      // Predicated region
      $region17: #{darknet_bottleneck_forward.1} parent=11 // pred_check
        %p255 = pneg %p167
      $region18: #{darknet_bottleneck_forward.1} parent=11 // pred_check_branch
        %257 = sbr.rel (%p255) target = $region20
      $region19: #{darknet_bottleneck_forward.1} parent=11 // pred_region
        _
      $region20: #{darknet_bottleneck_forward.1} parent=11 // pred_fallthru
        _
      // Predicated region
      $region21: #{darknet_bottleneck_forward.1} parent=11 // pred_check
        %p258 = pneg %p188
      $region22: #{darknet_bottleneck_forward.1} parent=11 // pred_check_branch
        %260 = sbr.rel (%p258) target = $region24
      $region23: #{darknet_bottleneck_forward.1} parent=11 // pred_region
        _
      $region24: #{darknet_bottleneck_forward.1} parent=11 // pred_fallthru
        _
      // Predicated region
      $region25: #{darknet_bottleneck_forward.1} parent=11 // pred_check
        %p261 = pneg %p209
      $region26: #{darknet_bottleneck_forward.1} parent=11 // pred_check_branch
        %263 = sbr.rel (%p261) target = $region28
      $region27: #{darknet_bottleneck_forward.1} parent=11 // pred_region
        _
      $region28: #{darknet_bottleneck_forward.1} parent=11 // pred_fallthru
        _
    $region12: #{darknet_bottleneck_forward.1} parent=5 // pred_fallthru
      _
    %p264 = scmp.lt.s32.totalorder %s13, 2
    // Predicated region
    $region29: #{darknet_bottleneck_forward.1} parent=5 // pred_check
      %p265 = pneg %p264
    $region30: #{darknet_bottleneck_forward.1} parent=5 // pred_check_branch
      %267 = sbr.rel (%p265) target = $region32
    $region31: #{darknet_bottleneck_forward.1} parent=5 // pred_region
      // Predicated region
      $region33: #{darknet_bottleneck_forward.1} parent=31 // pred_check
        %p268 = pneg %p55
      $region34: #{darknet_bottleneck_forward.1} parent=31 // pred_check_branch
        %270 = sbr.rel (%p268) target = $region36
      $region35: #{darknet_bottleneck_forward.1} parent=31 // pred_region
        %s271 = smul.u32 %s21, 16
        %s272 = ssub.s32 %s271, 1
        %p273 = scmp.gt.s32.totalorder %s272, 0
        %s274 = scalar_select %p273, %s272, 0
        %p275 = scmp.lt.s32.totalorder %s20, 1
        %s276 = scalar_select %p275, %s20, 1
        %p277 = scmp.lt.s32.totalorder %s274, 15
        %s278 = scalar_select %p277, %s274, 15
        %s279 = smul.addr %s278, 3
        %s280 = smul.addr %s276, 48
        %s281 = sadd.s32 %s279, %s280
        %s282 = smul.addr %s281, 4
        %s283 = scalar_lea.vmem %s0, %s282
        %s284 = smul.u32 %s21, 16
        %s285 = ssub.s32 %s284, 1
        %p286 = scmp.gt.s32.totalorder %s285, 0
        %s287 = scalar_select %p286, %s285, 0
      $region36: #{darknet_bottleneck_forward.1} parent=31 // pred_fallthru
        _
      // Predicated region
      $region37: #{darknet_bottleneck_forward.1} parent=31 // pred_check
        %p288 = pneg %p83
      $region38: #{darknet_bottleneck_forward.1} parent=31 // pred_check_branch
        %290 = sbr.rel (%p288) target = $region40
      $region39: #{darknet_bottleneck_forward.1} parent=31 // pred_region
        %s291 = smul.u32 16, %s21
        %p292 = scmp.lt.s32.totalorder %s20, 1
        %s293 = scalar_select %p292, %s20, 1
        %p294 = scmp.lt.s32.totalorder %s291, 15
        %s295 = scalar_select %p294, %s291, 15
        %s296 = smul.addr %s295, 3
        %s297 = smul.addr %s293, 48
        %s298 = sadd.s32 %s296, %s297
        %s299 = smul.addr %s298, 4
        %s300 = scalar_lea.vmem %s1, %s299
        %s301 = smul.u32 16, %s21
      $region40: #{darknet_bottleneck_forward.1} parent=31 // pred_fallthru
        _
      // Predicated region
      $region41: #{darknet_bottleneck_forward.1} parent=31 // pred_check
        %p302 = pneg %p119
      $region42: #{darknet_bottleneck_forward.1} parent=31 // pred_check_branch
        %304 = sbr.rel (%p302) target = $region44
      $region43: #{darknet_bottleneck_forward.1} parent=31 // pred_region
        %s305 = smul.u32 %s21, 16
        %s306 = sadd.s32 %s305, 16
        %p307 = scmp.lt.s32.totalorder %s306, 15
        %s308 = scalar_select %p307, %s306, 15
        %p309 = scmp.lt.s32.totalorder %s20, 1
        %s310 = scalar_select %p309, %s20, 1
        %p311 = scmp.lt.s32.totalorder %s308, 15
        %s312 = scalar_select %p311, %s308, 15
        %s313 = smul.addr %s312, 3
        %s314 = smul.addr %s310, 48
        %s315 = sadd.s32 %s313, %s314
        %s316 = smul.addr %s315, 4
        %s317 = scalar_lea.vmem %s2, %s316
        %s318 = smul.u32 %s21, 16
        %s319 = sadd.s32 %s318, 16
        %p320 = scmp.lt.s32.totalorder %s319, 15
        %s321 = scalar_select %p320, %s319, 15
      $region44: #{darknet_bottleneck_forward.1} parent=31 // pred_fallthru
        _
    $region32: #{darknet_bottleneck_forward.1} parent=5 // pred_fallthru
      _
    %p322 = scmp.le.s32.totalorder 1, %s13
    %p323 = scmp.lt.s32.totalorder %s13, 3
    %p324 = pnand %p322, %p323
    %p325 = pneg %p324
    // Predicated region
    $region45: #{darknet_bottleneck_forward.1} parent=5 // pred_check
      _
    $region46: #{darknet_bottleneck_forward.1} parent=5 // pred_check_branch
      %327 = sbr.rel (%p324) target = $region48
    $region47: #{darknet_bottleneck_forward.1} parent=5 // pred_region
      %s328 = ssub.s32 %s13, 1
      %s329 = smul.u32 %s23, 16
      %s330 = ssub.s32 %s329, 1
      %p331 = scmp.gt.s32.totalorder %s330, 0
      %s332 = scalar_select %p331, %s330, 0
      %p333 = scmp.lt.s32.totalorder %s22, 1
      %s334 = scalar_select %p333, %s22, 1
      %p335 = scmp.lt.s32.totalorder %s332, 15
      %s336 = scalar_select %p335, %s332, 15
      %s337 = smul.addr %s336, 3
      %s338 = smul.addr %s334, 48
      %s339 = sadd.s32 %s337, %s338
      %s340 = smul.addr %s339, 4
      %s341 = scalar_lea.vmem %s0, %s340
      %p342 = pneg %p61
      %p343 = pneg %p58
      %s344 = smul.u32 16, %s23
      %p345 = scmp.lt.s32.totalorder %s22, 1
      %s346 = scalar_select %p345, %s22, 1
      %p347 = scmp.lt.s32.totalorder %s344, 15
      %s348 = scalar_select %p347, %s344, 15
      %s349 = smul.addr %s348, 3
      %s350 = smul.addr %s346, 48
      %s351 = sadd.s32 %s349, %s350
      %s352 = smul.addr %s351, 4
      %s353 = scalar_lea.vmem %s1, %s352
      %p354 = pneg %p89
      %p355 = pneg %p86
      %s356 = smul.u32 %s23, 16
      %s357 = sadd.s32 %s356, 16
      %p358 = scmp.lt.s32.totalorder %s357, 15
      %s359 = scalar_select %p358, %s357, 15
      %p360 = scmp.lt.s32.totalorder %s22, 1
      %s361 = scalar_select %p360, %s22, 1
      %p362 = scmp.lt.s32.totalorder %s359, 15
      %s363 = scalar_select %p362, %s359, 15
      %s364 = smul.addr %s363, 3
      %s365 = smul.addr %s361, 48
      %s366 = sadd.s32 %s364, %s365
      %s367 = smul.addr %s366, 4
      %s368 = scalar_lea.vmem %s2, %s367
      %p369 = pneg %p125
      %p370 = pneg %p122
      %p371 = pneg %p146
      %p372 = pneg %p143
      %p373 = pneg %p167
      %p374 = pneg %p164
      %p375 = pneg %p188
      %p376 = pneg %p185
      %p377 = pneg %p209
      %p378 = pneg %p206
      %p379 = pneg %p237
      %p380 = pneg %p234
      %s381 = smul.u32 16, %s23
      %p382 = scmp.lt.s32.totalorder %s22, 1
      %s383 = scalar_select %p382, %s22, 1
      %p384 = scmp.lt.s32.totalorder %s381, 15
      %s385 = scalar_select %p384, %s381, 15
      %s386 = smul.addr %s385, 2
      %s387 = smul.addr %s383, 32
      %s388 = sadd.s32 %s386, %s387
      %s389 = smul.addr %s388, 8
      %s390 = scalar_lea.vmem %s7, %s389
      %s391 = smul.u32 %s23, 16
      %s392 = ssub.s32 %s391, 1
      %p393 = scmp.gt.s32.totalorder %s392, 0
      %s394 = scalar_select %p393, %s392, 0
      %p395 = scmp.lt.s32.totalorder %s22, 1
      %s396 = scalar_select %p395, %s22, 1
      %p397 = scmp.lt.s32.totalorder %s394, 15
      %s398 = scalar_select %p397, %s394, 15
      %s399 = smul.addr %s398, 3
      %s400 = smul.addr %s396, 48
      %s401 = sadd.s32 %s399, %s400
      %s402 = smul.addr %s401, 4
      %s403 = scalar_lea.vmem %s0, %s402
      %s404 = smul.u32 %s23, 16
      %s405 = ssub.s32 %s404, 1
      %p406 = scmp.gt.s32.totalorder %s405, 0
      %s407 = scalar_select %p406, %s405, 0
      %s408 = smul.u32 16, %s23
      %p409 = scmp.lt.s32.totalorder %s22, 1
      %s410 = scalar_select %p409, %s22, 1
      %p411 = scmp.lt.s32.totalorder %s408, 15
      %s412 = scalar_select %p411, %s408, 15
      %s413 = smul.addr %s412, 3
      %s414 = smul.addr %s410, 48
      %s415 = sadd.s32 %s413, %s414
      %s416 = smul.addr %s415, 4
      %s417 = scalar_lea.vmem %s1, %s416
      %s418 = smul.u32 16, %s23
      %s419 = smul.u32 %s23, 16
      %s420 = sadd.s32 %s419, 16
      %p421 = scmp.lt.s32.totalorder %s420, 15
      %s422 = scalar_select %p421, %s420, 15
      %p423 = scmp.lt.s32.totalorder %s22, 1
      %s424 = scalar_select %p423, %s22, 1
      %p425 = scmp.lt.s32.totalorder %s422, 15
      %s426 = scalar_select %p425, %s422, 15
      %s427 = smul.addr %s426, 3
      %s428 = smul.addr %s424, 48
      %s429 = sadd.s32 %s427, %s428
      %s430 = smul.addr %s429, 4
      %s431 = scalar_lea.vmem %s2, %s430
      %s432 = smul.u32 %s23, 16
      %s433 = sadd.s32 %s432, 16
      %p434 = scmp.lt.s32.totalorder %s433, 15
      %s435 = scalar_select %p434, %s433, 15
      %s436 = smul.u32 16, %s23
      %p437 = scmp.lt.s32.totalorder %s22, 1
      %s438 = scalar_select %p437, %s22, 1
      %p439 = scmp.lt.s32.totalorder %s436, 15
      %s440 = scalar_select %p439, %s436, 15
      %s441 = smul.addr %s440, 2
      %s442 = smul.addr %s438, 32
      %s443 = sadd.s32 %s441, %s442
      %s444 = smul.addr %s443, 8
      %s445 = scalar_lea.vmem %s7, %s444
      %s446 = smul.u32 16, %s23
      %v448 = vlaneseq
      %v449 = vshrl.u32 %v448, 7
      %v450 = vadd.s32 %v449, 8
      %v451 = vadd.s32 %v449, 16
      %vm452 = vcmp.ge.s32.totalorder %v449, 1
      %vm453 = vcmp.ge.s32.totalorder %v450, 1
      %vm454 = vcmp.ge.s32.totalorder %v451, 1
      %vm455 = vcmp.le.s32.totalorder %v449, 16
      %vm456 = vcmp.le.s32.totalorder %v450, 16
      %vm457 = vcmp.le.s32.totalorder %v451, 16
      %vm458 = vmand %vm452, %vm455
      %vm459 = vmand %vm453, %vm456
      %vm460 = vmand %vm454, %vm457
      %s461 = smul.u32 %s23, 16
      %v462 = vld [vmem:[%s403] sm:$0xf]
      %v463 = vld [vmem:[%s403 + $0x4] sm:$0xf]
      %v464 = vld [vmem:[%s403 + $0x8] sm:$0xf]
      %s465 = ssub.s32 %s461, 1
      %v466 = vld [vmem:[%s3] sm:$0xf]
      %v467 = vld [vmem:[%s3 + $0x4] sm:$0xf]
      %v468 = vld [vmem:[%s3 + $0x8] sm:$0xf]
      %v469 = vld [vmem:[%s3 + $0xc] sm:$0xf]
      %v470 = vld [vmem:[%s3 + $0x10] sm:$0xf]
      %v471 = vld [vmem:[%s3 + $0x14] sm:$0xf]
      %v472 = vld [vmem:[%s3 + $0x18] sm:$0xf]
      %v473 = vld [vmem:[%s3 + $0x1c] sm:$0xf]
      %v474 = vld [vmem:[%s3 + $0x20] sm:$0xf]
      %v475 = vld [vmem:[%s3 + $0x24] sm:$0xf]
      %v476 = vld [vmem:[%s3 + $0x28] sm:$0xf]
      %v477 = vld [vmem:[%s3 + $0x2c] sm:$0xf]
      %v478 = vld [vmem:[%s3 + $0x30] sm:$0xf]
      %v479 = vld [vmem:[%s3 + $0x34] sm:$0xf]
      %v480 = vld [vmem:[%s3 + $0x38] sm:$0xf]
      %v481 = vld [vmem:[%s3 + $0x3c] sm:$0xf]
      %v482 = vld [vmem:[%s4] sm:$0x1]
      %v484 = vlaneseq
      %v485 = vshrl.u32 %v484, 7
      %v486 = vsub.s32 0, %v485
      %v487 = vrot.slane %v482, %v486
      %v492 = vunpack.c.l.b16 %v462
      %v493 = vunpack.c.l.b16 %v463
      %v494 = vunpack.c.l.b16 %v464
      %v495 = vpack.c.b16 %v493, %v492
      %v496 = vpack.c.b16 %v494, %v494
      %v515 = vunpack.c.l.b16 %v466
      %v516 = vunpack.c.l.b16 %v467
      %v517 = vunpack.c.l.b16 %v468
      %v518 = vunpack.c.l.b16 %v469
      %v519 = vunpack.c.l.b16 %v470
      %v520 = vunpack.c.l.b16 %v471
      %v521 = vunpack.c.l.b16 %v472
      %v522 = vunpack.c.l.b16 %v473
      %v523 = vunpack.c.l.b16 %v474
      %v524 = vunpack.c.l.b16 %v475
      %v525 = vunpack.c.l.b16 %v476
      %v526 = vunpack.c.l.b16 %v477
      %v527 = vunpack.c.l.b16 %v478
      %v528 = vunpack.c.l.b16 %v479
      %v529 = vunpack.c.l.b16 %v480
      %v530 = vunpack.c.l.b16 %v481
      %v531 = vpack.c.b16 %v516, %v515
      %v532 = vpack.c.b16 %v518, %v517
      %v533 = vpack.c.b16 %v520, %v519
      %v534 = vpack.c.b16 %v522, %v521
      %v535 = vpack.c.b16 %v524, %v523
      %v536 = vpack.c.b16 %v526, %v525
      %v537 = vpack.c.b16 %v528, %v527
      %v538 = vpack.c.b16 %v530, %v529
      %547 = vmatprep.subr.bf16.mxu0 0
      %548 = vmatpush1.bf16.msra.mxu0 %v531
      %549 = vmatprep.subr.bf16.mxu0 0
      %550 = vmatpush1.bf16.msra.mxu0 %v532
      %551 = vmatprep.subr.bf16.mxu0 0
      %552 = vmatpush1.bf16.msra.mxu0 %v533
      %553 = vmatprep.subr.bf16.mxu0 0
      %554 = vmatpush1.bf16.msra.mxu0 %v534
      %555 = vmatprep.subr.bf16.mxu0 0
      %556 = vmatpush1.bf16.msra.mxu0 %v535
      %557 = vmatprep.subr.bf16.mxu0 0
      %558 = vmatpush1.bf16.msra.mxu0 %v536
      %559 = vmatprep.subr.bf16.mxu0 0
      %560 = vmatpush1.bf16.msra.mxu0 %v537
      %561 = vmatprep.subr.bf16.mxu0 0
      %562 = vmatpush1.bf16.msra.mxu0 %v538
      %563 = vmatprep.subr.bf16.mxu0 0
      %564 = vmatpush1.bf16.msra.mxu0 0
      %565 = vmatprep.subr.bf16.mxu0 0
      %566 = vmatpush1.bf16.msra.mxu0 0
      %567 = vmatprep.subr.bf16.mxu0 0
      %568 = vmatpush1.bf16.msra.mxu0 0
      %569 = vmatprep.subr.bf16.mxu0 0
      %570 = vmatpush1.bf16.msra.mxu0 0
      %571 = vmatprep.subr.bf16.mxu0 0
      %572 = vmatpush1.bf16.msra.mxu0 0
      %573 = vmatprep.subr.bf16.mxu0 0
      %574 = vmatpush1.bf16.msra.mxu0 0
      %575 = vmatprep.subr.bf16.mxu0 0
      %576 = vmatpush1.bf16.msra.mxu0 0
      %577 = vmatprep.subr.bf16.mxu0 0
      %578 = vmatpush1.bf16.msra.mxu0 0
      %579 = vmatprep.mubr.bf16.mxu0 0
      %580 = vmatmul.mubr.bf16.gmra.mrb[0].mxu0 %v495
      %v581 = vpop.f32.mrb[0].mxu0
      %v582 = vadd.f32 %v487, %v581
      %v583 = vpop.f32.mrb[0].mxu0
      %v584 = vpop.f32.mrb[0].mxu0
      %v585 = vadd.f32 %v487, %v584
      %v586 = vpop.f32.mrb[0].mxu0
      %587 = vmatprep.mubr.bf16.mxu0 0
      %588 = vmatmul.mubr.bf16.gmra.mrb[0].mxu0 %v496
      %v589 = vpop.f32.mrb[0].mxu0
      %v590 = vadd.f32 %v487, %v589
      %v591 = vpop.f32.mrb[0].mxu0
      %v592 = vpop.f32.mrb[0].mxu0
      %v593 = vpop.f32.mrb[0].mxu0
      %594 = vdwg.mxu0
      %vm595 = vcmp.gt.f32.partialorder %v582, 0.0
      %vm596 = vcmp.gt.f32.partialorder %v585, 0.0
      %vm597 = vcmp.gt.f32.partialorder %v590, 0.0
      %v598 = vmul.f32 %v582, 0.1
      %v599 = vmul.f32 %v585, 0.1
      %v600 = vmul.f32 %v590, 0.1
      %v601 = vsel %vm595, %v582, %v598
      %v602 = vsel %vm596, %v585, %v599
      %v603 = vsel %vm597, %v590, %v600
      %v604 = vstv %s465
      %vm605 = vcmp.ge.s32.totalorder %v604, 0
      %vm606 = vcmp.lt.s32.totalorder %v604, 16
      %vm607 = vmand %vm605, %vm606
      %v608 = vsel %vm607, 1, 0
      %vm609 = vcmp.eq.s32.totalorder %v608, 1
      %vm610 = vmand %vm609, %vm458
      %vm611 = vmand %vm609, %vm459
      %vm612 = vmand %vm609, %vm460
      %v613 = vsel %vm610, 1, 0
      %v614 = vsel %vm611, 1, 0
      %v615 = vsel %vm612, 1, 0
      %vm616 = vcmp.eq.s32.totalorder %v613, 1
      %vm617 = vcmp.eq.s32.totalorder %v614, 1
      %vm618 = vcmp.eq.s32.totalorder %v615, 1
      %v619 = vsel %vm616, %v601, 0.0
      %v620 = vsel %vm617, %v602, 0.0
      %v621 = vsel %vm618, %v603, 0.0
      %v622 = vpack.c.bf16 %v620, %v619
      %v623 = vpack.c.bf16 %v621, %v621
      %624 = vst [vmem:[#allocation2] sm:$0xff] %v622
      %625 = vst [vmem:[#allocation2 + $0x8] sm:$0xf] %v623
      %v626 = vld [vmem:[%s417] sm:$0xf]
      %v627 = vld [vmem:[%s417 + $0x4] sm:$0xf]
      %v628 = vld [vmem:[%s417 + $0x8] sm:$0xf]
      %v629 = vld [vmem:[%s417 + $0xc] sm:$0xf]
      %v630 = vld [vmem:[%s417 + $0x10] sm:$0xf]
      %v631 = vld [vmem:[%s417 + $0x14] sm:$0xf]
      %v632 = vld [vmem:[%s417 + $0x18] sm:$0xf]
      %v633 = vld [vmem:[%s417 + $0x1c] sm:$0xf]
      %v634 = vld [vmem:[%s417 + $0x20] sm:$0xf]
      %v635 = vld [vmem:[%s417 + $0x24] sm:$0xf]
      %v636 = vld [vmem:[%s417 + $0x28] sm:$0xf]
      %v637 = vld [vmem:[%s417 + $0x2c] sm:$0xf]
      %v638 = vld [vmem:[%s417 + $0x30] sm:$0xf]
      %v639 = vld [vmem:[%s417 + $0x34] sm:$0xf]
      %v640 = vld [vmem:[%s417 + $0x38] sm:$0xf]
      %v641 = vld [vmem:[%s417 + $0x3c] sm:$0xf]
      %v642 = vld [vmem:[%s417 + $0x40] sm:$0xf]
      %v643 = vld [vmem:[%s417 + $0x44] sm:$0xf]
      %v644 = vld [vmem:[%s417 + $0x48] sm:$0xf]
      %v645 = vld [vmem:[%s417 + $0x4c] sm:$0xf]
      %v646 = vld [vmem:[%s417 + $0x50] sm:$0xf]
      %v647 = vld [vmem:[%s417 + $0x54] sm:$0xf]
      %v648 = vld [vmem:[%s417 + $0x58] sm:$0xf]
      %v649 = vld [vmem:[%s417 + $0x5c] sm:$0xf]
      %v650 = vld [vmem:[%s417 + $0x60] sm:$0xf]
      %v651 = vld [vmem:[%s417 + $0x64] sm:$0xf]
      %v652 = vld [vmem:[%s417 + $0x68] sm:$0xf]
      %v653 = vld [vmem:[%s417 + $0x6c] sm:$0xf]
      %v654 = vld [vmem:[%s417 + $0x70] sm:$0xf]
      %v655 = vld [vmem:[%s417 + $0x74] sm:$0xf]
      %v656 = vld [vmem:[%s417 + $0x78] sm:$0xf]
      %v657 = vld [vmem:[%s417 + $0x7c] sm:$0xf]
      %v658 = vld [vmem:[%s417 + $0x80] sm:$0xf]
      %v659 = vld [vmem:[%s417 + $0x84] sm:$0xf]
      %v660 = vld [vmem:[%s417 + $0x88] sm:$0xf]
      %v661 = vld [vmem:[%s417 + $0x8c] sm:$0xf]
      %v662 = vld [vmem:[%s417 + $0x90] sm:$0xf]
      %v663 = vld [vmem:[%s417 + $0x94] sm:$0xf]
      %v664 = vld [vmem:[%s417 + $0x98] sm:$0xf]
      %v665 = vld [vmem:[%s417 + $0x9c] sm:$0xf]
      %v666 = vld [vmem:[%s417 + $0xa0] sm:$0xf]
      %v667 = vld [vmem:[%s417 + $0xa4] sm:$0xf]
      %v668 = vld [vmem:[%s417 + $0xa8] sm:$0xf]
      %v669 = vld [vmem:[%s417 + $0xac] sm:$0xf]
      %v670 = vld [vmem:[%s417 + $0xb0] sm:$0xf]
      %v671 = vld [vmem:[%s417 + $0xb4] sm:$0xf]
      %v672 = vld [vmem:[%s417 + $0xb8] sm:$0xf]
      %v673 = vld [vmem:[%s417 + $0xbc] sm:$0xf]
      %v674 = vld [vmem:[%s3] sm:$0xf]
      %v675 = vld [vmem:[%s3 + $0x4] sm:$0xf]
      %v676 = vld [vmem:[%s3 + $0x8] sm:$0xf]
      %v677 = vld [vmem:[%s3 + $0xc] sm:$0xf]
      %v678 = vld [vmem:[%s3 + $0x10] sm:$0xf]
      %v679 = vld [vmem:[%s3 + $0x14] sm:$0xf]
      %v680 = vld [vmem:[%s3 + $0x18] sm:$0xf]
      %v681 = vld [vmem:[%s3 + $0x1c] sm:$0xf]
      %v682 = vld [vmem:[%s3 + $0x20] sm:$0xf]
      %v683 = vld [vmem:[%s3 + $0x24] sm:$0xf]
      %v684 = vld [vmem:[%s3 + $0x28] sm:$0xf]
      %v685 = vld [vmem:[%s3 + $0x2c] sm:$0xf]
      %v686 = vld [vmem:[%s3 + $0x30] sm:$0xf]
      %v687 = vld [vmem:[%s3 + $0x34] sm:$0xf]
      %v688 = vld [vmem:[%s3 + $0x38] sm:$0xf]
      %v689 = vld [vmem:[%s3 + $0x3c] sm:$0xf]
      %v690 = vld [vmem:[%s4] sm:$0x1]
      %v692 = vlaneseq
      %v693 = vshrl.u32 %v692, 7
      %v694 = vsub.s32 0, %v693
      %v695 = vrot.slane %v690, %v694
      %v745 = vunpack.c.l.b16 %v626
      %v746 = vunpack.c.l.b16 %v627
      %v747 = vunpack.c.l.b16 %v628
      %v748 = vunpack.c.l.b16 %v629
      %v749 = vunpack.c.l.b16 %v630
      %v750 = vunpack.c.l.b16 %v631
      %v751 = vunpack.c.l.b16 %v632
      %v752 = vunpack.c.l.b16 %v633
      %v753 = vunpack.c.l.b16 %v634
      %v754 = vunpack.c.l.b16 %v635
      %v755 = vunpack.c.l.b16 %v636
      %v756 = vunpack.c.l.b16 %v637
      %v757 = vunpack.c.l.b16 %v638
      %v758 = vunpack.c.l.b16 %v639
      %v759 = vunpack.c.l.b16 %v640
      %v760 = vunpack.c.l.b16 %v641
      %v761 = vunpack.c.l.b16 %v642
      %v762 = vunpack.c.l.b16 %v643
      %v763 = vunpack.c.l.b16 %v644
      %v764 = vunpack.c.l.b16 %v645
      %v765 = vunpack.c.l.b16 %v646
      %v766 = vunpack.c.l.b16 %v647
      %v767 = vunpack.c.l.b16 %v648
      %v768 = vunpack.c.l.b16 %v649
      %v769 = vunpack.c.l.b16 %v650
      %v770 = vunpack.c.l.b16 %v651
      %v771 = vunpack.c.l.b16 %v652
      %v772 = vunpack.c.l.b16 %v653
      %v773 = vunpack.c.l.b16 %v654
      %v774 = vunpack.c.l.b16 %v655
      %v775 = vunpack.c.l.b16 %v656
      %v776 = vunpack.c.l.b16 %v657
      %v777 = vunpack.c.l.b16 %v658
      %v778 = vunpack.c.l.b16 %v659
      %v779 = vunpack.c.l.b16 %v660
      %v780 = vunpack.c.l.b16 %v661
      %v781 = vunpack.c.l.b16 %v662
      %v782 = vunpack.c.l.b16 %v663
      %v783 = vunpack.c.l.b16 %v664
      %v784 = vunpack.c.l.b16 %v665
      %v785 = vunpack.c.l.b16 %v666
      %v786 = vunpack.c.l.b16 %v667
      %v787 = vunpack.c.l.b16 %v668
      %v788 = vunpack.c.l.b16 %v669
      %v789 = vunpack.c.l.b16 %v670
      %v790 = vunpack.c.l.b16 %v671
      %v791 = vunpack.c.l.b16 %v672
      %v792 = vunpack.c.l.b16 %v673
      %v793 = vpack.c.b16 %v746, %v745
      %v794 = vpack.c.b16 %v748, %v747
      %v795 = vpack.c.b16 %v750, %v749
      %v796 = vpack.c.b16 %v752, %v751
      %v797 = vpack.c.b16 %v754, %v753
      %v798 = vpack.c.b16 %v756, %v755
      %v799 = vpack.c.b16 %v758, %v757
      %v800 = vpack.c.b16 %v760, %v759
      %v801 = vpack.c.b16 %v762, %v761
      %v802 = vpack.c.b16 %v764, %v763
      %v803 = vpack.c.b16 %v766, %v765
      %v804 = vpack.c.b16 %v768, %v767
      %v805 = vpack.c.b16 %v770, %v769
      %v806 = vpack.c.b16 %v772, %v771
      %v807 = vpack.c.b16 %v774, %v773
      %v808 = vpack.c.b16 %v776, %v775
      %v809 = vpack.c.b16 %v778, %v777
      %v810 = vpack.c.b16 %v780, %v779
      %v811 = vpack.c.b16 %v782, %v781
      %v812 = vpack.c.b16 %v784, %v783
      %v813 = vpack.c.b16 %v786, %v785
      %v814 = vpack.c.b16 %v788, %v787
      %v815 = vpack.c.b16 %v790, %v789
      %v816 = vpack.c.b16 %v792, %v791
      %v857 = vunpack.c.l.b16 %v674
      %v858 = vunpack.c.l.b16 %v675
      %v859 = vunpack.c.l.b16 %v676
      %v860 = vunpack.c.l.b16 %v677
      %v861 = vunpack.c.l.b16 %v678
      %v862 = vunpack.c.l.b16 %v679
      %v863 = vunpack.c.l.b16 %v680
      %v864 = vunpack.c.l.b16 %v681
      %v865 = vunpack.c.l.b16 %v682
      %v866 = vunpack.c.l.b16 %v683
      %v867 = vunpack.c.l.b16 %v684
      %v868 = vunpack.c.l.b16 %v685
      %v869 = vunpack.c.l.b16 %v686
      %v870 = vunpack.c.l.b16 %v687
      %v871 = vunpack.c.l.b16 %v688
      %v872 = vunpack.c.l.b16 %v689
      %v873 = vpack.c.b16 %v858, %v857
      %v874 = vpack.c.b16 %v860, %v859
      %v875 = vpack.c.b16 %v862, %v861
      %v876 = vpack.c.b16 %v864, %v863
      %v877 = vpack.c.b16 %v866, %v865
      %v878 = vpack.c.b16 %v868, %v867
      %v879 = vpack.c.b16 %v870, %v869
      %v880 = vpack.c.b16 %v872, %v871
      %889 = vmatprep.subr.bf16.mxu0 0
      %890 = vmatpush1.bf16.msra.mxu0 %v873
      %891 = vmatprep.subr.bf16.mxu0 0
      %892 = vmatpush1.bf16.msra.mxu0 %v874
      %893 = vmatprep.subr.bf16.mxu0 0
      %894 = vmatpush1.bf16.msra.mxu0 %v875
      %895 = vmatprep.subr.bf16.mxu0 0
      %896 = vmatpush1.bf16.msra.mxu0 %v876
      %897 = vmatprep.subr.bf16.mxu0 0
      %898 = vmatpush1.bf16.msra.mxu0 %v877
      %899 = vmatprep.subr.bf16.mxu0 0
      %900 = vmatpush1.bf16.msra.mxu0 %v878
      %901 = vmatprep.subr.bf16.mxu0 0
      %902 = vmatpush1.bf16.msra.mxu0 %v879
      %903 = vmatprep.subr.bf16.mxu0 0
      %904 = vmatpush1.bf16.msra.mxu0 %v880
      %905 = vmatprep.subr.bf16.mxu0 0
      %906 = vmatpush1.bf16.msra.mxu0 0
      %907 = vmatprep.subr.bf16.mxu0 0
      %908 = vmatpush1.bf16.msra.mxu0 0
      %909 = vmatprep.subr.bf16.mxu0 0
      %910 = vmatpush1.bf16.msra.mxu0 0
      %911 = vmatprep.subr.bf16.mxu0 0
      %912 = vmatpush1.bf16.msra.mxu0 0
      %913 = vmatprep.subr.bf16.mxu0 0
      %914 = vmatpush1.bf16.msra.mxu0 0
      %915 = vmatprep.subr.bf16.mxu0 0
      %916 = vmatpush1.bf16.msra.mxu0 0
      %917 = vmatprep.subr.bf16.mxu0 0
      %918 = vmatpush1.bf16.msra.mxu0 0
      %919 = vmatprep.subr.bf16.mxu0 0
      %920 = vmatpush1.bf16.msra.mxu0 0
      %921 = vmatprep.mubr.bf16.mxu0 0
      %922 = vmatmul.mubr.bf16.gmra.mrb[0].mxu0 %v793
      %v923 = vpop.f32.mrb[0].mxu0
      %v924 = vadd.f32 %v695, %v923
      %v925 = vpop.f32.mrb[0].mxu0
      %v926 = vpop.f32.mrb[0].mxu0
      %v927 = vadd.f32 %v695, %v926
      %v928 = vpop.f32.mrb[0].mxu0
      %929 = vmatprep.mubr.bf16.mxu0 0
      %930 = vmatmul.mubr.bf16.gmra.mrb[0].mxu0 %v794
      %v931 = vpop.f32.mrb[0].mxu0
      %v932 = vadd.f32 %v695, %v931
      %v933 = vpop.f32.mrb[0].mxu0
      %v934 = vpop.f32.mrb[0].mxu0
      %v935 = vadd.f32 %v695, %v934
      %v936 = vpop.f32.mrb[0].mxu0
      %937 = vmatprep.mubr.bf16.mxu0 0
      %938 = vmatmul.mubr.bf16.gmra.mrb[0].mxu0 %v795
      %v939 = vpop.f32.mrb[0].mxu0
      %v940 = vadd.f32 %v695, %v939
      %v941 = vpop.f32.mrb[0].mxu0
      %v942 = vpop.f32.mrb[0].mxu0
      %v943 = vadd.f32 %v695, %v942
      %v944 = vpop.f32.mrb[0].mxu0
      %945 = vmatprep.mubr.bf16.mxu0 0
      %946 = vmatmul.mubr.bf16.gmra.mrb[0].mxu0 %v796
      %v947 = vpop.f32.mrb[0].mxu0
      %v948 = vadd.f32 %v695, %v947
      %v949 = vpop.f32.mrb[0].mxu0
      %v950 = vpop.f32.mrb[0].mxu0
      %v951 = vadd.f32 %v695, %v950
      %v952 = vpop.f32.mrb[0].mxu0
      %953 = vmatprep.mubr.bf16.mxu0 0
      %954 = vmatmul.mubr.bf16.gmra.mrb[0].mxu0 %v797
      %v955 = vpop.f32.mrb[0].mxu0
      %v956 = vadd.f32 %v695, %v955
      %v957 = vpop.f32.mrb[0].mxu0
      %v958 = vpop.f32.mrb[0].mxu0
      %v959 = vadd.f32 %v695, %v958
      %v960 = vpop.f32.mrb[0].mxu0
      %961 = vmatprep.mubr.bf16.mxu0 0
      %962 = vmatmul.mubr.bf16.gmra.mrb[0].mxu0 %v798
      %v963 = vpop.f32.mrb[0].mxu0
      %v964 = vadd.f32 %v695, %v963
      %v965 = vpop.f32.mrb[0].mxu0
      %v966 = vpop.f32.mrb[0].mxu0
      %v967 = vadd.f32 %v695, %v966
      %v968 = vpop.f32.mrb[0].mxu0
      %969 = vmatprep.mubr.bf16.mxu0 0
      %970 = vmatmul.mubr.bf16.gmra.mrb[0].mxu0 %v799
      %v971 = vpop.f32.mrb[0].mxu0
      %v972 = vadd.f32 %v695, %v971
      %v973 = vpop.f32.mrb[0].mxu0
      %v974 = vpop.f32.mrb[0].mxu0
      %v975 = vadd.f32 %v695, %v974
      %v976 = vpop.f32.mrb[0].mxu0
      %977 = vmatprep.mubr.bf16.mxu0 0
      %978 = vmatmul.mubr.bf16.gmra.mrb[0].mxu0 %v800
      %v979 = vpop.f32.mrb[0].mxu0
      %v980 = vadd.f32 %v695, %v979
      %v981 = vpop.f32.mrb[0].mxu0
      %v982 = vpop.f32.mrb[0].mxu0
      %v983 = vadd.f32 %v695, %v982
      %v984 = vpop.f32.mrb[0].mxu0
      %985 = vmatprep.mubr.bf16.mxu0 0
      %986 = vmatmul.mubr.bf16.gmra.mrb[0].mxu0 %v801
      %v987 = vpop.f32.mrb[0].mxu0
      %v988 = vadd.f32 %v695, %v987
      %v989 = vpop.f32.mrb[0].mxu0
      %v990 = vpop.f32.mrb[0].mxu0
      %v991 = vadd.f32 %v695, %v990
      %v992 = vpop.f32.mrb[0].mxu0
      %993 = vmatprep.mubr.bf16.mxu0 0
      %994 = vmatmul.mubr.bf16.gmra.mrb[0].mxu0 %v802
      %v995 = vpop.f32.mrb[0].mxu0
      %v996 = vadd.f32 %v695, %v995
      %v997 = vpop.f32.mrb[0].mxu0
      %v998 = vpop.f32.mrb[0].mxu0
      %v999 = vadd.f32 %v695, %v998
      %v1000 = vpop.f32.mrb[0].mxu0
      %1001 = vmatprep.mubr.bf16.mxu0 0
      %1002 = vmatmul.mubr.bf16.gmra.mrb[0].mxu0 %v803
      %v1003 = vpop.f32.mrb[0].mxu0
      %v1004 = vadd.f32 %v695, %v1003
      %v1005 = vpop.f32.mrb[0].mxu0
      %v1006 = vpop.f32.mrb[0].mxu0
      %v1007 = vadd.f32 %v695, %v1006
      %v1008 = vpop.f32.mrb[0].mxu0
      %1009 = vmatprep.mubr.bf16.mxu0 0
      %1010 = vmatmul.mubr.bf16.gmra.mrb[0].mxu0 %v804
      %v1011 = vpop.f32.mrb[0].mxu0
      %v1012 = vadd.f32 %v695, %v1011
      %v1013 = vpop.f32.mrb[0].mxu0
      %v1014 = vpop.f32.mrb[0].mxu0
      %v1015 = vadd.f32 %v695, %v1014
      %v1016 = vpop.f32.mrb[0].mxu0
      %1017 = vmatprep.mubr.bf16.mxu0 0
      %1018 = vmatmul.mubr.bf16.gmra.mrb[0].mxu0 %v805
      %v1019 = vpop.f32.mrb[0].mxu0
      %v1020 = vadd.f32 %v695, %v1019
      %v1021 = vpop.f32.mrb[0].mxu0
      %v1022 = vpop.f32.mrb[0].mxu0
      %v1023 = vadd.f32 %v695, %v1022
      %v1024 = vpop.f32.mrb[0].mxu0
      %1025 = vmatprep.mubr.bf16.mxu0 0
      %1026 = vmatmul.mubr.bf16.gmra.mrb[0].mxu0 %v806
      %v1027 = vpop.f32.mrb[0].mxu0
      %v1028 = vadd.f32 %v695, %v1027
      %v1029 = vpop.f32.mrb[0].mxu0
      %v1030 = vpop.f32.mrb[0].mxu0
      %v1031 = vadd.f32 %v695, %v1030
      %v1032 = vpop.f32.mrb[0].mxu0
      %1033 = vmatprep.mubr.bf16.mxu0 0
      %1034 = vmatmul.mubr.bf16.gmra.mrb[0].mxu0 %v807
      %v1035 = vpop.f32.mrb[0].mxu0
      %v1036 = vadd.f32 %v695, %v1035
      %v1037 = vpop.f32.mrb[0].mxu0
      %v1038 = vpop.f32.mrb[0].mxu0
      %v1039 = vadd.f32 %v695, %v1038
      %v1040 = vpop.f32.mrb[0].mxu0
      %1041 = vmatprep.mubr.bf16.mxu0 0
      %1042 = vmatmul.mubr.bf16.gmra.mrb[0].mxu0 %v808
      %v1043 = vpop.f32.mrb[0].mxu0
      %v1044 = vadd.f32 %v695, %v1043
      %v1045 = vpop.f32.mrb[0].mxu0
      %v1046 = vpop.f32.mrb[0].mxu0
      %v1047 = vadd.f32 %v695, %v1046
      %v1048 = vpop.f32.mrb[0].mxu0
      %1049 = vmatprep.mubr.bf16.mxu0 0
      %1050 = vmatmul.mubr.bf16.gmra.mrb[0].mxu0 %v809
      %v1051 = vpop.f32.mrb[0].mxu0
      %v1052 = vadd.f32 %v695, %v1051
      %v1053 = vpop.f32.mrb[0].mxu0
      %v1054 = vpop.f32.mrb[0].mxu0
      %v1055 = vadd.f32 %v695, %v1054
      %v1056 = vpop.f32.mrb[0].mxu0
      %1057 = vmatprep.mubr.bf16.mxu0 0
      %1058 = vmatmul.mubr.bf16.gmra.mrb[0].mxu0 %v810
      %v1059 = vpop.f32.mrb[0].mxu0
      %v1060 = vadd.f32 %v695, %v1059
      %v1061 = vpop.f32.mrb[0].mxu0
      %v1062 = vpop.f32.mrb[0].mxu0
      %v1063 = vadd.f32 %v695, %v1062
      %v1064 = vpop.f32.mrb[0].mxu0
      %1065 = vmatprep.mubr.bf16.mxu0 0
      %1066 = vmatmul.mubr.bf16.gmra.mrb[0].mxu0 %v811
      %v1067 = vpop.f32.mrb[0].mxu0
      %v1068 = vadd.f32 %v695, %v1067
      %v1069 = vpop.f32.mrb[0].mxu0
      %v1070 = vpop.f32.mrb[0].mxu0
      %v1071 = vadd.f32 %v695, %v1070
      %v1072 = vpop.f32.mrb[0].mxu0
      %1073 = vmatprep.mubr.bf16.mxu0 0
      %1074 = vmatmul.mubr.bf16.gmra.mrb[0].mxu0 %v812
      %v1075 = vpop.f32.mrb[0].mxu0
      %v1076 = vadd.f32 %v695, %v1075
      %v1077 = vpop.f32.mrb[0].mxu0
      %v1078 = vpop.f32.mrb[0].mxu0
      %v1079 = vadd.f32 %v695, %v1078
      %v1080 = vpop.f32.mrb[0].mxu0
      %1081 = vmatprep.mubr.bf16.mxu0 0
      %1082 = vmatmul.mubr.bf16.gmra.mrb[0].mxu0 %v813
      %v1083 = vpop.f32.mrb[0].mxu0
      %v1084 = vadd.f32 %v695, %v1083
      %v1085 = vpop.f32.mrb[0].mxu0
      %v1086 = vpop.f32.mrb[0].mxu0
      %v1087 = vadd.f32 %v695, %v1086
      %v1088 = vpop.f32.mrb[0].mxu0
      %1089 = vmatprep.mubr.bf16.mxu0 0
      %1090 = vmatmul.mubr.bf16.gmra.mrb[0].mxu0 %v814
      %v1091 = vpop.f32.mrb[0].mxu0
      %v1092 = vadd.f32 %v695, %v1091
      %v1093 = vpop.f32.mrb[0].mxu0
      %v1094 = vpop.f32.mrb[0].mxu0
      %v1095 = vadd.f32 %v695, %v1094
      %v1096 = vpop.f32.mrb[0].mxu0
      %1097 = vmatprep.mubr.bf16.mxu0 0
      %1098 = vmatmul.mubr.bf16.gmra.mrb[0].mxu0 %v815
      %v1099 = vpop.f32.mrb[0].mxu0
      %v1100 = vadd.f32 %v695, %v1099
      %v1101 = vpop.f32.mrb[0].mxu0
      %v1102 = vpop.f32.mrb[0].mxu0
      %v1103 = vadd.f32 %v695, %v1102
      %v1104 = vpop.f32.mrb[0].mxu0
      %1105 = vmatprep.mubr.bf16.mxu0 0
      %1106 = vmatmul.mubr.bf16.gmra.mrb[0].mxu0 %v816
      %v1107 = vpop.f32.mrb[0].mxu0
      %v1108 = vadd.f32 %v695, %v1107
      %v1109 = vpop.f32.mrb[0].mxu0
      %v1110 = vpop.f32.mrb[0].mxu0
      %v1111 = vadd.f32 %v695, %v1110
      %v1112 = vpop.f32.mrb[0].mxu0
      %1113 = vdwg.mxu0
      %vm1114 = vcmp.gt.f32.partialorder %v924, 0.0
      %vm1115 = vcmp.gt.f32.partialorder %v927, 0.0
      %vm1116 = vcmp.gt.f32.partialorder %v932, 0.0
      %vm1117 = vcmp.gt.f32.partialorder %v935, 0.0
      %vm1118 = vcmp.gt.f32.partialorder %v940, 0.0
      %vm1119 = vcmp.gt.f32.partialorder %v943, 0.0
      %vm1120 = vcmp.gt.f32.partialorder %v948, 0.0
      %vm1121 = vcmp.gt.f32.partialorder %v951, 0.0
      %vm1122 = vcmp.gt.f32.partialorder %v956, 0.0
      %vm1123 = vcmp.gt.f32.partialorder %v959, 0.0
      %vm1124 = vcmp.gt.f32.partialorder %v964, 0.0
      %vm1125 = vcmp.gt.f32.partialorder %v967, 0.0
      %vm1126 = vcmp.gt.f32.partialorder %v972, 0.0
      %vm1127 = vcmp.gt.f32.partialorder %v975, 0.0
      %vm1128 = vcmp.gt.f32.partialorder %v980, 0.0
      %vm1129 = vcmp.gt.f32.partialorder %v983, 0.0
      %vm1130 = vcmp.gt.f32.partialorder %v988, 0.0
      %vm1131 = vcmp.gt.f32.partialorder %v991, 0.0
      %vm1132 = vcmp.gt.f32.partialorder %v996, 0.0
      %vm1133 = vcmp.gt.f32.partialorder %v999, 0.0
      %vm1134 = vcmp.gt.f32.partialorder %v1004, 0.0
      %vm1135 = vcmp.gt.f32.partialorder %v1007, 0.0
      %vm1136 = vcmp.gt.f32.partialorder %v1012, 0.0
      %vm1137 = vcmp.gt.f32.partialorder %v1015, 0.0
      %vm1138 = vcmp.gt.f32.partialorder %v1020, 0.0
      %vm1139 = vcmp.gt.f32.partialorder %v1023, 0.0
      %vm1140 = vcmp.gt.f32.partialorder %v1028, 0.0
      %vm1141 = vcmp.gt.f32.partialorder %v1031, 0.0
      %vm1142 = vcmp.gt.f32.partialorder %v1036, 0.0
      %vm1143 = vcmp.gt.f32.partialorder %v1039, 0.0
      %vm1144 = vcmp.gt.f32.partialorder %v1044, 0.0
      %vm1145 = vcmp.gt.f32.partialorder %v1047, 0.0
      %vm1146 = vcmp.gt.f32.partialorder %v1052, 0.0
      %vm1147 = vcmp.gt.f32.partialorder %v1055, 0.0
      %vm1148 = vcmp.gt.f32.partialorder %v1060, 0.0
      %vm1149 = vcmp.gt.f32.partialorder %v1063, 0.0
      %vm1150 = vcmp.gt.f32.partialorder %v1068, 0.0
      %vm1151 = vcmp.gt.f32.partialorder %v1071, 0.0
      %vm1152 = vcmp.gt.f32.partialorder %v1076, 0.0
      %vm1153 = vcmp.gt.f32.partialorder %v1079, 0.0
      %vm1154 = vcmp.gt.f32.partialorder %v1084, 0.0
      %vm1155 = vcmp.gt.f32.partialorder %v1087, 0.0
      %vm1156 = vcmp.gt.f32.partialorder %v1092, 0.0
      %vm1157 = vcmp.gt.f32.partialorder %v1095, 0.0
      %vm1158 = vcmp.gt.f32.partialorder %v1100, 0.0
      %vm1159 = vcmp.gt.f32.partialorder %v1103, 0.0
      %vm1160 = vcmp.gt.f32.partialorder %v1108, 0.0
      %vm1161 = vcmp.gt.f32.partialorder %v1111, 0.0
      %v1162 = vmul.f32 %v924, 0.1
      %v1163 = vmul.f32 %v927, 0.1
      %v1164 = vmul.f32 %v932, 0.1
      %v1165 = vmul.f32 %v935, 0.1
      %v1166 = vmul.f32 %v940, 0.1
      %v1167 = vmul.f32 %v943, 0.1
      %v1168 = vmul.f32 %v948, 0.1
      %v1169 = vmul.f32 %v951, 0.1
      %v1170 = vmul.f32 %v956, 0.1
      %v1171 = vmul.f32 %v959, 0.1
      %v1172 = vmul.f32 %v964, 0.1
      %v1173 = vmul.f32 %v967, 0.1
      %v1174 = vmul.f32 %v972, 0.1
      %v1175 = vmul.f32 %v975, 0.1
      %v1176 = vmul.f32 %v980, 0.1
      %v1177 = vmul.f32 %v983, 0.1
      %v1178 = vmul.f32 %v988, 0.1
      %v1179 = vmul.f32 %v991, 0.1
      %v1180 = vmul.f32 %v996, 0.1
      %v1181 = vmul.f32 %v999, 0.1
      %v1182 = vmul.f32 %v1004, 0.1
      %v1183 = vmul.f32 %v1007, 0.1
      %v1184 = vmul.f32 %v1012, 0.1
      %v1185 = vmul.f32 %v1015, 0.1
      %v1186 = vmul.f32 %v1020, 0.1
      %v1187 = vmul.f32 %v1023, 0.1
      %v1188 = vmul.f32 %v1028, 0.1
      %v1189 = vmul.f32 %v1031, 0.1
      %v1190 = vmul.f32 %v1036, 0.1
      %v1191 = vmul.f32 %v1039, 0.1
      %v1192 = vmul.f32 %v1044, 0.1
      %v1193 = vmul.f32 %v1047, 0.1
      %v1194 = vmul.f32 %v1052, 0.1
      %v1195 = vmul.f32 %v1055, 0.1
      %v1196 = vmul.f32 %v1060, 0.1
      %v1197 = vmul.f32 %v1063, 0.1
      %v1198 = vmul.f32 %v1068, 0.1
      %v1199 = vmul.f32 %v1071, 0.1
      %v1200 = vmul.f32 %v1076, 0.1
      %v1201 = vmul.f32 %v1079, 0.1
      %v1202 = vmul.f32 %v1084, 0.1
      %v1203 = vmul.f32 %v1087, 0.1
      %v1204 = vmul.f32 %v1092, 0.1
      %v1205 = vmul.f32 %v1095, 0.1
      %v1206 = vmul.f32 %v1100, 0.1
      %v1207 = vmul.f32 %v1103, 0.1
      %v1208 = vmul.f32 %v1108, 0.1
      %v1209 = vmul.f32 %v1111, 0.1
      %v1210 = vsel %vm1114, %v924, %v1162
      %v1211 = vsel %vm1115, %v927, %v1163
      %v1212 = vsel %vm1116, %v932, %v1164
      %v1213 = vsel %vm1117, %v935, %v1165
      %v1214 = vsel %vm1118, %v940, %v1166
      %v1215 = vsel %vm1119, %v943, %v1167
      %v1216 = vsel %vm1120, %v948, %v1168
      %v1217 = vsel %vm1121, %v951, %v1169
      %v1218 = vsel %vm1122, %v956, %v1170
      %v1219 = vsel %vm1123, %v959, %v1171
      %v1220 = vsel %vm1124, %v964, %v1172
      %v1221 = vsel %vm1125, %v967, %v1173
      %v1222 = vsel %vm1126, %v972, %v1174
      %v1223 = vsel %vm1127, %v975, %v1175
      %v1224 = vsel %vm1128, %v980, %v1176
      %v1225 = vsel %vm1129, %v983, %v1177
      %v1226 = vsel %vm1130, %v988, %v1178
      %v1227 = vsel %vm1131, %v991, %v1179
      %v1228 = vsel %vm1132, %v996, %v1180
      %v1229 = vsel %vm1133, %v999, %v1181
      %v1230 = vsel %vm1134, %v1004, %v1182
      %v1231 = vsel %vm1135, %v1007, %v1183
      %v1232 = vsel %vm1136, %v1012, %v1184
      %v1233 = vsel %vm1137, %v1015, %v1185
      %v1234 = vsel %vm1138, %v1020, %v1186
      %v1235 = vsel %vm1139, %v1023, %v1187
      %v1236 = vsel %vm1140, %v1028, %v1188
      %v1237 = vsel %vm1141, %v1031, %v1189
      %v1238 = vsel %vm1142, %v1036, %v1190
      %v1239 = vsel %vm1143, %v1039, %v1191
      %v1240 = vsel %vm1144, %v1044, %v1192
      %v1241 = vsel %vm1145, %v1047, %v1193
      %v1242 = vsel %vm1146, %v1052, %v1194
      %v1243 = vsel %vm1147, %v1055, %v1195
      %v1244 = vsel %vm1148, %v1060, %v1196
      %v1245 = vsel %vm1149, %v1063, %v1197
      %v1246 = vsel %vm1150, %v1068, %v1198
      %v1247 = vsel %vm1151, %v1071, %v1199
      %v1248 = vsel %vm1152, %v1076, %v1200
      %v1249 = vsel %vm1153, %v1079, %v1201
      %v1250 = vsel %vm1154, %v1084, %v1202
      %v1251 = vsel %vm1155, %v1087, %v1203
      %v1252 = vsel %vm1156, %v1092, %v1204
      %v1253 = vsel %vm1157, %v1095, %v1205
      %v1254 = vsel %vm1158, %v1100, %v1206
      %v1255 = vsel %vm1159, %v1103, %v1207
      %v1256 = vsel %vm1160, %v1108, %v1208
      %v1257 = vsel %vm1161, %v1111, %v1209
      %v1258 = vstv %s461
      %v1259 = vadd.s32 %v1258, 1
      %v1260 = vadd.s32 %v1258, 2
      %v1261 = vadd.s32 %v1258, 3
      %v1262 = vadd.s32 %v1258, 4
      %v1263 = vadd.s32 %v1258, 5
      %v1264 = vadd.s32 %v1258, 6
      %v1265 = vadd.s32 %v1258, 7
      %v1266 = vadd.s32 %v1258, 8
      %v1267 = vadd.s32 %v1258, 9
      %v1268 = vadd.s32 %v1258, 10
      %v1269 = vadd.s32 %v1258, 11
      %v1270 = vadd.s32 %v1258, 12
      %v1271 = vadd.s32 %v1258, 13
      %v1272 = vadd.s32 %v1258, 14
      %v1273 = vadd.s32 %v1258, 15
      %vm1274 = vcmp.ge.s32.totalorder %v1258, 0
      %vm1275 = vcmp.ge.s32.totalorder %v1259, 0
      %vm1276 = vcmp.ge.s32.totalorder %v1260, 0
      %vm1277 = vcmp.ge.s32.totalorder %v1261, 0
      %vm1278 = vcmp.ge.s32.totalorder %v1262, 0
      %vm1279 = vcmp.ge.s32.totalorder %v1263, 0
      %vm1280 = vcmp.ge.s32.totalorder %v1264, 0
      %vm1281 = vcmp.ge.s32.totalorder %v1265, 0
      %vm1282 = vcmp.ge.s32.totalorder %v1266, 0
      %vm1283 = vcmp.ge.s32.totalorder %v1267, 0
      %vm1284 = vcmp.ge.s32.totalorder %v1268, 0
      %vm1285 = vcmp.ge.s32.totalorder %v1269, 0
      %vm1286 = vcmp.ge.s32.totalorder %v1270, 0
      %vm1287 = vcmp.ge.s32.totalorder %v1271, 0
      %vm1288 = vcmp.ge.s32.totalorder %v1272, 0
      %vm1289 = vcmp.ge.s32.totalorder %v1273, 0
      %vm1290 = vcmp.lt.s32.totalorder %v1258, 16
      %vm1291 = vcmp.lt.s32.totalorder %v1259, 16
      %vm1292 = vcmp.lt.s32.totalorder %v1260, 16
      %vm1293 = vcmp.lt.s32.totalorder %v1261, 16
      %vm1294 = vcmp.lt.s32.totalorder %v1262, 16
      %vm1295 = vcmp.lt.s32.totalorder %v1263, 16
      %vm1296 = vcmp.lt.s32.totalorder %v1264, 16
      %vm1297 = vcmp.lt.s32.totalorder %v1265, 16
      %vm1298 = vcmp.lt.s32.totalorder %v1266, 16
      %vm1299 = vcmp.lt.s32.totalorder %v1267, 16
      %vm1300 = vcmp.lt.s32.totalorder %v1268, 16
      %vm1301 = vcmp.lt.s32.totalorder %v1269, 16
      %vm1302 = vcmp.lt.s32.totalorder %v1270, 16
      %vm1303 = vcmp.lt.s32.totalorder %v1271, 16
      %vm1304 = vcmp.lt.s32.totalorder %v1272, 16
      %vm1305 = vcmp.lt.s32.totalorder %v1273, 16
      %vm1306 = vmand %vm1274, %vm1290
      %vm1307 = vmand %vm1275, %vm1291
      %vm1308 = vmand %vm1276, %vm1292
      %vm1309 = vmand %vm1277, %vm1293
      %vm1310 = vmand %vm1278, %vm1294
      %vm1311 = vmand %vm1279, %vm1295
      %vm1312 = vmand %vm1280, %vm1296
      %vm1313 = vmand %vm1281, %vm1297
      %vm1314 = vmand %vm1282, %vm1298
      %vm1315 = vmand %vm1283, %vm1299
      %vm1316 = vmand %vm1284, %vm1300
      %vm1317 = vmand %vm1285, %vm1301
      %vm1318 = vmand %vm1286, %vm1302
      %vm1319 = vmand %vm1287, %vm1303
      %vm1320 = vmand %vm1288, %vm1304
      %vm1321 = vmand %vm1289, %vm1305
      %v1322 = vsel %vm1306, 1, 0
      %v1323 = vsel %vm1307, 1, 0
      %v1324 = vsel %vm1308, 1, 0
      %v1325 = vsel %vm1309, 1, 0
      %v1326 = vsel %vm1310, 1, 0
      %v1327 = vsel %vm1311, 1, 0
      %v1328 = vsel %vm1312, 1, 0
      %v1329 = vsel %vm1313, 1, 0
      %v1330 = vsel %vm1314, 1, 0
      %v1331 = vsel %vm1315, 1, 0
      %v1332 = vsel %vm1316, 1, 0
      %v1333 = vsel %vm1317, 1, 0
      %v1334 = vsel %vm1318, 1, 0
      %v1335 = vsel %vm1319, 1, 0
      %v1336 = vsel %vm1320, 1, 0
      %v1337 = vsel %vm1321, 1, 0
      %vm1338 = vcmp.eq.s32.totalorder %v1322, 1
      %vm1339 = vcmp.eq.s32.totalorder %v1323, 1
      %vm1340 = vcmp.eq.s32.totalorder %v1324, 1
      %vm1341 = vcmp.eq.s32.totalorder %v1325, 1
      %vm1342 = vcmp.eq.s32.totalorder %v1326, 1
      %vm1343 = vcmp.eq.s32.totalorder %v1327, 1
      %vm1344 = vcmp.eq.s32.totalorder %v1328, 1
      %vm1345 = vcmp.eq.s32.totalorder %v1329, 1
      %vm1346 = vcmp.eq.s32.totalorder %v1330, 1
      %vm1347 = vcmp.eq.s32.totalorder %v1331, 1
      %vm1348 = vcmp.eq.s32.totalorder %v1332, 1
      %vm1349 = vcmp.eq.s32.totalorder %v1333, 1
      %vm1350 = vcmp.eq.s32.totalorder %v1334, 1
      %vm1351 = vcmp.eq.s32.totalorder %v1335, 1
      %vm1352 = vcmp.eq.s32.totalorder %v1336, 1
      %vm1353 = vcmp.eq.s32.totalorder %v1337, 1
      %v1354 = vsel %vm458, 1, 0
      %v1355 = vsel %vm459, 1, 0
      %v1356 = vsel %vm460, 1, 0
      %vm1357 = vcmp.eq.s32.totalorder %v1354, 1
      %vm1358 = vcmp.eq.s32.totalorder %v1355, 1
      %vm1359 = vcmp.eq.s32.totalorder %v1356, 1
      %vm1360 = vmand %vm1338, %vm1357
      %vm1361 = vmand %vm1338, %vm1358
      %vm1362 = vmand %vm1338, %vm1359
      %vm1363 = vmand %vm1339, %vm1357
      %vm1364 = vmand %vm1339, %vm1358
      %vm1365 = vmand %vm1339, %vm1359
      %vm1366 = vmand %vm1340, %vm1357
      %vm1367 = vmand %vm1340, %vm1358
      %vm1368 = vmand %vm1340, %vm1359
      %vm1369 = vmand %vm1341, %vm1357
      %vm1370 = vmand %vm1341, %vm1358
      %vm1371 = vmand %vm1341, %vm1359
      %vm1372 = vmand %vm1342, %vm1357
      %vm1373 = vmand %vm1342, %vm1358
      %vm1374 = vmand %vm1342, %vm1359
      %vm1375 = vmand %vm1343, %vm1357
      %vm1376 = vmand %vm1343, %vm1358
      %vm1377 = vmand %vm1343, %vm1359
      %vm1378 = vmand %vm1344, %vm1357
      %vm1379 = vmand %vm1344, %vm1358
      %vm1380 = vmand %vm1344, %vm1359
      %vm1381 = vmand %vm1345, %vm1357
      %vm1382 = vmand %vm1345, %vm1358
      %vm1383 = vmand %vm1345, %vm1359
      %vm1384 = vmand %vm1346, %vm1357
      %vm1385 = vmand %vm1346, %vm1358
      %vm1386 = vmand %vm1346, %vm1359
      %vm1387 = vmand %vm1347, %vm1357
      %vm1388 = vmand %vm1347, %vm1358
      %vm1389 = vmand %vm1347, %vm1359
      %vm1390 = vmand %vm1348, %vm1357
      %vm1391 = vmand %vm1348, %vm1358
      %vm1392 = vmand %vm1348, %vm1359
      %vm1393 = vmand %vm1349, %vm1357
      %vm1394 = vmand %vm1349, %vm1358
      %vm1395 = vmand %vm1349, %vm1359
      %vm1396 = vmand %vm1350, %vm1357
      %vm1397 = vmand %vm1350, %vm1358
      %vm1398 = vmand %vm1350, %vm1359
      %vm1399 = vmand %vm1351, %vm1357
      %vm1400 = vmand %vm1351, %vm1358
      %vm1401 = vmand %vm1351, %vm1359
      %vm1402 = vmand %vm1352, %vm1357
      %vm1403 = vmand %vm1352, %vm1358
      %vm1404 = vmand %vm1352, %vm1359
      %vm1405 = vmand %vm1353, %vm1357
      %vm1406 = vmand %vm1353, %vm1358
      %vm1407 = vmand %vm1353, %vm1359
      %v1408 = vsel %vm1360, 1, 0
      %v1409 = vsel %vm1361, 1, 0
      %v1410 = vsel %vm1362, 1, 0
      %v1411 = vsel %vm1363, 1, 0
      %v1412 = vsel %vm1364, 1, 0
      %v1413 = vsel %vm1365, 1, 0
      %v1414 = vsel %vm1366, 1, 0
      %v1415 = vsel %vm1367, 1, 0
      %v1416 = vsel %vm1368, 1, 0
      %v1417 = vsel %vm1369, 1, 0
      %v1418 = vsel %vm1370, 1, 0
      %v1419 = vsel %vm1371, 1, 0
      %v1420 = vsel %vm1372, 1, 0
      %v1421 = vsel %vm1373, 1, 0
      %v1422 = vsel %vm1374, 1, 0
      %v1423 = vsel %vm1375, 1, 0
      %v1424 = vsel %vm1376, 1, 0
      %v1425 = vsel %vm1377, 1, 0
      %v1426 = vsel %vm1378, 1, 0
      %v1427 = vsel %vm1379, 1, 0
      %v1428 = vsel %vm1380, 1, 0
      %v1429 = vsel %vm1381, 1, 0
      %v1430 = vsel %vm1382, 1, 0
      %v1431 = vsel %vm1383, 1, 0
      %v1432 = vsel %vm1384, 1, 0
      %v1433 = vsel %vm1385, 1, 0
      %v1434 = vsel %vm1386, 1, 0
      %v1435 = vsel %vm1387, 1, 0
      %v1436 = vsel %vm1388, 1, 0
      %v1437 = vsel %vm1389, 1, 0
      %v1438 = vsel %vm1390, 1, 0
      %v1439 = vsel %vm1391, 1, 0
      %v1440 = vsel %vm1392, 1, 0
      %v1441 = vsel %vm1393, 1, 0
      %v1442 = vsel %vm1394, 1, 0
      %v1443 = vsel %vm1395, 1, 0
      %v1444 = vsel %vm1396, 1, 0
      %v1445 = vsel %vm1397, 1, 0
      %v1446 = vsel %vm1398, 1, 0
      %v1447 = vsel %vm1399, 1, 0
      %v1448 = vsel %vm1400, 1, 0
      %v1449 = vsel %vm1401, 1, 0
      %v1450 = vsel %vm1402, 1, 0
      %v1451 = vsel %vm1403, 1, 0
      %v1452 = vsel %vm1404, 1, 0
      %v1453 = vsel %vm1405, 1, 0
      %v1454 = vsel %vm1406, 1, 0
      %v1455 = vsel %vm1407, 1, 0
      %vm1456 = vcmp.eq.s32.totalorder %v1408, 1
      %vm1457 = vcmp.eq.s32.totalorder %v1409, 1
      %vm1458 = vcmp.eq.s32.totalorder %v1410, 1
      %vm1459 = vcmp.eq.s32.totalorder %v1411, 1
      %vm1460 = vcmp.eq.s32.totalorder %v1412, 1
      %vm1461 = vcmp.eq.s32.totalorder %v1413, 1
      %vm1462 = vcmp.eq.s32.totalorder %v1414, 1
      %vm1463 = vcmp.eq.s32.totalorder %v1415, 1
      %vm1464 = vcmp.eq.s32.totalorder %v1416, 1
      %vm1465 = vcmp.eq.s32.totalorder %v1417, 1
      %vm1466 = vcmp.eq.s32.totalorder %v1418, 1
      %vm1467 = vcmp.eq.s32.totalorder %v1419, 1
      %vm1468 = vcmp.eq.s32.totalorder %v1420, 1
      %vm1469 = vcmp.eq.s32.totalorder %v1421, 1
      %vm1470 = vcmp.eq.s32.totalorder %v1422, 1
      %vm1471 = vcmp.eq.s32.totalorder %v1423, 1
      %vm1472 = vcmp.eq.s32.totalorder %v1424, 1
      %vm1473 = vcmp.eq.s32.totalorder %v1425, 1
      %vm1474 = vcmp.eq.s32.totalorder %v1426, 1
      %vm1475 = vcmp.eq.s32.totalorder %v1427, 1
      %vm1476 = vcmp.eq.s32.totalorder %v1428, 1
      %vm1477 = vcmp.eq.s32.totalorder %v1429, 1
      %vm1478 = vcmp.eq.s32.totalorder %v1430, 1
      %vm1479 = vcmp.eq.s32.totalorder %v1431, 1
      %vm1480 = vcmp.eq.s32.totalorder %v1432, 1
      %vm1481 = vcmp.eq.s32.totalorder %v1433, 1
      %vm1482 = vcmp.eq.s32.totalorder %v1434, 1
      %vm1483 = vcmp.eq.s32.totalorder %v1435, 1
      %vm1484 = vcmp.eq.s32.totalorder %v1436, 1
      %vm1485 = vcmp.eq.s32.totalorder %v1437, 1
      %vm1486 = vcmp.eq.s32.totalorder %v1438, 1
      %vm1487 = vcmp.eq.s32.totalorder %v1439, 1
      %vm1488 = vcmp.eq.s32.totalorder %v1440, 1
      %vm1489 = vcmp.eq.s32.totalorder %v1441, 1
      %vm1490 = vcmp.eq.s32.totalorder %v1442, 1
      %vm1491 = vcmp.eq.s32.totalorder %v1443, 1
      %vm1492 = vcmp.eq.s32.totalorder %v1444, 1
      %vm1493 = vcmp.eq.s32.totalorder %v1445, 1
      %vm1494 = vcmp.eq.s32.totalorder %v1446, 1
      %vm1495 = vcmp.eq.s32.totalorder %v1447, 1
      %vm1496 = vcmp.eq.s32.totalorder %v1448, 1
      %vm1497 = vcmp.eq.s32.totalorder %v1449, 1
      %vm1498 = vcmp.eq.s32.totalorder %v1450, 1
      %vm1499 = vcmp.eq.s32.totalorder %v1451, 1
      %vm1500 = vcmp.eq.s32.totalorder %v1452, 1
      %vm1501 = vcmp.eq.s32.totalorder %v1453, 1
      %vm1502 = vcmp.eq.s32.totalorder %v1454, 1
      %vm1503 = vcmp.eq.s32.totalorder %v1455, 1
      %v1504 = vsel %vm1456, %v1210, 0.0
      %v1505 = vsel %vm1457, %v1211, 0.0
      %v1506 = vsel %vm1458, %v1212, 0.0
      %v1507 = vsel %vm1459, %v1213, 0.0
      %v1508 = vsel %vm1460, %v1214, 0.0
      %v1509 = vsel %vm1461, %v1215, 0.0
      %v1510 = vsel %vm1462, %v1216, 0.0
      %v1511 = vsel %vm1463, %v1217, 0.0
      %v1512 = vsel %vm1464, %v1218, 0.0
      %v1513 = vsel %vm1465, %v1219, 0.0
      %v1514 = vsel %vm1466, %v1220, 0.0
      %v1515 = vsel %vm1467, %v1221, 0.0
      %v1516 = vsel %vm1468, %v1222, 0.0
      %v1517 = vsel %vm1469, %v1223, 0.0
      %v1518 = vsel %vm1470, %v1224, 0.0
      %v1519 = vsel %vm1471, %v1225, 0.0
      %v1520 = vsel %vm1472, %v1226, 0.0
      %v1521 = vsel %vm1473, %v1227, 0.0
      %v1522 = vsel %vm1474, %v1228, 0.0
      %v1523 = vsel %vm1475, %v1229, 0.0
      %v1524 = vsel %vm1476, %v1230, 0.0
      %v1525 = vsel %vm1477, %v1231, 0.0
      %v1526 = vsel %vm1478, %v1232, 0.0
      %v1527 = vsel %vm1479, %v1233, 0.0
      %v1528 = vsel %vm1480, %v1234, 0.0
      %v1529 = vsel %vm1481, %v1235, 0.0
      %v1530 = vsel %vm1482, %v1236, 0.0
      %v1531 = vsel %vm1483, %v1237, 0.0
      %v1532 = vsel %vm1484, %v1238, 0.0
      %v1533 = vsel %vm1485, %v1239, 0.0
      %v1534 = vsel %vm1486, %v1240, 0.0
      %v1535 = vsel %vm1487, %v1241, 0.0
      %v1536 = vsel %vm1488, %v1242, 0.0
      %v1537 = vsel %vm1489, %v1243, 0.0
      %v1538 = vsel %vm1490, %v1244, 0.0
      %v1539 = vsel %vm1491, %v1245, 0.0
      %v1540 = vsel %vm1492, %v1246, 0.0
      %v1541 = vsel %vm1493, %v1247, 0.0
      %v1542 = vsel %vm1494, %v1248, 0.0
      %v1543 = vsel %vm1495, %v1249, 0.0
      %v1544 = vsel %vm1496, %v1250, 0.0
      %v1545 = vsel %vm1497, %v1251, 0.0
      %v1546 = vsel %vm1498, %v1252, 0.0
      %v1547 = vsel %vm1499, %v1253, 0.0
      %v1548 = vsel %vm1500, %v1254, 0.0
      %v1549 = vsel %vm1501, %v1255, 0.0
      %v1550 = vsel %vm1502, %v1256, 0.0
      %v1551 = vsel %vm1503, %v1257, 0.0
      %v1552 = vpack.c.bf16 %v1505, %v1504
      %v1553 = vpack.c.bf16 %v1507, %v1506
      %v1554 = vpack.c.bf16 %v1509, %v1508
      %v1555 = vpack.c.bf16 %v1511, %v1510
      %v1556 = vpack.c.bf16 %v1513, %v1512
      %v1557 = vpack.c.bf16 %v1515, %v1514
      %v1558 = vpack.c.bf16 %v1517, %v1516
      %v1559 = vpack.c.bf16 %v1519, %v1518
      %v1560 = vpack.c.bf16 %v1521, %v1520
      %v1561 = vpack.c.bf16 %v1523, %v1522
      %v1562 = vpack.c.bf16 %v1525, %v1524
      %v1563 = vpack.c.bf16 %v1527, %v1526
      %v1564 = vpack.c.bf16 %v1529, %v1528
      %v1565 = vpack.c.bf16 %v1531, %v1530
      %v1566 = vpack.c.bf16 %v1533, %v1532
      %v1567 = vpack.c.bf16 %v1535, %v1534
      %v1568 = vpack.c.bf16 %v1537, %v1536
      %v1569 = vpack.c.bf16 %v1539, %v1538
      %v1570 = vpack.c.bf16 %v1541, %v1540
      %v1571 = vpack.c.bf16 %v1543, %v1542
      %v1572 = vpack.c.bf16 %v1545, %v1544
      %v1573 = vpack.c.bf16 %v1547, %v1546
      %v1574 = vpack.c.bf16 %v1549, %v1548
      %v1575 = vpack.c.bf16 %v1551, %v1550
      %vm1600 = vcmask 1043456
      %v1601 = vrot.slane %v1552, 4
      %v1602 = vrot.slane %v1553, 4
      %v1603 = vsel %vm1600, %v1601, %v1602
      %v1604 = vrot.slane %v1554, 4
      %v1605 = vsel %vm1600, %v1602, %v1604
      %v1606 = vrot.slane %v1555, 4
      %v1607 = vsel %vm1600, %v1604, %v1606
      %v1608 = vrot.slane %v1556, 4
      %v1609 = vsel %vm1600, %v1606, %v1608
      %v1610 = vrot.slane %v1557, 4
      %v1611 = vsel %vm1600, %v1608, %v1610
      %v1612 = vrot.slane %v1558, 4
      %v1613 = vsel %vm1600, %v1610, %v1612
      %v1614 = vrot.slane %v1559, 4
      %v1615 = vsel %vm1600, %v1612, %v1614
      %v1616 = vrot.slane %v1560, 4
      %v1617 = vsel %vm1600, %v1614, %v1616
      %v1618 = vrot.slane %v1561, 4
      %v1619 = vsel %vm1600, %v1616, %v1618
      %v1620 = vrot.slane %v1562, 4
      %v1621 = vsel %vm1600, %v1618, %v1620
      %v1622 = vrot.slane %v1563, 4
      %v1623 = vsel %vm1600, %v1620, %v1622
      %v1624 = vrot.slane %v1564, 4
      %v1625 = vsel %vm1600, %v1622, %v1624
      %v1626 = vrot.slane %v1565, 4
      %v1627 = vsel %vm1600, %v1624, %v1626
      %v1628 = vrot.slane %v1566, 4
      %v1629 = vsel %vm1600, %v1626, %v1628
      %v1630 = vrot.slane %v1567, 4
      %v1631 = vsel %vm1600, %v1628, %v1630
      %v1632 = vrot.slane %v1568, 4
      %v1633 = vsel %vm1600, %v1630, %v1632
      %v1634 = vrot.slane %v1569, 4
      %v1635 = vsel %vm1600, %v1632, %v1634
      %v1636 = vrot.slane %v1570, 4
      %v1637 = vsel %vm1600, %v1634, %v1636
      %v1638 = vrot.slane %v1571, 4
      %v1639 = vsel %vm1600, %v1636, %v1638
      %v1640 = vrot.slane %v1572, 4
      %v1641 = vsel %vm1600, %v1638, %v1640
      %v1642 = vrot.slane %v1573, 4
      %v1643 = vsel %vm1600, %v1640, %v1642
      %v1644 = vrot.slane %v1574, 4
      %v1645 = vsel %vm1600, %v1642, %v1644
      %v1646 = vrot.slane %v1575, 4
      %v1647 = vsel %vm1600, %v1644, %v1646
      %1673 = vst [vmem:[#allocation2 + $0x8] sm:$0xf0] %v1601
      %1674 = vst [vmem:[#allocation2 + $0x10] sm:$0xff] %v1603
      %1675 = vst [vmem:[#allocation2 + $0x18] sm:$0xff] %v1605
      %1676 = vst [vmem:[#allocation2 + $0x20] sm:$0xff] %v1607
      %1677 = vst [vmem:[#allocation2 + $0x28] sm:$0xff] %v1609
      %1678 = vst [vmem:[#allocation2 + $0x30] sm:$0xff] %v1611
      %1679 = vst [vmem:[#allocation2 + $0x38] sm:$0xff] %v1613
      %1680 = vst [vmem:[#allocation2 + $0x40] sm:$0xff] %v1615
      %1681 = vst [vmem:[#allocation2 + $0x48] sm:$0xff] %v1617
      %1682 = vst [vmem:[#allocation2 + $0x50] sm:$0xff] %v1619
      %1683 = vst [vmem:[#allocation2 + $0x58] sm:$0xff] %v1621
      %1684 = vst [vmem:[#allocation2 + $0x60] sm:$0xff] %v1623
      %1685 = vst [vmem:[#allocation2 + $0x68] sm:$0xff] %v1625
      %1686 = vst [vmem:[#allocation2 + $0x70] sm:$0xff] %v1627
      %1687 = vst [vmem:[#allocation2 + $0x78] sm:$0xff] %v1629
      %1688 = vst [vmem:[#allocation2 + $0x80] sm:$0xff] %v1631
      %1689 = vst [vmem:[#allocation2 + $0x88] sm:$0xff] %v1633
      %1690 = vst [vmem:[#allocation2 + $0x90] sm:$0xff] %v1635
      %1691 = vst [vmem:[#allocation2 + $0x98] sm:$0xff] %v1637
      %1692 = vst [vmem:[#allocation2 + $0xa0] sm:$0xff] %v1639
      %1693 = vst [vmem:[#allocation2 + $0xa8] sm:$0xff] %v1641
      %1694 = vst [vmem:[#allocation2 + $0xb0] sm:$0xff] %v1643
      %1695 = vst [vmem:[#allocation2 + $0xb8] sm:$0xff] %v1645
      %1696 = vst [vmem:[#allocation2 + $0xc0] sm:$0xff] %v1647
      %1697 = vst [vmem:[#allocation2 + $0xc8] sm:$0xf] %v1646
      %v1698 = vld [vmem:[%s431] sm:$0xf]
      %v1699 = vld [vmem:[%s431 + $0x4] sm:$0xf]
      %v1700 = vld [vmem:[%s431 + $0x8] sm:$0xf]
      %s1701 = sadd.s32 %s461, 16
      %v1702 = vld [vmem:[%s3] sm:$0xf]
      %v1703 = vld [vmem:[%s3 + $0x4] sm:$0xf]
      %v1704 = vld [vmem:[%s3 + $0x8] sm:$0xf]
      %v1705 = vld [vmem:[%s3 + $0xc] sm:$0xf]
      %v1706 = vld [vmem:[%s3 + $0x10] sm:$0xf]
      %v1707 = vld [vmem:[%s3 + $0x14] sm:$0xf]
      %v1708 = vld [vmem:[%s3 + $0x18] sm:$0xf]
      %v1709 = vld [vmem:[%s3 + $0x1c] sm:$0xf]
      %v1710 = vld [vmem:[%s3 + $0x20] sm:$0xf]
      %v1711 = vld [vmem:[%s3 + $0x24] sm:$0xf]
      %v1712 = vld [vmem:[%s3 + $0x28] sm:$0xf]
      %v1713 = vld [vmem:[%s3 + $0x2c] sm:$0xf]
      %v1714 = vld [vmem:[%s3 + $0x30] sm:$0xf]
      %v1715 = vld [vmem:[%s3 + $0x34] sm:$0xf]
      %v1716 = vld [vmem:[%s3 + $0x38] sm:$0xf]
      %v1717 = vld [vmem:[%s3 + $0x3c] sm:$0xf]
      %v1718 = vld [vmem:[%s4] sm:$0x1]
      %v1720 = vlaneseq
      %v1721 = vshrl.u32 %v1720, 7
      %v1722 = vsub.s32 0, %v1721
      %v1723 = vrot.slane %v1718, %v1722
      %v1728 = vunpack.c.l.b16 %v1698
      %v1729 = vunpack.c.l.b16 %v1699
      %v1730 = vunpack.c.l.b16 %v1700
      %v1731 = vpack.c.b16 %v1729, %v1728
      %v1732 = vpack.c.b16 %v1730, %v1730
      %v1751 = vunpack.c.l.b16 %v1702
      %v1752 = vunpack.c.l.b16 %v1703
      %v1753 = vunpack.c.l.b16 %v1704
      %v1754 = vunpack.c.l.b16 %v1705
      %v1755 = vunpack.c.l.b16 %v1706
      %v1756 = vunpack.c.l.b16 %v1707
      %v1757 = vunpack.c.l.b16 %v1708
      %v1758 = vunpack.c.l.b16 %v1709
      %v1759 = vunpack.c.l.b16 %v1710
      %v1760 = vunpack.c.l.b16 %v1711
      %v1761 = vunpack.c.l.b16 %v1712
      %v1762 = vunpack.c.l.b16 %v1713
      %v1763 = vunpack.c.l.b16 %v1714
      %v1764 = vunpack.c.l.b16 %v1715
      %v1765 = vunpack.c.l.b16 %v1716
      %v1766 = vunpack.c.l.b16 %v1717
      %v1767 = vpack.c.b16 %v1752, %v1751
      %v1768 = vpack.c.b16 %v1754, %v1753
      %v1769 = vpack.c.b16 %v1756, %v1755
      %v1770 = vpack.c.b16 %v1758, %v1757
      %v1771 = vpack.c.b16 %v1760, %v1759
      %v1772 = vpack.c.b16 %v1762, %v1761
      %v1773 = vpack.c.b16 %v1764, %v1763
      %v1774 = vpack.c.b16 %v1766, %v1765
      %1783 = vmatprep.subr.bf16.mxu0 0
      %1784 = vmatpush1.bf16.msra.mxu0 %v1767
      %1785 = vmatprep.subr.bf16.mxu0 0
      %1786 = vmatpush1.bf16.msra.mxu0 %v1768
      %1787 = vmatprep.subr.bf16.mxu0 0
      %1788 = vmatpush1.bf16.msra.mxu0 %v1769
      %1789 = vmatprep.subr.bf16.mxu0 0
      %1790 = vmatpush1.bf16.msra.mxu0 %v1770
      %1791 = vmatprep.subr.bf16.mxu0 0
      %1792 = vmatpush1.bf16.msra.mxu0 %v1771
      %1793 = vmatprep.subr.bf16.mxu0 0
      %1794 = vmatpush1.bf16.msra.mxu0 %v1772
      %1795 = vmatprep.subr.bf16.mxu0 0
      %1796 = vmatpush1.bf16.msra.mxu0 %v1773
      %1797 = vmatprep.subr.bf16.mxu0 0
      %1798 = vmatpush1.bf16.msra.mxu0 %v1774
      %1799 = vmatprep.subr.bf16.mxu0 0
      %1800 = vmatpush1.bf16.msra.mxu0 0
      %1801 = vmatprep.subr.bf16.mxu0 0
      %1802 = vmatpush1.bf16.msra.mxu0 0
      %1803 = vmatprep.subr.bf16.mxu0 0
      %1804 = vmatpush1.bf16.msra.mxu0 0
      %1805 = vmatprep.subr.bf16.mxu0 0
      %1806 = vmatpush1.bf16.msra.mxu0 0
      %1807 = vmatprep.subr.bf16.mxu0 0
      %1808 = vmatpush1.bf16.msra.mxu0 0
      %1809 = vmatprep.subr.bf16.mxu0 0
      %1810 = vmatpush1.bf16.msra.mxu0 0
      %1811 = vmatprep.subr.bf16.mxu0 0
      %1812 = vmatpush1.bf16.msra.mxu0 0
      %1813 = vmatprep.subr.bf16.mxu0 0
      %1814 = vmatpush1.bf16.msra.mxu0 0
      %1815 = vmatprep.mubr.bf16.mxu0 0
      %1816 = vmatmul.mubr.bf16.gmra.mrb[0].mxu0 %v1731
      %v1817 = vpop.f32.mrb[0].mxu0
      %v1818 = vadd.f32 %v1723, %v1817
      %v1819 = vpop.f32.mrb[0].mxu0
      %v1820 = vpop.f32.mrb[0].mxu0
      %v1821 = vadd.f32 %v1723, %v1820
      %v1822 = vpop.f32.mrb[0].mxu0
      %1823 = vmatprep.mubr.bf16.mxu0 0
      %1824 = vmatmul.mubr.bf16.gmra.mrb[0].mxu0 %v1732
      %v1825 = vpop.f32.mrb[0].mxu0
      %v1826 = vadd.f32 %v1723, %v1825
      %v1827 = vpop.f32.mrb[0].mxu0
      %v1828 = vpop.f32.mrb[0].mxu0
      %v1829 = vpop.f32.mrb[0].mxu0
      %1830 = vdwg.mxu0
      %vm1831 = vcmp.gt.f32.partialorder %v1818, 0.0
      %vm1832 = vcmp.gt.f32.partialorder %v1821, 0.0
      %vm1833 = vcmp.gt.f32.partialorder %v1826, 0.0
      %v1834 = vmul.f32 %v1818, 0.1
      %v1835 = vmul.f32 %v1821, 0.1
      %v1836 = vmul.f32 %v1826, 0.1
      %v1837 = vsel %vm1831, %v1818, %v1834
      %v1838 = vsel %vm1832, %v1821, %v1835
      %v1839 = vsel %vm1833, %v1826, %v1836
      %v1840 = vstv %s1701
      %vm1841 = vcmp.ge.s32.totalorder %v1840, 0
      %vm1842 = vcmp.lt.s32.totalorder %v1840, 16
      %vm1843 = vmand %vm1841, %vm1842
      %v1844 = vsel %vm1843, 1, 0
      %vm1845 = vcmp.eq.s32.totalorder %v1844, 1
      %vm1846 = vmand %vm1845, %vm458
      %vm1847 = vmand %vm1845, %vm459
      %vm1848 = vmand %vm1845, %vm460
      %v1849 = vsel %vm1846, 1, 0
      %v1850 = vsel %vm1847, 1, 0
      %v1851 = vsel %vm1848, 1, 0
      %vm1852 = vcmp.eq.s32.totalorder %v1849, 1
      %vm1853 = vcmp.eq.s32.totalorder %v1850, 1
      %vm1854 = vcmp.eq.s32.totalorder %v1851, 1
      %v1855 = vsel %vm1852, %v1837, 0.0
      %v1856 = vsel %vm1853, %v1838, 0.0
      %v1857 = vsel %vm1854, %v1839, 0.0
      %v1858 = vpack.c.bf16 %v1856, %v1855
      %v1859 = vpack.c.bf16 %v1857, %v1857
      %v1862 = vrot.slane %v1858, 4
      %v1863 = vrot.slane %v1859, 4
      %v1864 = vsel %vm1600, %v1862, %v1863
      %1867 = vst [vmem:[#allocation2 + $0xc8] sm:$0xf0] %v1862
      %1868 = vst [vmem:[#allocation2 + $0xd0] sm:$0xff] %v1864
      %v1869 = vld [vmem:[#allocation2] sm:$0xff]
      %v1870 = vld [vmem:[#allocation2 + $0x8] sm:$0xff]
      %v1871 = vld [vmem:[#allocation2 + $0x10] sm:$0xff]
      %v1872 = vld [vmem:[#allocation2 + $0x18] sm:$0xff]
      %v1873 = vld [vmem:[#allocation2 + $0x20] sm:$0xff]
      %v1874 = vld [vmem:[#allocation2 + $0x28] sm:$0xff]
      %v1875 = vld [vmem:[#allocation2 + $0x30] sm:$0xff]
      %v1876 = vld [vmem:[#allocation2 + $0x38] sm:$0xff]
      %v1877 = vld [vmem:[#allocation2 + $0x40] sm:$0xff]
      %v1878 = vld [vmem:[#allocation2 + $0x48] sm:$0xff]
      %v1879 = vld [vmem:[#allocation2 + $0x50] sm:$0xff]
      %v1880 = vld [vmem:[#allocation2 + $0x58] sm:$0xff]
      %v1881 = vld [vmem:[#allocation2 + $0x60] sm:$0xff]
      %v1882 = vld [vmem:[#allocation2 + $0x68] sm:$0xff]
      %v1883 = vld [vmem:[#allocation2 + $0x70] sm:$0xff]
      %v1884 = vld [vmem:[#allocation2 + $0x78] sm:$0xff]
      %v1885 = vld [vmem:[#allocation2 + $0x80] sm:$0xff]
      %v1886 = vld [vmem:[#allocation2 + $0x88] sm:$0xff]
      %v1887 = vld [vmem:[#allocation2 + $0x90] sm:$0xff]
      %v1888 = vld [vmem:[#allocation2 + $0x98] sm:$0xff]
      %v1889 = vld [vmem:[#allocation2 + $0xa0] sm:$0xff]
      %v1890 = vld [vmem:[#allocation2 + $0xa8] sm:$0xff]
      %v1891 = vld [vmem:[#allocation2 + $0xb0] sm:$0xff]
      %v1892 = vld [vmem:[#allocation2 + $0xb8] sm:$0xff]
      %v1893 = vld [vmem:[%s5] sm:$0xf]
      %v1894 = vld [vmem:[%s5 + $0x4] sm:$0xf]
      %v1895 = vld [vmem:[%s5 + $0x8] sm:$0xf]
      %v1896 = vld [vmem:[%s5 + $0xc] sm:$0xf]
      %v1897 = vld [vmem:[%s5 + $0x10] sm:$0xf]
      %v1898 = vld [vmem:[%s5 + $0x14] sm:$0xf]
      %v1899 = vld [vmem:[%s5 + $0x18] sm:$0xf]
      %v1900 = vld [vmem:[%s5 + $0x1c] sm:$0xf]
      %v1901 = vld [vmem:[%s5 + $0x20] sm:$0xf]
      %v1902 = vld [vmem:[%s5 + $0x24] sm:$0xf]
      %v1903 = vld [vmem:[%s5 + $0x28] sm:$0xf]
      %v1904 = vld [vmem:[%s5 + $0x2c] sm:$0xf]
      %v1905 = vld [vmem:[%s5 + $0x30] sm:$0xf]
      %v1906 = vld [vmem:[%s5 + $0x34] sm:$0xf]
      %v1907 = vld [vmem:[%s5 + $0x38] sm:$0xf]
      %v1908 = vld [vmem:[%s5 + $0x3c] sm:$0xf]
      %v1909 = vld [vmem:[#allocation2 + $0x8] sm:$0xf0]
      %v1910 = vld [vmem:[#allocation2 + $0xc0] sm:$0xff]
      %v1911 = vld [vmem:[#allocation2 + $0xc8] sm:$0xf]
      %s1912 = scalar_lea.vmem %s5, 192
      %v1913 = vld [vmem:[%s1912] sm:$0xf]
      %v1914 = vld [vmem:[%s1912 + $0x4] sm:$0xf]
      %v1915 = vld [vmem:[%s1912 + $0x8] sm:$0xf]
      %v1916 = vld [vmem:[%s1912 + $0xc] sm:$0xf]
      %v1917 = vld [vmem:[%s1912 + $0x10] sm:$0xf]
      %v1918 = vld [vmem:[%s1912 + $0x14] sm:$0xf]
      %v1919 = vld [vmem:[%s1912 + $0x18] sm:$0xf]
      %v1920 = vld [vmem:[%s1912 + $0x1c] sm:$0xf]
      %v1921 = vld [vmem:[%s1912 + $0x20] sm:$0xf]
      %v1922 = vld [vmem:[%s1912 + $0x24] sm:$0xf]
      %v1923 = vld [vmem:[%s1912 + $0x28] sm:$0xf]
      %v1924 = vld [vmem:[%s1912 + $0x2c] sm:$0xf]
      %v1925 = vld [vmem:[%s1912 + $0x30] sm:$0xf]
      %v1926 = vld [vmem:[%s1912 + $0x34] sm:$0xf]
      %v1927 = vld [vmem:[%s1912 + $0x38] sm:$0xf]
      %v1928 = vld [vmem:[%s1912 + $0x3c] sm:$0xf]
      %v1954 = vrot.slane %v1909, 4
      %v1955 = vrot.slane %v1871, 4
      %v1956 = vsel %vm1600, %v1954, %v1955
      %v1957 = vrot.slane %v1872, 4
      %v1958 = vsel %vm1600, %v1955, %v1957
      %v1959 = vrot.slane %v1873, 4
      %v1960 = vsel %vm1600, %v1957, %v1959
      %v1961 = vrot.slane %v1874, 4
      %v1962 = vsel %vm1600, %v1959, %v1961
      %v1963 = vrot.slane %v1875, 4
      %v1964 = vsel %vm1600, %v1961, %v1963
      %v1965 = vrot.slane %v1876, 4
      %v1966 = vsel %vm1600, %v1963, %v1965
      %v1967 = vrot.slane %v1877, 4
      %v1968 = vsel %vm1600, %v1965, %v1967
      %v1969 = vrot.slane %v1878, 4
      %v1970 = vsel %vm1600, %v1967, %v1969
      %v1971 = vrot.slane %v1879, 4
      %v1972 = vsel %vm1600, %v1969, %v1971
      %v1973 = vrot.slane %v1880, 4
      %v1974 = vsel %vm1600, %v1971, %v1973
      %v1975 = vrot.slane %v1881, 4
      %v1976 = vsel %vm1600, %v1973, %v1975
      %v1977 = vrot.slane %v1882, 4
      %v1978 = vsel %vm1600, %v1975, %v1977
      %v1979 = vrot.slane %v1883, 4
      %v1980 = vsel %vm1600, %v1977, %v1979
      %v1981 = vrot.slane %v1884, 4
      %v1982 = vsel %vm1600, %v1979, %v1981
      %v1983 = vrot.slane %v1885, 4
      %v1984 = vsel %vm1600, %v1981, %v1983
      %v1985 = vrot.slane %v1886, 4
      %v1986 = vsel %vm1600, %v1983, %v1985
      %v1987 = vrot.slane %v1887, 4
      %v1988 = vsel %vm1600, %v1985, %v1987
      %v1989 = vrot.slane %v1888, 4
      %v1990 = vsel %vm1600, %v1987, %v1989
      %v1991 = vrot.slane %v1889, 4
      %v1992 = vsel %vm1600, %v1989, %v1991
      %v1993 = vrot.slane %v1890, 4
      %v1994 = vsel %vm1600, %v1991, %v1993
      %v1995 = vrot.slane %v1891, 4
      %v1996 = vsel %vm1600, %v1993, %v1995
      %v1997 = vrot.slane %v1892, 4
      %v1998 = vsel %vm1600, %v1995, %v1997
      %v1999 = vrot.slane %v1910, 4
      %v2000 = vsel %vm1600, %v1997, %v1999
      %v2001 = vrot.slane %v1911, 4
      %v2002 = vsel %vm1600, %v1999, %v2001
      %v2043 = vunpack.c.l.b16 %v1913
      %v2044 = vunpack.c.l.b16 %v1914
      %v2045 = vunpack.c.l.b16 %v1915
      %v2046 = vunpack.c.l.b16 %v1916
      %v2047 = vunpack.c.l.b16 %v1917
      %v2048 = vunpack.c.l.b16 %v1918
      %v2049 = vunpack.c.l.b16 %v1919
      %v2050 = vunpack.c.l.b16 %v1920
      %v2051 = vunpack.c.l.b16 %v1921
      %v2052 = vunpack.c.l.b16 %v1922
      %v2053 = vunpack.c.l.b16 %v1923
      %v2054 = vunpack.c.l.b16 %v1924
      %v2055 = vunpack.c.l.b16 %v1925
      %v2056 = vunpack.c.l.b16 %v1926
      %v2057 = vunpack.c.l.b16 %v1927
      %v2058 = vunpack.c.l.b16 %v1928
      %v2059 = vpack.c.b16 %v2044, %v2043
      %v2060 = vpack.c.b16 %v2046, %v2045
      %v2061 = vpack.c.b16 %v2048, %v2047
      %v2062 = vpack.c.b16 %v2050, %v2049
      %v2063 = vpack.c.b16 %v2052, %v2051
      %v2064 = vpack.c.b16 %v2054, %v2053
      %v2065 = vpack.c.b16 %v2056, %v2055
      %v2066 = vpack.c.b16 %v2058, %v2057
      %2075 = vmatprep.subr.bf16.mxu0 0
      %2076 = vmatpush1.bf16.msra.mxu0 %v2059
      %2077 = vmatprep.subr.bf16.mxu0 0
      %2078 = vmatpush1.bf16.msra.mxu0 %v2060
      %2079 = vmatprep.subr.bf16.mxu0 0
      %2080 = vmatpush1.bf16.msra.mxu0 %v2061
      %2081 = vmatprep.subr.bf16.mxu0 0
      %2082 = vmatpush1.bf16.msra.mxu0 %v2062
      %2083 = vmatprep.subr.bf16.mxu0 0
      %2084 = vmatpush1.bf16.msra.mxu0 %v2063
      %2085 = vmatprep.subr.bf16.mxu0 0
      %2086 = vmatpush1.bf16.msra.mxu0 %v2064
      %2087 = vmatprep.subr.bf16.mxu0 0
      %2088 = vmatpush1.bf16.msra.mxu0 %v2065
      %2089 = vmatprep.subr.bf16.mxu0 0
      %2090 = vmatpush1.bf16.msra.mxu0 %v2066
      %2091 = vmatprep.subr.bf16.mxu0 0
      %2092 = vmatpush1.bf16.msra.mxu0 0
      %2093 = vmatprep.subr.bf16.mxu0 0
      %2094 = vmatpush1.bf16.msra.mxu0 0
      %2095 = vmatprep.subr.bf16.mxu0 0
      %2096 = vmatpush1.bf16.msra.mxu0 0
      %2097 = vmatprep.subr.bf16.mxu0 0
      %2098 = vmatpush1.bf16.msra.mxu0 0
      %2099 = vmatprep.subr.bf16.mxu0 0
      %2100 = vmatpush1.bf16.msra.mxu0 0
      %2101 = vmatprep.subr.bf16.mxu0 0
      %2102 = vmatpush1.bf16.msra.mxu0 0
      %2103 = vmatprep.subr.bf16.mxu0 0
      %2104 = vmatpush1.bf16.msra.mxu0 0
      %2105 = vmatprep.subr.bf16.mxu0 0
      %2106 = vmatpush1.bf16.msra.mxu0 0
      %2107 = vmatprep.mubr.bf16.mxu0 0
      %2108 = vmatmul.mubr.bf16.gmra.mrb[0].mxu0 %v1956
      %v2109 = vpop.f32.mrb[0].mxu0
      %v2110 = vadd.f32 0.0, %v2109
      %v2111 = vpop.f32.mrb[0].mxu0
      %v2112 = vpop.f32.mrb[0].mxu0
      %v2113 = vadd.f32 0.0, %v2112
      %v2114 = vpop.f32.mrb[0].mxu0
      %2115 = vmatprep.mubr.bf16.mxu0 0
      %2116 = vmatmul.mubr.bf16.gmra.mrb[0].mxu0 %v1958
      %v2117 = vpop.f32.mrb[0].mxu0
      %v2118 = vpop.f32.mrb[0].mxu0
      %v2119 = vpop.f32.mrb[0].mxu0
      %v2120 = vadd.f32 0.0, %v2119
      %v2121 = vpop.f32.mrb[0].mxu0
      %2122 = vmatprep.mubr.bf16.mxu0 0
      %2123 = vmatmul.mubr.bf16.gmra.mrb[0].mxu0 %v1960
      %v2124 = vpop.f32.mrb[0].mxu0
      %v2125 = vadd.f32 0.0, %v2124
      %v2126 = vpop.f32.mrb[0].mxu0
      %v2127 = vpop.f32.mrb[0].mxu0
      %v2128 = vpop.f32.mrb[0].mxu0
      %2129 = vmatprep.mubr.bf16.mxu0 0
      %2130 = vmatmul.mubr.bf16.gmra.mrb[0].mxu0 %v1962
      %v2131 = vpop.f32.mrb[0].mxu0
      %v2132 = vadd.f32 0.0, %v2131
      %v2133 = vpop.f32.mrb[0].mxu0
      %v2134 = vpop.f32.mrb[0].mxu0
      %v2135 = vadd.f32 0.0, %v2134
      %v2136 = vpop.f32.mrb[0].mxu0
      %2137 = vmatprep.mubr.bf16.mxu0 0
      %2138 = vmatmul.mubr.bf16.gmra.mrb[0].mxu0 %v1964
      %v2139 = vpop.f32.mrb[0].mxu0
      %v2140 = vpop.f32.mrb[0].mxu0
      %v2141 = vpop.f32.mrb[0].mxu0
      %v2142 = vadd.f32 0.0, %v2141
      %v2143 = vpop.f32.mrb[0].mxu0
      %2144 = vmatprep.mubr.bf16.mxu0 0
      %2145 = vmatmul.mubr.bf16.gmra.mrb[0].mxu0 %v1966
      %v2146 = vpop.f32.mrb[0].mxu0
      %v2147 = vadd.f32 0.0, %v2146
      %v2148 = vpop.f32.mrb[0].mxu0
      %v2149 = vpop.f32.mrb[0].mxu0
      %v2150 = vpop.f32.mrb[0].mxu0
      %2151 = vmatprep.mubr.bf16.mxu0 0
      %2152 = vmatmul.mubr.bf16.gmra.mrb[0].mxu0 %v1968
      %v2153 = vpop.f32.mrb[0].mxu0
      %v2154 = vadd.f32 0.0, %v2153
      %v2155 = vpop.f32.mrb[0].mxu0
      %v2156 = vpop.f32.mrb[0].mxu0
      %v2157 = vadd.f32 0.0, %v2156
      %v2158 = vpop.f32.mrb[0].mxu0
      %2159 = vmatprep.mubr.bf16.mxu0 0
      %2160 = vmatmul.mubr.bf16.gmra.mrb[0].mxu0 %v1970
      %v2161 = vpop.f32.mrb[0].mxu0
      %v2162 = vpop.f32.mrb[0].mxu0
      %v2163 = vpop.f32.mrb[0].mxu0
      %v2164 = vadd.f32 0.0, %v2163
      %v2165 = vpop.f32.mrb[0].mxu0
      %2166 = vmatprep.mubr.bf16.mxu0 0
      %2167 = vmatmul.mubr.bf16.gmra.mrb[0].mxu0 %v1972
      %v2168 = vpop.f32.mrb[0].mxu0
      %v2169 = vadd.f32 0.0, %v2168
      %v2170 = vpop.f32.mrb[0].mxu0
      %v2171 = vpop.f32.mrb[0].mxu0
      %v2172 = vpop.f32.mrb[0].mxu0
      %2173 = vmatprep.mubr.bf16.mxu0 0
      %2174 = vmatmul.mubr.bf16.gmra.mrb[0].mxu0 %v1974
      %v2175 = vpop.f32.mrb[0].mxu0
      %v2176 = vadd.f32 0.0, %v2175
      %v2177 = vpop.f32.mrb[0].mxu0
      %v2178 = vpop.f32.mrb[0].mxu0
      %v2179 = vadd.f32 0.0, %v2178
      %v2180 = vpop.f32.mrb[0].mxu0
      %2181 = vmatprep.mubr.bf16.mxu0 0
      %2182 = vmatmul.mubr.bf16.gmra.mrb[0].mxu0 %v1976
      %v2183 = vpop.f32.mrb[0].mxu0
      %v2184 = vpop.f32.mrb[0].mxu0
      %v2185 = vpop.f32.mrb[0].mxu0
      %v2186 = vadd.f32 0.0, %v2185
      %v2187 = vpop.f32.mrb[0].mxu0
      %2188 = vmatprep.mubr.bf16.mxu0 0
      %2189 = vmatmul.mubr.bf16.gmra.mrb[0].mxu0 %v1978
      %v2190 = vpop.f32.mrb[0].mxu0
      %v2191 = vadd.f32 0.0, %v2190
      %v2192 = vpop.f32.mrb[0].mxu0
      %v2193 = vpop.f32.mrb[0].mxu0
      %v2194 = vpop.f32.mrb[0].mxu0
      %2195 = vmatprep.mubr.bf16.mxu0 0
      %2196 = vmatmul.mubr.bf16.gmra.mrb[0].mxu0 %v1980
      %v2197 = vpop.f32.mrb[0].mxu0
      %v2198 = vadd.f32 0.0, %v2197
      %v2199 = vpop.f32.mrb[0].mxu0
      %v2200 = vpop.f32.mrb[0].mxu0
      %v2201 = vadd.f32 0.0, %v2200
      %v2202 = vpop.f32.mrb[0].mxu0
      %2203 = vmatprep.mubr.bf16.mxu0 0
      %2204 = vmatmul.mubr.bf16.gmra.mrb[0].mxu0 %v1982
      %v2205 = vpop.f32.mrb[0].mxu0
      %v2206 = vpop.f32.mrb[0].mxu0
      %v2207 = vpop.f32.mrb[0].mxu0
      %v2208 = vadd.f32 0.0, %v2207
      %v2209 = vpop.f32.mrb[0].mxu0
      %2210 = vmatprep.mubr.bf16.mxu0 0
      %2211 = vmatmul.mubr.bf16.gmra.mrb[0].mxu0 %v1984
      %v2212 = vpop.f32.mrb[0].mxu0
      %v2213 = vadd.f32 0.0, %v2212
      %v2214 = vpop.f32.mrb[0].mxu0
      %v2215 = vpop.f32.mrb[0].mxu0
      %v2216 = vpop.f32.mrb[0].mxu0
      %2217 = vmatprep.mubr.bf16.mxu0 0
      %2218 = vmatmul.mubr.bf16.gmra.mrb[0].mxu0 %v1986
      %v2219 = vpop.f32.mrb[0].mxu0
      %v2220 = vadd.f32 0.0, %v2219
      %v2221 = vpop.f32.mrb[0].mxu0
      %v2222 = vpop.f32.mrb[0].mxu0
      %v2223 = vadd.f32 0.0, %v2222
      %v2224 = vpop.f32.mrb[0].mxu0
      %2225 = vmatprep.mubr.bf16.mxu0 0
      %2226 = vmatmul.mubr.bf16.gmra.mrb[0].mxu0 %v1988
      %v2227 = vpop.f32.mrb[0].mxu0
      %v2228 = vpop.f32.mrb[0].mxu0
      %v2229 = vpop.f32.mrb[0].mxu0
      %v2230 = vadd.f32 0.0, %v2229
      %v2231 = vpop.f32.mrb[0].mxu0
      %2232 = vmatprep.mubr.bf16.mxu0 0
      %2233 = vmatmul.mubr.bf16.gmra.mrb[0].mxu0 %v1990
      %v2234 = vpop.f32.mrb[0].mxu0
      %v2235 = vadd.f32 0.0, %v2234
      %v2236 = vpop.f32.mrb[0].mxu0
      %v2237 = vpop.f32.mrb[0].mxu0
      %v2238 = vpop.f32.mrb[0].mxu0
      %2239 = vmatprep.mubr.bf16.mxu0 0
      %2240 = vmatmul.mubr.bf16.gmra.mrb[0].mxu0 %v1992
      %v2241 = vpop.f32.mrb[0].mxu0
      %v2242 = vadd.f32 0.0, %v2241
      %v2243 = vpop.f32.mrb[0].mxu0
      %v2244 = vpop.f32.mrb[0].mxu0
      %v2245 = vadd.f32 0.0, %v2244
      %v2246 = vpop.f32.mrb[0].mxu0
      %2247 = vmatprep.mubr.bf16.mxu0 0
      %2248 = vmatmul.mubr.bf16.gmra.mrb[0].mxu0 %v1994
      %v2249 = vpop.f32.mrb[0].mxu0
      %v2250 = vpop.f32.mrb[0].mxu0
      %v2251 = vpop.f32.mrb[0].mxu0
      %v2252 = vadd.f32 0.0, %v2251
      %v2253 = vpop.f32.mrb[0].mxu0
      %2254 = vmatprep.mubr.bf16.mxu0 0
      %2255 = vmatmul.mubr.bf16.gmra.mrb[0].mxu0 %v1996
      %v2256 = vpop.f32.mrb[0].mxu0
      %v2257 = vadd.f32 0.0, %v2256
      %v2258 = vpop.f32.mrb[0].mxu0
      %v2259 = vpop.f32.mrb[0].mxu0
      %v2260 = vpop.f32.mrb[0].mxu0
      %2261 = vmatprep.mubr.bf16.mxu0 0
      %2262 = vmatmul.mubr.bf16.gmra.mrb[0].mxu0 %v1998
      %v2263 = vpop.f32.mrb[0].mxu0
      %v2264 = vadd.f32 0.0, %v2263
      %v2265 = vpop.f32.mrb[0].mxu0
      %v2266 = vpop.f32.mrb[0].mxu0
      %v2267 = vadd.f32 0.0, %v2266
      %v2268 = vpop.f32.mrb[0].mxu0
      %2269 = vmatprep.mubr.bf16.mxu0 0
      %2270 = vmatmul.mubr.bf16.gmra.mrb[0].mxu0 %v2000
      %v2271 = vpop.f32.mrb[0].mxu0
      %v2272 = vpop.f32.mrb[0].mxu0
      %v2273 = vpop.f32.mrb[0].mxu0
      %v2274 = vadd.f32 0.0, %v2273
      %v2275 = vpop.f32.mrb[0].mxu0
      %2276 = vmatprep.mubr.bf16.mxu0 0
      %2277 = vmatmul.mubr.bf16.gmra.mrb[0].mxu0 %v2002
      %v2278 = vpop.f32.mrb[0].mxu0
      %v2279 = vadd.f32 0.0, %v2278
      %v2280 = vpop.f32.mrb[0].mxu0
      %v2281 = vpop.f32.mrb[0].mxu0
      %v2282 = vpop.f32.mrb[0].mxu0
      %2283 = vdwg.mxu0
      %v2300 = vunpack.c.l.b16 %v1893
      %v2301 = vunpack.c.l.b16 %v1894
      %v2302 = vunpack.c.l.b16 %v1895
      %v2303 = vunpack.c.l.b16 %v1896
      %v2304 = vunpack.c.l.b16 %v1897
      %v2305 = vunpack.c.l.b16 %v1898
      %v2306 = vunpack.c.l.b16 %v1899
      %v2307 = vunpack.c.l.b16 %v1900
      %v2308 = vunpack.c.l.b16 %v1901
      %v2309 = vunpack.c.l.b16 %v1902
      %v2310 = vunpack.c.l.b16 %v1903
      %v2311 = vunpack.c.l.b16 %v1904
      %v2312 = vunpack.c.l.b16 %v1905
      %v2313 = vunpack.c.l.b16 %v1906
      %v2314 = vunpack.c.l.b16 %v1907
      %v2315 = vunpack.c.l.b16 %v1908
      %v2316 = vpack.c.b16 %v2301, %v2300
      %v2317 = vpack.c.b16 %v2303, %v2302
      %v2318 = vpack.c.b16 %v2305, %v2304
      %v2319 = vpack.c.b16 %v2307, %v2306
      %v2320 = vpack.c.b16 %v2309, %v2308
      %v2321 = vpack.c.b16 %v2311, %v2310
      %v2322 = vpack.c.b16 %v2313, %v2312
      %v2323 = vpack.c.b16 %v2315, %v2314
      %2332 = vmatprep.subr.bf16.mxu0 0
      %2333 = vmatpush1.bf16.msra.mxu0 %v2316
      %2334 = vmatprep.subr.bf16.mxu0 0
      %2335 = vmatpush1.bf16.msra.mxu0 %v2317
      %2336 = vmatprep.subr.bf16.mxu0 0
      %2337 = vmatpush1.bf16.msra.mxu0 %v2318
      %2338 = vmatprep.subr.bf16.mxu0 0
      %2339 = vmatpush1.bf16.msra.mxu0 %v2319
      %2340 = vmatprep.subr.bf16.mxu0 0
      %2341 = vmatpush1.bf16.msra.mxu0 %v2320
      %2342 = vmatprep.subr.bf16.mxu0 0
      %2343 = vmatpush1.bf16.msra.mxu0 %v2321
      %2344 = vmatprep.subr.bf16.mxu0 0
      %2345 = vmatpush1.bf16.msra.mxu0 %v2322
      %2346 = vmatprep.subr.bf16.mxu0 0
      %2347 = vmatpush1.bf16.msra.mxu0 %v2323
      %2348 = vmatprep.subr.bf16.mxu0 0
      %2349 = vmatpush1.bf16.msra.mxu0 0
      %2350 = vmatprep.subr.bf16.mxu0 0
      %2351 = vmatpush1.bf16.msra.mxu0 0
      %2352 = vmatprep.subr.bf16.mxu0 0
      %2353 = vmatpush1.bf16.msra.mxu0 0
      %2354 = vmatprep.subr.bf16.mxu0 0
      %2355 = vmatpush1.bf16.msra.mxu0 0
      %2356 = vmatprep.subr.bf16.mxu0 0
      %2357 = vmatpush1.bf16.msra.mxu0 0
      %2358 = vmatprep.subr.bf16.mxu0 0
      %2359 = vmatpush1.bf16.msra.mxu0 0
      %2360 = vmatprep.subr.bf16.mxu0 0
      %2361 = vmatpush1.bf16.msra.mxu0 0
      %2362 = vmatprep.subr.bf16.mxu0 0
      %2363 = vmatpush1.bf16.msra.mxu0 0
      %2364 = vmatprep.mubr.bf16.mxu0 0
      %2365 = vmatmul.mubr.bf16.gmra.mrb[0].mxu0 %v1869
      %v2366 = vpop.f32.mrb[0].mxu0
      %v2367 = vadd.f32 %v2110, %v2366
      %v2368 = vpop.f32.mrb[0].mxu0
      %v2369 = vpop.f32.mrb[0].mxu0
      %v2370 = vadd.f32 %v2113, %v2369
      %v2371 = vpop.f32.mrb[0].mxu0
      %2372 = vmatprep.mubr.bf16.mxu0 0
      %2373 = vmatmul.mubr.bf16.gmra.mrb[0].mxu0 %v1870
      %v2374 = vpop.f32.mrb[0].mxu0
      %v2375 = vpop.f32.mrb[0].mxu0
      %v2376 = vpop.f32.mrb[0].mxu0
      %v2377 = vadd.f32 %v2120, %v2376
      %v2378 = vpop.f32.mrb[0].mxu0
      %2379 = vmatprep.mubr.bf16.mxu0 0
      %2380 = vmatmul.mubr.bf16.gmra.mrb[0].mxu0 %v1871
      %v2381 = vpop.f32.mrb[0].mxu0
      %v2382 = vadd.f32 %v2125, %v2381
      %v2383 = vpop.f32.mrb[0].mxu0
      %v2384 = vpop.f32.mrb[0].mxu0
      %v2385 = vpop.f32.mrb[0].mxu0
      %2386 = vmatprep.mubr.bf16.mxu0 0
      %2387 = vmatmul.mubr.bf16.gmra.mrb[0].mxu0 %v1872
      %v2388 = vpop.f32.mrb[0].mxu0
      %v2389 = vadd.f32 %v2132, %v2388
      %v2390 = vpop.f32.mrb[0].mxu0
      %v2391 = vpop.f32.mrb[0].mxu0
      %v2392 = vadd.f32 %v2135, %v2391
      %v2393 = vpop.f32.mrb[0].mxu0
      %2394 = vmatprep.mubr.bf16.mxu0 0
      %2395 = vmatmul.mubr.bf16.gmra.mrb[0].mxu0 %v1873
      %v2396 = vpop.f32.mrb[0].mxu0
      %v2397 = vpop.f32.mrb[0].mxu0
      %v2398 = vpop.f32.mrb[0].mxu0
      %v2399 = vadd.f32 %v2142, %v2398
      %v2400 = vpop.f32.mrb[0].mxu0
      %2401 = vmatprep.mubr.bf16.mxu0 0
      %2402 = vmatmul.mubr.bf16.gmra.mrb[0].mxu0 %v1874
      %v2403 = vpop.f32.mrb[0].mxu0
      %v2404 = vadd.f32 %v2147, %v2403
      %v2405 = vpop.f32.mrb[0].mxu0
      %v2406 = vpop.f32.mrb[0].mxu0
      %v2407 = vpop.f32.mrb[0].mxu0
      %2408 = vmatprep.mubr.bf16.mxu0 0
      %2409 = vmatmul.mubr.bf16.gmra.mrb[0].mxu0 %v1875
      %v2410 = vpop.f32.mrb[0].mxu0
      %v2411 = vadd.f32 %v2154, %v2410
      %v2412 = vpop.f32.mrb[0].mxu0
      %v2413 = vpop.f32.mrb[0].mxu0
      %v2414 = vadd.f32 %v2157, %v2413
      %v2415 = vpop.f32.mrb[0].mxu0
      %2416 = vmatprep.mubr.bf16.mxu0 0
      %2417 = vmatmul.mubr.bf16.gmra.mrb[0].mxu0 %v1876
      %v2418 = vpop.f32.mrb[0].mxu0
      %v2419 = vpop.f32.mrb[0].mxu0
      %v2420 = vpop.f32.mrb[0].mxu0
      %v2421 = vadd.f32 %v2164, %v2420
      %v2422 = vpop.f32.mrb[0].mxu0
      %2423 = vmatprep.mubr.bf16.mxu0 0
      %2424 = vmatmul.mubr.bf16.gmra.mrb[0].mxu0 %v1877
      %v2425 = vpop.f32.mrb[0].mxu0
      %v2426 = vadd.f32 %v2169, %v2425
      %v2427 = vpop.f32.mrb[0].mxu0
      %v2428 = vpop.f32.mrb[0].mxu0
      %v2429 = vpop.f32.mrb[0].mxu0
      %2430 = vmatprep.mubr.bf16.mxu0 0
      %2431 = vmatmul.mubr.bf16.gmra.mrb[0].mxu0 %v1878
      %v2432 = vpop.f32.mrb[0].mxu0
      %v2433 = vadd.f32 %v2176, %v2432
      %v2434 = vpop.f32.mrb[0].mxu0
      %v2435 = vpop.f32.mrb[0].mxu0
      %v2436 = vadd.f32 %v2179, %v2435
      %v2437 = vpop.f32.mrb[0].mxu0
      %2438 = vmatprep.mubr.bf16.mxu0 0
      %2439 = vmatmul.mubr.bf16.gmra.mrb[0].mxu0 %v1879
      %v2440 = vpop.f32.mrb[0].mxu0
      %v2441 = vpop.f32.mrb[0].mxu0
      %v2442 = vpop.f32.mrb[0].mxu0
      %v2443 = vadd.f32 %v2186, %v2442
      %v2444 = vpop.f32.mrb[0].mxu0
      %2445 = vmatprep.mubr.bf16.mxu0 0
      %2446 = vmatmul.mubr.bf16.gmra.mrb[0].mxu0 %v1880
      %v2447 = vpop.f32.mrb[0].mxu0
      %v2448 = vadd.f32 %v2191, %v2447
      %v2449 = vpop.f32.mrb[0].mxu0
      %v2450 = vpop.f32.mrb[0].mxu0
      %v2451 = vpop.f32.mrb[0].mxu0
      %2452 = vmatprep.mubr.bf16.mxu0 0
      %2453 = vmatmul.mubr.bf16.gmra.mrb[0].mxu0 %v1881
      %v2454 = vpop.f32.mrb[0].mxu0
      %v2455 = vadd.f32 %v2198, %v2454
      %v2456 = vpop.f32.mrb[0].mxu0
      %v2457 = vpop.f32.mrb[0].mxu0
      %v2458 = vadd.f32 %v2201, %v2457
      %v2459 = vpop.f32.mrb[0].mxu0
      %2460 = vmatprep.mubr.bf16.mxu0 0
      %2461 = vmatmul.mubr.bf16.gmra.mrb[0].mxu0 %v1882
      %v2462 = vpop.f32.mrb[0].mxu0
      %v2463 = vpop.f32.mrb[0].mxu0
      %v2464 = vpop.f32.mrb[0].mxu0
      %v2465 = vadd.f32 %v2208, %v2464
      %v2466 = vpop.f32.mrb[0].mxu0
      %2467 = vmatprep.mubr.bf16.mxu0 0
      %2468 = vmatmul.mubr.bf16.gmra.mrb[0].mxu0 %v1883
      %v2469 = vpop.f32.mrb[0].mxu0
      %v2470 = vadd.f32 %v2213, %v2469
      %v2471 = vpop.f32.mrb[0].mxu0
      %v2472 = vpop.f32.mrb[0].mxu0
      %v2473 = vpop.f32.mrb[0].mxu0
      %2474 = vmatprep.mubr.bf16.mxu0 0
      %2475 = vmatmul.mubr.bf16.gmra.mrb[0].mxu0 %v1884
      %v2476 = vpop.f32.mrb[0].mxu0
      %v2477 = vadd.f32 %v2220, %v2476
      %v2478 = vpop.f32.mrb[0].mxu0
      %v2479 = vpop.f32.mrb[0].mxu0
      %v2480 = vadd.f32 %v2223, %v2479
      %v2481 = vpop.f32.mrb[0].mxu0
      %2482 = vmatprep.mubr.bf16.mxu0 0
      %2483 = vmatmul.mubr.bf16.gmra.mrb[0].mxu0 %v1885
      %v2484 = vpop.f32.mrb[0].mxu0
      %v2485 = vpop.f32.mrb[0].mxu0
      %v2486 = vpop.f32.mrb[0].mxu0
      %v2487 = vadd.f32 %v2230, %v2486
      %v2488 = vpop.f32.mrb[0].mxu0
      %2489 = vmatprep.mubr.bf16.mxu0 0
      %2490 = vmatmul.mubr.bf16.gmra.mrb[0].mxu0 %v1886
      %v2491 = vpop.f32.mrb[0].mxu0
      %v2492 = vadd.f32 %v2235, %v2491
      %v2493 = vpop.f32.mrb[0].mxu0
      %v2494 = vpop.f32.mrb[0].mxu0
      %v2495 = vpop.f32.mrb[0].mxu0
      %2496 = vmatprep.mubr.bf16.mxu0 0
      %2497 = vmatmul.mubr.bf16.gmra.mrb[0].mxu0 %v1887
      %v2498 = vpop.f32.mrb[0].mxu0
      %v2499 = vadd.f32 %v2242, %v2498
      %v2500 = vpop.f32.mrb[0].mxu0
      %v2501 = vpop.f32.mrb[0].mxu0
      %v2502 = vadd.f32 %v2245, %v2501
      %v2503 = vpop.f32.mrb[0].mxu0
      %2504 = vmatprep.mubr.bf16.mxu0 0
      %2505 = vmatmul.mubr.bf16.gmra.mrb[0].mxu0 %v1888
      %v2506 = vpop.f32.mrb[0].mxu0
      %v2507 = vpop.f32.mrb[0].mxu0
      %v2508 = vpop.f32.mrb[0].mxu0
      %v2509 = vadd.f32 %v2252, %v2508
      %v2510 = vpop.f32.mrb[0].mxu0
      %2511 = vmatprep.mubr.bf16.mxu0 0
      %2512 = vmatmul.mubr.bf16.gmra.mrb[0].mxu0 %v1889
      %v2513 = vpop.f32.mrb[0].mxu0
      %v2514 = vadd.f32 %v2257, %v2513
      %v2515 = vpop.f32.mrb[0].mxu0
      %v2516 = vpop.f32.mrb[0].mxu0
      %v2517 = vpop.f32.mrb[0].mxu0
      %2518 = vmatprep.mubr.bf16.mxu0 0
      %2519 = vmatmul.mubr.bf16.gmra.mrb[0].mxu0 %v1890
      %v2520 = vpop.f32.mrb[0].mxu0
      %v2521 = vadd.f32 %v2264, %v2520
      %v2522 = vpop.f32.mrb[0].mxu0
      %v2523 = vpop.f32.mrb[0].mxu0
      %v2524 = vadd.f32 %v2267, %v2523
      %v2525 = vpop.f32.mrb[0].mxu0
      %2526 = vmatprep.mubr.bf16.mxu0 0
      %2527 = vmatmul.mubr.bf16.gmra.mrb[0].mxu0 %v1891
      %v2528 = vpop.f32.mrb[0].mxu0
      %v2529 = vpop.f32.mrb[0].mxu0
      %v2530 = vpop.f32.mrb[0].mxu0
      %v2531 = vadd.f32 %v2274, %v2530
      %v2532 = vpop.f32.mrb[0].mxu0
      %2533 = vmatprep.mubr.bf16.mxu0 0
      %2534 = vmatmul.mubr.bf16.gmra.mrb[0].mxu0 %v1892
      %v2535 = vpop.f32.mrb[0].mxu0
      %v2536 = vadd.f32 %v2279, %v2535
      %v2537 = vpop.f32.mrb[0].mxu0
      %v2538 = vpop.f32.mrb[0].mxu0
      %v2539 = vpop.f32.mrb[0].mxu0
      %2540 = vdwg.mxu0
      %v2541 = vld [vmem:[#allocation2 + $0x18] sm:$0xff]
      %v2542 = vld [vmem:[#allocation2 + $0x20] sm:$0xff]
      %v2543 = vld [vmem:[#allocation2 + $0x28] sm:$0xff]
      %v2544 = vld [vmem:[#allocation2 + $0x30] sm:$0xff]
      %v2545 = vld [vmem:[#allocation2 + $0x38] sm:$0xff]
      %v2546 = vld [vmem:[#allocation2 + $0x40] sm:$0xff]
      %v2547 = vld [vmem:[#allocation2 + $0x48] sm:$0xff]
      %v2548 = vld [vmem:[#allocation2 + $0x50] sm:$0xff]
      %v2549 = vld [vmem:[#allocation2 + $0x58] sm:$0xff]
      %v2550 = vld [vmem:[#allocation2 + $0x60] sm:$0xff]
      %v2551 = vld [vmem:[#allocation2 + $0x68] sm:$0xff]
      %v2552 = vld [vmem:[#allocation2 + $0x70] sm:$0xff]
      %v2553 = vld [vmem:[#allocation2 + $0x78] sm:$0xff]
      %v2554 = vld [vmem:[#allocation2 + $0x80] sm:$0xff]
      %v2555 = vld [vmem:[#allocation2 + $0x88] sm:$0xff]
      %v2556 = vld [vmem:[#allocation2 + $0x90] sm:$0xff]
      %v2557 = vld [vmem:[#allocation2 + $0x98] sm:$0xff]
      %v2558 = vld [vmem:[#allocation2 + $0xa0] sm:$0xff]
      %v2559 = vld [vmem:[#allocation2 + $0xa8] sm:$0xff]
      %v2560 = vld [vmem:[#allocation2 + $0xb0] sm:$0xff]
      %v2561 = vld [vmem:[#allocation2 + $0xb8] sm:$0xff]
      %v2562 = vld [vmem:[#allocation2 + $0xc0] sm:$0xff]
      %v2563 = vld [vmem:[#allocation2 + $0xc8] sm:$0xff]
      %v2564 = vld [vmem:[#allocation2 + $0xd0] sm:$0xff]
      %s2565 = scalar_lea.vmem %s5, 384
      %v2566 = vld [vmem:[%s2565] sm:$0xf]
      %v2567 = vld [vmem:[%s2565 + $0x4] sm:$0xf]
      %v2568 = vld [vmem:[%s2565 + $0x8] sm:$0xf]
      %v2569 = vld [vmem:[%s2565 + $0xc] sm:$0xf]
      %v2570 = vld [vmem:[%s2565 + $0x10] sm:$0xf]
      %v2571 = vld [vmem:[%s2565 + $0x14] sm:$0xf]
      %v2572 = vld [vmem:[%s2565 + $0x18] sm:$0xf]
      %v2573 = vld [vmem:[%s2565 + $0x1c] sm:$0xf]
      %v2574 = vld [vmem:[%s2565 + $0x20] sm:$0xf]
      %v2575 = vld [vmem:[%s2565 + $0x24] sm:$0xf]
      %v2576 = vld [vmem:[%s2565 + $0x28] sm:$0xf]
      %v2577 = vld [vmem:[%s2565 + $0x2c] sm:$0xf]
      %v2578 = vld [vmem:[%s2565 + $0x30] sm:$0xf]
      %v2579 = vld [vmem:[%s2565 + $0x34] sm:$0xf]
      %v2580 = vld [vmem:[%s2565 + $0x38] sm:$0xf]
      %v2581 = vld [vmem:[%s2565 + $0x3c] sm:$0xf]
      %v2598 = vunpack.c.l.b16 %v2566
      %v2599 = vunpack.c.l.b16 %v2567
      %v2600 = vunpack.c.l.b16 %v2568
      %v2601 = vunpack.c.l.b16 %v2569
      %v2602 = vunpack.c.l.b16 %v2570
      %v2603 = vunpack.c.l.b16 %v2571
      %v2604 = vunpack.c.l.b16 %v2572
      %v2605 = vunpack.c.l.b16 %v2573
      %v2606 = vunpack.c.l.b16 %v2574
      %v2607 = vunpack.c.l.b16 %v2575
      %v2608 = vunpack.c.l.b16 %v2576
      %v2609 = vunpack.c.l.b16 %v2577
      %v2610 = vunpack.c.l.b16 %v2578
      %v2611 = vunpack.c.l.b16 %v2579
      %v2612 = vunpack.c.l.b16 %v2580
      %v2613 = vunpack.c.l.b16 %v2581
      %v2614 = vpack.c.b16 %v2599, %v2598
      %v2615 = vpack.c.b16 %v2601, %v2600
      %v2616 = vpack.c.b16 %v2603, %v2602
      %v2617 = vpack.c.b16 %v2605, %v2604
      %v2618 = vpack.c.b16 %v2607, %v2606
      %v2619 = vpack.c.b16 %v2609, %v2608
      %v2620 = vpack.c.b16 %v2611, %v2610
      %v2621 = vpack.c.b16 %v2613, %v2612
      %2630 = vmatprep.subr.bf16.mxu0 0
      %2631 = vmatpush1.bf16.msra.mxu0 %v2614
      %2632 = vmatprep.subr.bf16.mxu0 0
      %2633 = vmatpush1.bf16.msra.mxu0 %v2615
      %2634 = vmatprep.subr.bf16.mxu0 0
      %2635 = vmatpush1.bf16.msra.mxu0 %v2616
      %2636 = vmatprep.subr.bf16.mxu0 0
      %2637 = vmatpush1.bf16.msra.mxu0 %v2617
      %2638 = vmatprep.subr.bf16.mxu0 0
      %2639 = vmatpush1.bf16.msra.mxu0 %v2618
      %2640 = vmatprep.subr.bf16.mxu0 0
      %2641 = vmatpush1.bf16.msra.mxu0 %v2619
      %2642 = vmatprep.subr.bf16.mxu0 0
      %2643 = vmatpush1.bf16.msra.mxu0 %v2620
      %2644 = vmatprep.subr.bf16.mxu0 0
      %2645 = vmatpush1.bf16.msra.mxu0 %v2621
      %2646 = vmatprep.subr.bf16.mxu0 0
      %2647 = vmatpush1.bf16.msra.mxu0 0
      %2648 = vmatprep.subr.bf16.mxu0 0
      %2649 = vmatpush1.bf16.msra.mxu0 0
      %2650 = vmatprep.subr.bf16.mxu0 0
      %2651 = vmatpush1.bf16.msra.mxu0 0
      %2652 = vmatprep.subr.bf16.mxu0 0
      %2653 = vmatpush1.bf16.msra.mxu0 0
      %2654 = vmatprep.subr.bf16.mxu0 0
      %2655 = vmatpush1.bf16.msra.mxu0 0
      %2656 = vmatprep.subr.bf16.mxu0 0
      %2657 = vmatpush1.bf16.msra.mxu0 0
      %2658 = vmatprep.subr.bf16.mxu0 0
      %2659 = vmatpush1.bf16.msra.mxu0 0
      %2660 = vmatprep.subr.bf16.mxu0 0
      %2661 = vmatpush1.bf16.msra.mxu0 0
      %2662 = vmatprep.mubr.bf16.mxu0 0
      %2663 = vmatmul.mubr.bf16.gmra.mrb[0].mxu0 %v2541
      %v2664 = vpop.f32.mrb[0].mxu0
      %v2665 = vadd.f32 0.0, %v2664
      %v2666 = vpop.f32.mrb[0].mxu0
      %v2667 = vpop.f32.mrb[0].mxu0
      %v2668 = vadd.f32 0.0, %v2667
      %v2669 = vpop.f32.mrb[0].mxu0
      %2670 = vmatprep.mubr.bf16.mxu0 0
      %2671 = vmatmul.mubr.bf16.gmra.mrb[0].mxu0 %v2542
      %v2672 = vpop.f32.mrb[0].mxu0
      %v2673 = vpop.f32.mrb[0].mxu0
      %v2674 = vpop.f32.mrb[0].mxu0
      %v2675 = vadd.f32 0.0, %v2674
      %v2676 = vpop.f32.mrb[0].mxu0
      %2677 = vmatprep.mubr.bf16.mxu0 0
      %2678 = vmatmul.mubr.bf16.gmra.mrb[0].mxu0 %v2543
      %v2679 = vpop.f32.mrb[0].mxu0
      %v2680 = vadd.f32 0.0, %v2679
      %v2681 = vpop.f32.mrb[0].mxu0
      %v2682 = vpop.f32.mrb[0].mxu0
      %v2683 = vpop.f32.mrb[0].mxu0
      %2684 = vmatprep.mubr.bf16.mxu0 0
      %2685 = vmatmul.mubr.bf16.gmra.mrb[0].mxu0 %v2544
      %v2686 = vpop.f32.mrb[0].mxu0
      %v2687 = vadd.f32 0.0, %v2686
      %v2688 = vpop.f32.mrb[0].mxu0
      %v2689 = vpop.f32.mrb[0].mxu0
      %v2690 = vadd.f32 0.0, %v2689
      %v2691 = vpop.f32.mrb[0].mxu0
      %2692 = vmatprep.mubr.bf16.mxu0 0
      %2693 = vmatmul.mubr.bf16.gmra.mrb[0].mxu0 %v2545
      %v2694 = vpop.f32.mrb[0].mxu0
      %v2695 = vpop.f32.mrb[0].mxu0
      %v2696 = vpop.f32.mrb[0].mxu0
      %v2697 = vadd.f32 0.0, %v2696
      %v2698 = vpop.f32.mrb[0].mxu0
      %2699 = vmatprep.mubr.bf16.mxu0 0
      %2700 = vmatmul.mubr.bf16.gmra.mrb[0].mxu0 %v2546
      %v2701 = vpop.f32.mrb[0].mxu0
      %v2702 = vadd.f32 0.0, %v2701
      %v2703 = vpop.f32.mrb[0].mxu0
      %v2704 = vpop.f32.mrb[0].mxu0
      %v2705 = vpop.f32.mrb[0].mxu0
      %2706 = vmatprep.mubr.bf16.mxu0 0
      %2707 = vmatmul.mubr.bf16.gmra.mrb[0].mxu0 %v2547
      %v2708 = vpop.f32.mrb[0].mxu0
      %v2709 = vadd.f32 0.0, %v2708
      %v2710 = vpop.f32.mrb[0].mxu0
      %v2711 = vpop.f32.mrb[0].mxu0
      %v2712 = vadd.f32 0.0, %v2711
      %v2713 = vpop.f32.mrb[0].mxu0
      %2714 = vmatprep.mubr.bf16.mxu0 0
      %2715 = vmatmul.mubr.bf16.gmra.mrb[0].mxu0 %v2548
      %v2716 = vpop.f32.mrb[0].mxu0
      %v2717 = vpop.f32.mrb[0].mxu0
      %v2718 = vpop.f32.mrb[0].mxu0
      %v2719 = vadd.f32 0.0, %v2718
      %v2720 = vpop.f32.mrb[0].mxu0
      %2721 = vmatprep.mubr.bf16.mxu0 0
      %2722 = vmatmul.mubr.bf16.gmra.mrb[0].mxu0 %v2549
      %v2723 = vpop.f32.mrb[0].mxu0
      %v2724 = vadd.f32 0.0, %v2723
      %v2725 = vpop.f32.mrb[0].mxu0
      %v2726 = vpop.f32.mrb[0].mxu0
      %v2727 = vpop.f32.mrb[0].mxu0
      %2728 = vmatprep.mubr.bf16.mxu0 0
      %2729 = vmatmul.mubr.bf16.gmra.mrb[0].mxu0 %v2550
      %v2730 = vpop.f32.mrb[0].mxu0
      %v2731 = vadd.f32 0.0, %v2730
      %v2732 = vpop.f32.mrb[0].mxu0
      %v2733 = vpop.f32.mrb[0].mxu0
      %v2734 = vadd.f32 0.0, %v2733
      %v2735 = vpop.f32.mrb[0].mxu0
      %2736 = vmatprep.mubr.bf16.mxu0 0
      %2737 = vmatmul.mubr.bf16.gmra.mrb[0].mxu0 %v2551
      %v2738 = vpop.f32.mrb[0].mxu0
      %v2739 = vpop.f32.mrb[0].mxu0
      %v2740 = vpop.f32.mrb[0].mxu0
      %v2741 = vadd.f32 0.0, %v2740
      %v2742 = vpop.f32.mrb[0].mxu0
      %2743 = vmatprep.mubr.bf16.mxu0 0
      %2744 = vmatmul.mubr.bf16.gmra.mrb[0].mxu0 %v2552
      %v2745 = vpop.f32.mrb[0].mxu0
      %v2746 = vadd.f32 0.0, %v2745
      %v2747 = vpop.f32.mrb[0].mxu0
      %v2748 = vpop.f32.mrb[0].mxu0
      %v2749 = vpop.f32.mrb[0].mxu0
      %2750 = vmatprep.mubr.bf16.mxu0 0
      %2751 = vmatmul.mubr.bf16.gmra.mrb[0].mxu0 %v2553
      %v2752 = vpop.f32.mrb[0].mxu0
      %v2753 = vadd.f32 0.0, %v2752
      %v2754 = vpop.f32.mrb[0].mxu0
      %v2755 = vpop.f32.mrb[0].mxu0
      %v2756 = vadd.f32 0.0, %v2755
      %v2757 = vpop.f32.mrb[0].mxu0
      %2758 = vmatprep.mubr.bf16.mxu0 0
      %2759 = vmatmul.mubr.bf16.gmra.mrb[0].mxu0 %v2554
      %v2760 = vpop.f32.mrb[0].mxu0
      %v2761 = vpop.f32.mrb[0].mxu0
      %v2762 = vpop.f32.mrb[0].mxu0
      %v2763 = vadd.f32 0.0, %v2762
      %v2764 = vpop.f32.mrb[0].mxu0
      %2765 = vmatprep.mubr.bf16.mxu0 0
      %2766 = vmatmul.mubr.bf16.gmra.mrb[0].mxu0 %v2555
      %v2767 = vpop.f32.mrb[0].mxu0
      %v2768 = vadd.f32 0.0, %v2767
      %v2769 = vpop.f32.mrb[0].mxu0
      %v2770 = vpop.f32.mrb[0].mxu0
      %v2771 = vpop.f32.mrb[0].mxu0
      %2772 = vmatprep.mubr.bf16.mxu0 0
      %2773 = vmatmul.mubr.bf16.gmra.mrb[0].mxu0 %v2556
      %v2774 = vpop.f32.mrb[0].mxu0
      %v2775 = vadd.f32 0.0, %v2774
      %v2776 = vpop.f32.mrb[0].mxu0
      %v2777 = vpop.f32.mrb[0].mxu0
      %v2778 = vadd.f32 0.0, %v2777
      %v2779 = vpop.f32.mrb[0].mxu0
      %2780 = vmatprep.mubr.bf16.mxu0 0
      %2781 = vmatmul.mubr.bf16.gmra.mrb[0].mxu0 %v2557
      %v2782 = vpop.f32.mrb[0].mxu0
      %v2783 = vpop.f32.mrb[0].mxu0
      %v2784 = vpop.f32.mrb[0].mxu0
      %v2785 = vadd.f32 0.0, %v2784
      %v2786 = vpop.f32.mrb[0].mxu0
      %2787 = vmatprep.mubr.bf16.mxu0 0
      %2788 = vmatmul.mubr.bf16.gmra.mrb[0].mxu0 %v2558
      %v2789 = vpop.f32.mrb[0].mxu0
      %v2790 = vadd.f32 0.0, %v2789
      %v2791 = vpop.f32.mrb[0].mxu0
      %v2792 = vpop.f32.mrb[0].mxu0
      %v2793 = vpop.f32.mrb[0].mxu0
      %2794 = vmatprep.mubr.bf16.mxu0 0
      %2795 = vmatmul.mubr.bf16.gmra.mrb[0].mxu0 %v2559
      %v2796 = vpop.f32.mrb[0].mxu0
      %v2797 = vadd.f32 0.0, %v2796
      %v2798 = vpop.f32.mrb[0].mxu0
      %v2799 = vpop.f32.mrb[0].mxu0
      %v2800 = vadd.f32 0.0, %v2799
      %v2801 = vpop.f32.mrb[0].mxu0
      %2802 = vmatprep.mubr.bf16.mxu0 0
      %2803 = vmatmul.mubr.bf16.gmra.mrb[0].mxu0 %v2560
      %v2804 = vpop.f32.mrb[0].mxu0
      %v2805 = vpop.f32.mrb[0].mxu0
      %v2806 = vpop.f32.mrb[0].mxu0
      %v2807 = vadd.f32 0.0, %v2806
      %v2808 = vpop.f32.mrb[0].mxu0
      %2809 = vmatprep.mubr.bf16.mxu0 0
      %2810 = vmatmul.mubr.bf16.gmra.mrb[0].mxu0 %v2561
      %v2811 = vpop.f32.mrb[0].mxu0
      %v2812 = vadd.f32 0.0, %v2811
      %v2813 = vpop.f32.mrb[0].mxu0
      %v2814 = vpop.f32.mrb[0].mxu0
      %v2815 = vpop.f32.mrb[0].mxu0
      %2816 = vmatprep.mubr.bf16.mxu0 0
      %2817 = vmatmul.mubr.bf16.gmra.mrb[0].mxu0 %v2562
      %v2818 = vpop.f32.mrb[0].mxu0
      %v2819 = vadd.f32 0.0, %v2818
      %v2820 = vpop.f32.mrb[0].mxu0
      %v2821 = vpop.f32.mrb[0].mxu0
      %v2822 = vadd.f32 0.0, %v2821
      %v2823 = vpop.f32.mrb[0].mxu0
      %2824 = vmatprep.mubr.bf16.mxu0 0
      %2825 = vmatmul.mubr.bf16.gmra.mrb[0].mxu0 %v2563
      %v2826 = vpop.f32.mrb[0].mxu0
      %v2827 = vpop.f32.mrb[0].mxu0
      %v2828 = vpop.f32.mrb[0].mxu0
      %v2829 = vadd.f32 0.0, %v2828
      %v2830 = vpop.f32.mrb[0].mxu0
      %2831 = vmatprep.mubr.bf16.mxu0 0
      %2832 = vmatmul.mubr.bf16.gmra.mrb[0].mxu0 %v2564
      %v2833 = vpop.f32.mrb[0].mxu0
      %v2834 = vadd.f32 0.0, %v2833
      %v2835 = vpop.f32.mrb[0].mxu0
      %v2836 = vpop.f32.mrb[0].mxu0
      %v2837 = vpop.f32.mrb[0].mxu0
      %2838 = vdwg.mxu0
      %v2839 = vadd.f32 %v2367, %v2665
      %v2840 = vadd.f32 %v2370, %v2668
      %v2841 = vadd.f32 %v2377, %v2675
      %v2842 = vadd.f32 %v2382, %v2680
      %v2843 = vadd.f32 %v2389, %v2687
      %v2844 = vadd.f32 %v2392, %v2690
      %v2845 = vadd.f32 %v2399, %v2697
      %v2846 = vadd.f32 %v2404, %v2702
      %v2847 = vadd.f32 %v2411, %v2709
      %v2848 = vadd.f32 %v2414, %v2712
      %v2849 = vadd.f32 %v2421, %v2719
      %v2850 = vadd.f32 %v2426, %v2724
      %v2851 = vadd.f32 %v2433, %v2731
      %v2852 = vadd.f32 %v2436, %v2734
      %v2853 = vadd.f32 %v2443, %v2741
      %v2854 = vadd.f32 %v2448, %v2746
      %v2855 = vadd.f32 %v2455, %v2753
      %v2856 = vadd.f32 %v2458, %v2756
      %v2857 = vadd.f32 %v2465, %v2763
      %v2858 = vadd.f32 %v2470, %v2768
      %v2859 = vadd.f32 %v2477, %v2775
      %v2860 = vadd.f32 %v2480, %v2778
      %v2861 = vadd.f32 %v2487, %v2785
      %v2862 = vadd.f32 %v2492, %v2790
      %v2863 = vadd.f32 %v2499, %v2797
      %v2864 = vadd.f32 %v2502, %v2800
      %v2865 = vadd.f32 %v2509, %v2807
      %v2866 = vadd.f32 %v2514, %v2812
      %v2867 = vadd.f32 %v2521, %v2819
      %v2868 = vadd.f32 %v2524, %v2822
      %v2869 = vadd.f32 %v2531, %v2829
      %v2870 = vadd.f32 %v2536, %v2834
      %s2871 = scalar_lea.vmem %s5, 64
      %v2872 = vld [vmem:[%s2871] sm:$0xf]
      %v2873 = vld [vmem:[%s2871 + $0x4] sm:$0xf]
      %v2874 = vld [vmem:[%s2871 + $0x8] sm:$0xf]
      %v2875 = vld [vmem:[%s2871 + $0xc] sm:$0xf]
      %v2876 = vld [vmem:[%s2871 + $0x10] sm:$0xf]
      %v2877 = vld [vmem:[%s2871 + $0x14] sm:$0xf]
      %v2878 = vld [vmem:[%s2871 + $0x18] sm:$0xf]
      %v2879 = vld [vmem:[%s2871 + $0x1c] sm:$0xf]
      %v2880 = vld [vmem:[%s2871 + $0x20] sm:$0xf]
      %v2881 = vld [vmem:[%s2871 + $0x24] sm:$0xf]
      %v2882 = vld [vmem:[%s2871 + $0x28] sm:$0xf]
      %v2883 = vld [vmem:[%s2871 + $0x2c] sm:$0xf]
      %v2884 = vld [vmem:[%s2871 + $0x30] sm:$0xf]
      %v2885 = vld [vmem:[%s2871 + $0x34] sm:$0xf]
      %v2886 = vld [vmem:[%s2871 + $0x38] sm:$0xf]
      %v2887 = vld [vmem:[%s2871 + $0x3c] sm:$0xf]
      %s2888 = scalar_lea.vmem %s5, 256
      %v2889 = vld [vmem:[%s2888] sm:$0xf]
      %v2890 = vld [vmem:[%s2888 + $0x4] sm:$0xf]
      %v2891 = vld [vmem:[%s2888 + $0x8] sm:$0xf]
      %v2892 = vld [vmem:[%s2888 + $0xc] sm:$0xf]
      %v2893 = vld [vmem:[%s2888 + $0x10] sm:$0xf]
      %v2894 = vld [vmem:[%s2888 + $0x14] sm:$0xf]
      %v2895 = vld [vmem:[%s2888 + $0x18] sm:$0xf]
      %v2896 = vld [vmem:[%s2888 + $0x1c] sm:$0xf]
      %v2897 = vld [vmem:[%s2888 + $0x20] sm:$0xf]
      %v2898 = vld [vmem:[%s2888 + $0x24] sm:$0xf]
      %v2899 = vld [vmem:[%s2888 + $0x28] sm:$0xf]
      %v2900 = vld [vmem:[%s2888 + $0x2c] sm:$0xf]
      %v2901 = vld [vmem:[%s2888 + $0x30] sm:$0xf]
      %v2902 = vld [vmem:[%s2888 + $0x34] sm:$0xf]
      %v2903 = vld [vmem:[%s2888 + $0x38] sm:$0xf]
      %v2904 = vld [vmem:[%s2888 + $0x3c] sm:$0xf]
      %v2921 = vunpack.c.l.b16 %v2889
      %v2922 = vunpack.c.l.b16 %v2890
      %v2923 = vunpack.c.l.b16 %v2891
      %v2924 = vunpack.c.l.b16 %v2892
      %v2925 = vunpack.c.l.b16 %v2893
      %v2926 = vunpack.c.l.b16 %v2894
      %v2927 = vunpack.c.l.b16 %v2895
      %v2928 = vunpack.c.l.b16 %v2896
      %v2929 = vunpack.c.l.b16 %v2897
      %v2930 = vunpack.c.l.b16 %v2898
      %v2931 = vunpack.c.l.b16 %v2899
      %v2932 = vunpack.c.l.b16 %v2900
      %v2933 = vunpack.c.l.b16 %v2901
      %v2934 = vunpack.c.l.b16 %v2902
      %v2935 = vunpack.c.l.b16 %v2903
      %v2936 = vunpack.c.l.b16 %v2904
      %v2937 = vpack.c.b16 %v2922, %v2921
      %v2938 = vpack.c.b16 %v2924, %v2923
      %v2939 = vpack.c.b16 %v2926, %v2925
      %v2940 = vpack.c.b16 %v2928, %v2927
      %v2941 = vpack.c.b16 %v2930, %v2929
      %v2942 = vpack.c.b16 %v2932, %v2931
      %v2943 = vpack.c.b16 %v2934, %v2933
      %v2944 = vpack.c.b16 %v2936, %v2935
      %2953 = vmatprep.subr.bf16.mxu0 0
      %2954 = vmatpush1.bf16.msra.mxu0 %v2937
      %2955 = vmatprep.subr.bf16.mxu0 0
      %2956 = vmatpush1.bf16.msra.mxu0 %v2938
      %2957 = vmatprep.subr.bf16.mxu0 0
      %2958 = vmatpush1.bf16.msra.mxu0 %v2939
      %2959 = vmatprep.subr.bf16.mxu0 0
      %2960 = vmatpush1.bf16.msra.mxu0 %v2940
      %2961 = vmatprep.subr.bf16.mxu0 0
      %2962 = vmatpush1.bf16.msra.mxu0 %v2941
      %2963 = vmatprep.subr.bf16.mxu0 0
      %2964 = vmatpush1.bf16.msra.mxu0 %v2942
      %2965 = vmatprep.subr.bf16.mxu0 0
      %2966 = vmatpush1.bf16.msra.mxu0 %v2943
      %2967 = vmatprep.subr.bf16.mxu0 0
      %2968 = vmatpush1.bf16.msra.mxu0 %v2944
      %2969 = vmatprep.subr.bf16.mxu0 0
      %2970 = vmatpush1.bf16.msra.mxu0 0
      %2971 = vmatprep.subr.bf16.mxu0 0
      %2972 = vmatpush1.bf16.msra.mxu0 0
      %2973 = vmatprep.subr.bf16.mxu0 0
      %2974 = vmatpush1.bf16.msra.mxu0 0
      %2975 = vmatprep.subr.bf16.mxu0 0
      %2976 = vmatpush1.bf16.msra.mxu0 0
      %2977 = vmatprep.subr.bf16.mxu0 0
      %2978 = vmatpush1.bf16.msra.mxu0 0
      %2979 = vmatprep.subr.bf16.mxu0 0
      %2980 = vmatpush1.bf16.msra.mxu0 0
      %2981 = vmatprep.subr.bf16.mxu0 0
      %2982 = vmatpush1.bf16.msra.mxu0 0
      %2983 = vmatprep.subr.bf16.mxu0 0
      %2984 = vmatpush1.bf16.msra.mxu0 0
      %2985 = vmatprep.mubr.bf16.mxu0 0
      %2986 = vmatmul.mubr.bf16.gmra.mrb[0].mxu0 %v1956
      %v2987 = vpop.f32.mrb[0].mxu0
      %v2988 = vadd.f32 0.0, %v2987
      %v2989 = vpop.f32.mrb[0].mxu0
      %v2990 = vpop.f32.mrb[0].mxu0
      %v2991 = vadd.f32 0.0, %v2990
      %v2992 = vpop.f32.mrb[0].mxu0
      %2993 = vmatprep.mubr.bf16.mxu0 0
      %2994 = vmatmul.mubr.bf16.gmra.mrb[0].mxu0 %v1958
      %v2995 = vpop.f32.mrb[0].mxu0
      %v2996 = vadd.f32 0.0, %v2995
      %v2997 = vpop.f32.mrb[0].mxu0
      %v2998 = vpop.f32.mrb[0].mxu0
      %v2999 = vadd.f32 0.0, %v2998
      %v3000 = vpop.f32.mrb[0].mxu0
      %3001 = vmatprep.mubr.bf16.mxu0 0
      %3002 = vmatmul.mubr.bf16.gmra.mrb[0].mxu0 %v1960
      %v3003 = vpop.f32.mrb[0].mxu0
      %v3004 = vadd.f32 0.0, %v3003
      %v3005 = vpop.f32.mrb[0].mxu0
      %v3006 = vpop.f32.mrb[0].mxu0
      %v3007 = vadd.f32 0.0, %v3006
      %v3008 = vpop.f32.mrb[0].mxu0
      %3009 = vmatprep.mubr.bf16.mxu0 0
      %3010 = vmatmul.mubr.bf16.gmra.mrb[0].mxu0 %v1962
      %v3011 = vpop.f32.mrb[0].mxu0
      %v3012 = vadd.f32 0.0, %v3011
      %v3013 = vpop.f32.mrb[0].mxu0
      %v3014 = vpop.f32.mrb[0].mxu0
      %v3015 = vadd.f32 0.0, %v3014
      %v3016 = vpop.f32.mrb[0].mxu0
      %3017 = vmatprep.mubr.bf16.mxu0 0
      %3018 = vmatmul.mubr.bf16.gmra.mrb[0].mxu0 %v1964
      %v3019 = vpop.f32.mrb[0].mxu0
      %v3020 = vadd.f32 0.0, %v3019
      %v3021 = vpop.f32.mrb[0].mxu0
      %v3022 = vpop.f32.mrb[0].mxu0
      %v3023 = vadd.f32 0.0, %v3022
      %v3024 = vpop.f32.mrb[0].mxu0
      %3025 = vmatprep.mubr.bf16.mxu0 0
      %3026 = vmatmul.mubr.bf16.gmra.mrb[0].mxu0 %v1966
      %v3027 = vpop.f32.mrb[0].mxu0
      %v3028 = vadd.f32 0.0, %v3027
      %v3029 = vpop.f32.mrb[0].mxu0
      %v3030 = vpop.f32.mrb[0].mxu0
      %v3031 = vadd.f32 0.0, %v3030
      %v3032 = vpop.f32.mrb[0].mxu0
      %3033 = vmatprep.mubr.bf16.mxu0 0
      %3034 = vmatmul.mubr.bf16.gmra.mrb[0].mxu0 %v1968
      %v3035 = vpop.f32.mrb[0].mxu0
      %v3036 = vadd.f32 0.0, %v3035
      %v3037 = vpop.f32.mrb[0].mxu0
      %v3038 = vpop.f32.mrb[0].mxu0
      %v3039 = vadd.f32 0.0, %v3038
      %v3040 = vpop.f32.mrb[0].mxu0
      %3041 = vmatprep.mubr.bf16.mxu0 0
      %3042 = vmatmul.mubr.bf16.gmra.mrb[0].mxu0 %v1970
      %v3043 = vpop.f32.mrb[0].mxu0
      %v3044 = vadd.f32 0.0, %v3043
      %v3045 = vpop.f32.mrb[0].mxu0
      %v3046 = vpop.f32.mrb[0].mxu0
      %v3047 = vadd.f32 0.0, %v3046
      %v3048 = vpop.f32.mrb[0].mxu0
      %3049 = vmatprep.mubr.bf16.mxu0 0
      %3050 = vmatmul.mubr.bf16.gmra.mrb[0].mxu0 %v1972
      %v3051 = vpop.f32.mrb[0].mxu0
      %v3052 = vadd.f32 0.0, %v3051
      %v3053 = vpop.f32.mrb[0].mxu0
      %v3054 = vpop.f32.mrb[0].mxu0
      %v3055 = vadd.f32 0.0, %v3054
      %v3056 = vpop.f32.mrb[0].mxu0
      %3057 = vmatprep.mubr.bf16.mxu0 0
      %3058 = vmatmul.mubr.bf16.gmra.mrb[0].mxu0 %v1974
      %v3059 = vpop.f32.mrb[0].mxu0
      %v3060 = vadd.f32 0.0, %v3059
      %v3061 = vpop.f32.mrb[0].mxu0
      %v3062 = vpop.f32.mrb[0].mxu0
      %v3063 = vadd.f32 0.0, %v3062
      %v3064 = vpop.f32.mrb[0].mxu0
      %3065 = vmatprep.mubr.bf16.mxu0 0
      %3066 = vmatmul.mubr.bf16.gmra.mrb[0].mxu0 %v1976
      %v3067 = vpop.f32.mrb[0].mxu0
      %v3068 = vadd.f32 0.0, %v3067
      %v3069 = vpop.f32.mrb[0].mxu0
      %v3070 = vpop.f32.mrb[0].mxu0
      %v3071 = vadd.f32 0.0, %v3070
      %v3072 = vpop.f32.mrb[0].mxu0
      %3073 = vmatprep.mubr.bf16.mxu0 0
      %3074 = vmatmul.mubr.bf16.gmra.mrb[0].mxu0 %v1978
      %v3075 = vpop.f32.mrb[0].mxu0
      %v3076 = vadd.f32 0.0, %v3075
      %v3077 = vpop.f32.mrb[0].mxu0
      %v3078 = vpop.f32.mrb[0].mxu0
      %v3079 = vadd.f32 0.0, %v3078
      %v3080 = vpop.f32.mrb[0].mxu0
      %3081 = vmatprep.mubr.bf16.mxu0 0
      %3082 = vmatmul.mubr.bf16.gmra.mrb[0].mxu0 %v1980
      %v3083 = vpop.f32.mrb[0].mxu0
      %v3084 = vadd.f32 0.0, %v3083
      %v3085 = vpop.f32.mrb[0].mxu0
      %v3086 = vpop.f32.mrb[0].mxu0
      %v3087 = vadd.f32 0.0, %v3086
      %v3088 = vpop.f32.mrb[0].mxu0
      %3089 = vmatprep.mubr.bf16.mxu0 0
      %3090 = vmatmul.mubr.bf16.gmra.mrb[0].mxu0 %v1982
      %v3091 = vpop.f32.mrb[0].mxu0
      %v3092 = vadd.f32 0.0, %v3091
      %v3093 = vpop.f32.mrb[0].mxu0
      %v3094 = vpop.f32.mrb[0].mxu0
      %v3095 = vadd.f32 0.0, %v3094
      %v3096 = vpop.f32.mrb[0].mxu0
      %3097 = vmatprep.mubr.bf16.mxu0 0
      %3098 = vmatmul.mubr.bf16.gmra.mrb[0].mxu0 %v1984
      %v3099 = vpop.f32.mrb[0].mxu0
      %v3100 = vadd.f32 0.0, %v3099
      %v3101 = vpop.f32.mrb[0].mxu0
      %v3102 = vpop.f32.mrb[0].mxu0
      %v3103 = vadd.f32 0.0, %v3102
      %v3104 = vpop.f32.mrb[0].mxu0
      %3105 = vmatprep.mubr.bf16.mxu0 0
      %3106 = vmatmul.mubr.bf16.gmra.mrb[0].mxu0 %v1986
      %v3107 = vpop.f32.mrb[0].mxu0
      %v3108 = vadd.f32 0.0, %v3107
      %v3109 = vpop.f32.mrb[0].mxu0
      %v3110 = vpop.f32.mrb[0].mxu0
      %v3111 = vadd.f32 0.0, %v3110
      %v3112 = vpop.f32.mrb[0].mxu0
      %3113 = vmatprep.mubr.bf16.mxu0 0
      %3114 = vmatmul.mubr.bf16.gmra.mrb[0].mxu0 %v1988
      %v3115 = vpop.f32.mrb[0].mxu0
      %v3116 = vadd.f32 0.0, %v3115
      %v3117 = vpop.f32.mrb[0].mxu0
      %v3118 = vpop.f32.mrb[0].mxu0
      %v3119 = vadd.f32 0.0, %v3118
      %v3120 = vpop.f32.mrb[0].mxu0
      %3121 = vmatprep.mubr.bf16.mxu0 0
      %3122 = vmatmul.mubr.bf16.gmra.mrb[0].mxu0 %v1990
      %v3123 = vpop.f32.mrb[0].mxu0
      %v3124 = vadd.f32 0.0, %v3123
      %v3125 = vpop.f32.mrb[0].mxu0
      %v3126 = vpop.f32.mrb[0].mxu0
      %v3127 = vadd.f32 0.0, %v3126
      %v3128 = vpop.f32.mrb[0].mxu0
      %3129 = vmatprep.mubr.bf16.mxu0 0
      %3130 = vmatmul.mubr.bf16.gmra.mrb[0].mxu0 %v1992
      %v3131 = vpop.f32.mrb[0].mxu0
      %v3132 = vadd.f32 0.0, %v3131
      %v3133 = vpop.f32.mrb[0].mxu0
      %v3134 = vpop.f32.mrb[0].mxu0
      %v3135 = vadd.f32 0.0, %v3134
      %v3136 = vpop.f32.mrb[0].mxu0
      %3137 = vmatprep.mubr.bf16.mxu0 0
      %3138 = vmatmul.mubr.bf16.gmra.mrb[0].mxu0 %v1994
      %v3139 = vpop.f32.mrb[0].mxu0
      %v3140 = vadd.f32 0.0, %v3139
      %v3141 = vpop.f32.mrb[0].mxu0
      %v3142 = vpop.f32.mrb[0].mxu0
      %v3143 = vadd.f32 0.0, %v3142
      %v3144 = vpop.f32.mrb[0].mxu0
      %3145 = vmatprep.mubr.bf16.mxu0 0
      %3146 = vmatmul.mubr.bf16.gmra.mrb[0].mxu0 %v1996
      %v3147 = vpop.f32.mrb[0].mxu0
      %v3148 = vadd.f32 0.0, %v3147
      %v3149 = vpop.f32.mrb[0].mxu0
      %v3150 = vpop.f32.mrb[0].mxu0
      %v3151 = vadd.f32 0.0, %v3150
      %v3152 = vpop.f32.mrb[0].mxu0
      %3153 = vmatprep.mubr.bf16.mxu0 0
      %3154 = vmatmul.mubr.bf16.gmra.mrb[0].mxu0 %v1998
      %v3155 = vpop.f32.mrb[0].mxu0
      %v3156 = vadd.f32 0.0, %v3155
      %v3157 = vpop.f32.mrb[0].mxu0
      %v3158 = vpop.f32.mrb[0].mxu0
      %v3159 = vadd.f32 0.0, %v3158
      %v3160 = vpop.f32.mrb[0].mxu0
      %3161 = vmatprep.mubr.bf16.mxu0 0
      %3162 = vmatmul.mubr.bf16.gmra.mrb[0].mxu0 %v2000
      %v3163 = vpop.f32.mrb[0].mxu0
      %v3164 = vadd.f32 0.0, %v3163
      %v3165 = vpop.f32.mrb[0].mxu0
      %v3166 = vpop.f32.mrb[0].mxu0
      %v3167 = vadd.f32 0.0, %v3166
      %v3168 = vpop.f32.mrb[0].mxu0
      %3169 = vmatprep.mubr.bf16.mxu0 0
      %3170 = vmatmul.mubr.bf16.gmra.mrb[0].mxu0 %v2002
      %v3171 = vpop.f32.mrb[0].mxu0
      %v3172 = vadd.f32 0.0, %v3171
      %v3173 = vpop.f32.mrb[0].mxu0
      %v3174 = vpop.f32.mrb[0].mxu0
      %v3175 = vadd.f32 0.0, %v3174
      %v3176 = vpop.f32.mrb[0].mxu0
      %3177 = vdwg.mxu0
      %v3194 = vunpack.c.l.b16 %v2872
      %v3195 = vunpack.c.l.b16 %v2873
      %v3196 = vunpack.c.l.b16 %v2874
      %v3197 = vunpack.c.l.b16 %v2875
      %v3198 = vunpack.c.l.b16 %v2876
      %v3199 = vunpack.c.l.b16 %v2877
      %v3200 = vunpack.c.l.b16 %v2878
      %v3201 = vunpack.c.l.b16 %v2879
      %v3202 = vunpack.c.l.b16 %v2880
      %v3203 = vunpack.c.l.b16 %v2881
      %v3204 = vunpack.c.l.b16 %v2882
      %v3205 = vunpack.c.l.b16 %v2883
      %v3206 = vunpack.c.l.b16 %v2884
      %v3207 = vunpack.c.l.b16 %v2885
      %v3208 = vunpack.c.l.b16 %v2886
      %v3209 = vunpack.c.l.b16 %v2887
      %v3210 = vpack.c.b16 %v3195, %v3194
      %v3211 = vpack.c.b16 %v3197, %v3196
      %v3212 = vpack.c.b16 %v3199, %v3198
      %v3213 = vpack.c.b16 %v3201, %v3200
      %v3214 = vpack.c.b16 %v3203, %v3202
      %v3215 = vpack.c.b16 %v3205, %v3204
      %v3216 = vpack.c.b16 %v3207, %v3206
      %v3217 = vpack.c.b16 %v3209, %v3208
      %3226 = vmatprep.subr.bf16.mxu0 0
      %3227 = vmatpush1.bf16.msra.mxu0 %v3210
      %3228 = vmatprep.subr.bf16.mxu0 0
      %3229 = vmatpush1.bf16.msra.mxu0 %v3211
      %3230 = vmatprep.subr.bf16.mxu0 0
      %3231 = vmatpush1.bf16.msra.mxu0 %v3212
      %3232 = vmatprep.subr.bf16.mxu0 0
      %3233 = vmatpush1.bf16.msra.mxu0 %v3213
      %3234 = vmatprep.subr.bf16.mxu0 0
      %3235 = vmatpush1.bf16.msra.mxu0 %v3214
      %3236 = vmatprep.subr.bf16.mxu0 0
      %3237 = vmatpush1.bf16.msra.mxu0 %v3215
      %3238 = vmatprep.subr.bf16.mxu0 0
      %3239 = vmatpush1.bf16.msra.mxu0 %v3216
      %3240 = vmatprep.subr.bf16.mxu0 0
      %3241 = vmatpush1.bf16.msra.mxu0 %v3217
      %3242 = vmatprep.subr.bf16.mxu0 0
      %3243 = vmatpush1.bf16.msra.mxu0 0
      %3244 = vmatprep.subr.bf16.mxu0 0
      %3245 = vmatpush1.bf16.msra.mxu0 0
      %3246 = vmatprep.subr.bf16.mxu0 0
      %3247 = vmatpush1.bf16.msra.mxu0 0
      %3248 = vmatprep.subr.bf16.mxu0 0
      %3249 = vmatpush1.bf16.msra.mxu0 0
      %3250 = vmatprep.subr.bf16.mxu0 0
      %3251 = vmatpush1.bf16.msra.mxu0 0
      %3252 = vmatprep.subr.bf16.mxu0 0
      %3253 = vmatpush1.bf16.msra.mxu0 0
      %3254 = vmatprep.subr.bf16.mxu0 0
      %3255 = vmatpush1.bf16.msra.mxu0 0
      %3256 = vmatprep.subr.bf16.mxu0 0
      %3257 = vmatpush1.bf16.msra.mxu0 0
      %3258 = vmatprep.mubr.bf16.mxu0 0
      %3259 = vmatmul.mubr.bf16.gmra.mrb[0].mxu0 %v1869
      %v3260 = vpop.f32.mrb[0].mxu0
      %v3261 = vadd.f32 %v2988, %v3260
      %v3262 = vpop.f32.mrb[0].mxu0
      %v3263 = vpop.f32.mrb[0].mxu0
      %v3264 = vadd.f32 %v2991, %v3263
      %v3265 = vpop.f32.mrb[0].mxu0
      %3266 = vmatprep.mubr.bf16.mxu0 0
      %3267 = vmatmul.mubr.bf16.gmra.mrb[0].mxu0 %v1870
      %v3268 = vpop.f32.mrb[0].mxu0
      %v3269 = vadd.f32 %v2996, %v3268
      %v3270 = vpop.f32.mrb[0].mxu0
      %v3271 = vpop.f32.mrb[0].mxu0
      %v3272 = vadd.f32 %v2999, %v3271
      %v3273 = vpop.f32.mrb[0].mxu0
      %3274 = vmatprep.mubr.bf16.mxu0 0
      %3275 = vmatmul.mubr.bf16.gmra.mrb[0].mxu0 %v1871
      %v3276 = vpop.f32.mrb[0].mxu0
      %v3277 = vadd.f32 %v3004, %v3276
      %v3278 = vpop.f32.mrb[0].mxu0
      %v3279 = vpop.f32.mrb[0].mxu0
      %v3280 = vadd.f32 %v3007, %v3279
      %v3281 = vpop.f32.mrb[0].mxu0
      %3282 = vmatprep.mubr.bf16.mxu0 0
      %3283 = vmatmul.mubr.bf16.gmra.mrb[0].mxu0 %v1872
      %v3284 = vpop.f32.mrb[0].mxu0
      %v3285 = vadd.f32 %v3012, %v3284
      %v3286 = vpop.f32.mrb[0].mxu0
      %v3287 = vpop.f32.mrb[0].mxu0
      %v3288 = vadd.f32 %v3015, %v3287
      %v3289 = vpop.f32.mrb[0].mxu0
      %3290 = vmatprep.mubr.bf16.mxu0 0
      %3291 = vmatmul.mubr.bf16.gmra.mrb[0].mxu0 %v1873
      %v3292 = vpop.f32.mrb[0].mxu0
      %v3293 = vadd.f32 %v3020, %v3292
      %v3294 = vpop.f32.mrb[0].mxu0
      %v3295 = vpop.f32.mrb[0].mxu0
      %v3296 = vadd.f32 %v3023, %v3295
      %v3297 = vpop.f32.mrb[0].mxu0
      %3298 = vmatprep.mubr.bf16.mxu0 0
      %3299 = vmatmul.mubr.bf16.gmra.mrb[0].mxu0 %v1874
      %v3300 = vpop.f32.mrb[0].mxu0
      %v3301 = vadd.f32 %v3028, %v3300
      %v3302 = vpop.f32.mrb[0].mxu0
      %v3303 = vpop.f32.mrb[0].mxu0
      %v3304 = vadd.f32 %v3031, %v3303
      %v3305 = vpop.f32.mrb[0].mxu0
      %3306 = vmatprep.mubr.bf16.mxu0 0
      %3307 = vmatmul.mubr.bf16.gmra.mrb[0].mxu0 %v1875
      %v3308 = vpop.f32.mrb[0].mxu0
      %v3309 = vadd.f32 %v3036, %v3308
      %v3310 = vpop.f32.mrb[0].mxu0
      %v3311 = vpop.f32.mrb[0].mxu0
      %v3312 = vadd.f32 %v3039, %v3311
      %v3313 = vpop.f32.mrb[0].mxu0
      %3314 = vmatprep.mubr.bf16.mxu0 0
      %3315 = vmatmul.mubr.bf16.gmra.mrb[0].mxu0 %v1876
      %v3316 = vpop.f32.mrb[0].mxu0
      %v3317 = vadd.f32 %v3044, %v3316
      %v3318 = vpop.f32.mrb[0].mxu0
      %v3319 = vpop.f32.mrb[0].mxu0
      %v3320 = vadd.f32 %v3047, %v3319
      %v3321 = vpop.f32.mrb[0].mxu0
      %3322 = vmatprep.mubr.bf16.mxu0 0
      %3323 = vmatmul.mubr.bf16.gmra.mrb[0].mxu0 %v1877
      %v3324 = vpop.f32.mrb[0].mxu0
      %v3325 = vadd.f32 %v3052, %v3324
      %v3326 = vpop.f32.mrb[0].mxu0
      %v3327 = vpop.f32.mrb[0].mxu0
      %v3328 = vadd.f32 %v3055, %v3327
      %v3329 = vpop.f32.mrb[0].mxu0
      %3330 = vmatprep.mubr.bf16.mxu0 0
      %3331 = vmatmul.mubr.bf16.gmra.mrb[0].mxu0 %v1878
      %v3332 = vpop.f32.mrb[0].mxu0
      %v3333 = vadd.f32 %v3060, %v3332
      %v3334 = vpop.f32.mrb[0].mxu0
      %v3335 = vpop.f32.mrb[0].mxu0
      %v3336 = vadd.f32 %v3063, %v3335
      %v3337 = vpop.f32.mrb[0].mxu0
      %3338 = vmatprep.mubr.bf16.mxu0 0
      %3339 = vmatmul.mubr.bf16.gmra.mrb[0].mxu0 %v1879
      %v3340 = vpop.f32.mrb[0].mxu0
      %v3341 = vadd.f32 %v3068, %v3340
      %v3342 = vpop.f32.mrb[0].mxu0
      %v3343 = vpop.f32.mrb[0].mxu0
      %v3344 = vadd.f32 %v3071, %v3343
      %v3345 = vpop.f32.mrb[0].mxu0
      %3346 = vmatprep.mubr.bf16.mxu0 0
      %3347 = vmatmul.mubr.bf16.gmra.mrb[0].mxu0 %v1880
      %v3348 = vpop.f32.mrb[0].mxu0
      %v3349 = vadd.f32 %v3076, %v3348
      %v3350 = vpop.f32.mrb[0].mxu0
      %v3351 = vpop.f32.mrb[0].mxu0
      %v3352 = vadd.f32 %v3079, %v3351
      %v3353 = vpop.f32.mrb[0].mxu0
      %3354 = vmatprep.mubr.bf16.mxu0 0
      %3355 = vmatmul.mubr.bf16.gmra.mrb[0].mxu0 %v1881
      %v3356 = vpop.f32.mrb[0].mxu0
      %v3357 = vadd.f32 %v3084, %v3356
      %v3358 = vpop.f32.mrb[0].mxu0
      %v3359 = vpop.f32.mrb[0].mxu0
      %v3360 = vadd.f32 %v3087, %v3359
      %v3361 = vpop.f32.mrb[0].mxu0
      %3362 = vmatprep.mubr.bf16.mxu0 0
      %3363 = vmatmul.mubr.bf16.gmra.mrb[0].mxu0 %v1882
      %v3364 = vpop.f32.mrb[0].mxu0
      %v3365 = vadd.f32 %v3092, %v3364
      %v3366 = vpop.f32.mrb[0].mxu0
      %v3367 = vpop.f32.mrb[0].mxu0
      %v3368 = vadd.f32 %v3095, %v3367
      %v3369 = vpop.f32.mrb[0].mxu0
      %3370 = vmatprep.mubr.bf16.mxu0 0
      %3371 = vmatmul.mubr.bf16.gmra.mrb[0].mxu0 %v1883
      %v3372 = vpop.f32.mrb[0].mxu0
      %v3373 = vadd.f32 %v3100, %v3372
      %v3374 = vpop.f32.mrb[0].mxu0
      %v3375 = vpop.f32.mrb[0].mxu0
      %v3376 = vadd.f32 %v3103, %v3375
      %v3377 = vpop.f32.mrb[0].mxu0
      %3378 = vmatprep.mubr.bf16.mxu0 0
      %3379 = vmatmul.mubr.bf16.gmra.mrb[0].mxu0 %v1884
      %v3380 = vpop.f32.mrb[0].mxu0
      %v3381 = vadd.f32 %v3108, %v3380
      %v3382 = vpop.f32.mrb[0].mxu0
      %v3383 = vpop.f32.mrb[0].mxu0
      %v3384 = vadd.f32 %v3111, %v3383
      %v3385 = vpop.f32.mrb[0].mxu0
      %3386 = vmatprep.mubr.bf16.mxu0 0
      %3387 = vmatmul.mubr.bf16.gmra.mrb[0].mxu0 %v1885
      %v3388 = vpop.f32.mrb[0].mxu0
      %v3389 = vadd.f32 %v3116, %v3388
      %v3390 = vpop.f32.mrb[0].mxu0
      %v3391 = vpop.f32.mrb[0].mxu0
      %v3392 = vadd.f32 %v3119, %v3391
      %v3393 = vpop.f32.mrb[0].mxu0
      %3394 = vmatprep.mubr.bf16.mxu0 0
      %3395 = vmatmul.mubr.bf16.gmra.mrb[0].mxu0 %v1886
      %v3396 = vpop.f32.mrb[0].mxu0
      %v3397 = vadd.f32 %v3124, %v3396
      %v3398 = vpop.f32.mrb[0].mxu0
      %v3399 = vpop.f32.mrb[0].mxu0
      %v3400 = vadd.f32 %v3127, %v3399
      %v3401 = vpop.f32.mrb[0].mxu0
      %3402 = vmatprep.mubr.bf16.mxu0 0
      %3403 = vmatmul.mubr.bf16.gmra.mrb[0].mxu0 %v1887
      %v3404 = vpop.f32.mrb[0].mxu0
      %v3405 = vadd.f32 %v3132, %v3404
      %v3406 = vpop.f32.mrb[0].mxu0
      %v3407 = vpop.f32.mrb[0].mxu0
      %v3408 = vadd.f32 %v3135, %v3407
      %v3409 = vpop.f32.mrb[0].mxu0
      %3410 = vmatprep.mubr.bf16.mxu0 0
      %3411 = vmatmul.mubr.bf16.gmra.mrb[0].mxu0 %v1888
      %v3412 = vpop.f32.mrb[0].mxu0
      %v3413 = vadd.f32 %v3140, %v3412
      %v3414 = vpop.f32.mrb[0].mxu0
      %v3415 = vpop.f32.mrb[0].mxu0
      %v3416 = vadd.f32 %v3143, %v3415
      %v3417 = vpop.f32.mrb[0].mxu0
      %3418 = vmatprep.mubr.bf16.mxu0 0
      %3419 = vmatmul.mubr.bf16.gmra.mrb[0].mxu0 %v1889
      %v3420 = vpop.f32.mrb[0].mxu0
      %v3421 = vadd.f32 %v3148, %v3420
      %v3422 = vpop.f32.mrb[0].mxu0
      %v3423 = vpop.f32.mrb[0].mxu0
      %v3424 = vadd.f32 %v3151, %v3423
      %v3425 = vpop.f32.mrb[0].mxu0
      %3426 = vmatprep.mubr.bf16.mxu0 0
      %3427 = vmatmul.mubr.bf16.gmra.mrb[0].mxu0 %v1890
      %v3428 = vpop.f32.mrb[0].mxu0
      %v3429 = vadd.f32 %v3156, %v3428
      %v3430 = vpop.f32.mrb[0].mxu0
      %v3431 = vpop.f32.mrb[0].mxu0
      %v3432 = vadd.f32 %v3159, %v3431
      %v3433 = vpop.f32.mrb[0].mxu0
      %3434 = vmatprep.mubr.bf16.mxu0 0
      %3435 = vmatmul.mubr.bf16.gmra.mrb[0].mxu0 %v1891
      %v3436 = vpop.f32.mrb[0].mxu0
      %v3437 = vadd.f32 %v3164, %v3436
      %v3438 = vpop.f32.mrb[0].mxu0
      %v3439 = vpop.f32.mrb[0].mxu0
      %v3440 = vadd.f32 %v3167, %v3439
      %v3441 = vpop.f32.mrb[0].mxu0
      %3442 = vmatprep.mubr.bf16.mxu0 0
      %3443 = vmatmul.mubr.bf16.gmra.mrb[0].mxu0 %v1892
      %v3444 = vpop.f32.mrb[0].mxu0
      %v3445 = vadd.f32 %v3172, %v3444
      %v3446 = vpop.f32.mrb[0].mxu0
      %v3447 = vpop.f32.mrb[0].mxu0
      %v3448 = vadd.f32 %v3175, %v3447
      %v3449 = vpop.f32.mrb[0].mxu0
      %3450 = vdwg.mxu0
      %s3451 = scalar_lea.vmem %s5, 448
      %v3452 = vld [vmem:[%s3451] sm:$0xf]
      %v3453 = vld [vmem:[%s3451 + $0x4] sm:$0xf]
      %v3454 = vld [vmem:[%s3451 + $0x8] sm:$0xf]
      %v3455 = vld [vmem:[%s3451 + $0xc] sm:$0xf]
      %v3456 = vld [vmem:[%s3451 + $0x10] sm:$0xf]
      %v3457 = vld [vmem:[%s3451 + $0x14] sm:$0xf]
      %v3458 = vld [vmem:[%s3451 + $0x18] sm:$0xf]
      %v3459 = vld [vmem:[%s3451 + $0x1c] sm:$0xf]
      %v3460 = vld [vmem:[%s3451 + $0x20] sm:$0xf]
      %v3461 = vld [vmem:[%s3451 + $0x24] sm:$0xf]
      %v3462 = vld [vmem:[%s3451 + $0x28] sm:$0xf]
      %v3463 = vld [vmem:[%s3451 + $0x2c] sm:$0xf]
      %v3464 = vld [vmem:[%s3451 + $0x30] sm:$0xf]
      %v3465 = vld [vmem:[%s3451 + $0x34] sm:$0xf]
      %v3466 = vld [vmem:[%s3451 + $0x38] sm:$0xf]
      %v3467 = vld [vmem:[%s3451 + $0x3c] sm:$0xf]
      %v3484 = vunpack.c.l.b16 %v3452
      %v3485 = vunpack.c.l.b16 %v3453
      %v3486 = vunpack.c.l.b16 %v3454
      %v3487 = vunpack.c.l.b16 %v3455
      %v3488 = vunpack.c.l.b16 %v3456
      %v3489 = vunpack.c.l.b16 %v3457
      %v3490 = vunpack.c.l.b16 %v3458
      %v3491 = vunpack.c.l.b16 %v3459
      %v3492 = vunpack.c.l.b16 %v3460
      %v3493 = vunpack.c.l.b16 %v3461
      %v3494 = vunpack.c.l.b16 %v3462
      %v3495 = vunpack.c.l.b16 %v3463
      %v3496 = vunpack.c.l.b16 %v3464
      %v3497 = vunpack.c.l.b16 %v3465
      %v3498 = vunpack.c.l.b16 %v3466
      %v3499 = vunpack.c.l.b16 %v3467
      %v3500 = vpack.c.b16 %v3485, %v3484
      %v3501 = vpack.c.b16 %v3487, %v3486
      %v3502 = vpack.c.b16 %v3489, %v3488
      %v3503 = vpack.c.b16 %v3491, %v3490
      %v3504 = vpack.c.b16 %v3493, %v3492
      %v3505 = vpack.c.b16 %v3495, %v3494
      %v3506 = vpack.c.b16 %v3497, %v3496
      %v3507 = vpack.c.b16 %v3499, %v3498
      %3516 = vmatprep.subr.bf16.mxu0 0
      %3517 = vmatpush1.bf16.msra.mxu0 %v3500
      %3518 = vmatprep.subr.bf16.mxu0 0
      %3519 = vmatpush1.bf16.msra.mxu0 %v3501
      %3520 = vmatprep.subr.bf16.mxu0 0
      %3521 = vmatpush1.bf16.msra.mxu0 %v3502
      %3522 = vmatprep.subr.bf16.mxu0 0
      %3523 = vmatpush1.bf16.msra.mxu0 %v3503
      %3524 = vmatprep.subr.bf16.mxu0 0
      %3525 = vmatpush1.bf16.msra.mxu0 %v3504
      %3526 = vmatprep.subr.bf16.mxu0 0
      %3527 = vmatpush1.bf16.msra.mxu0 %v3505
      %3528 = vmatprep.subr.bf16.mxu0 0
      %3529 = vmatpush1.bf16.msra.mxu0 %v3506
      %3530 = vmatprep.subr.bf16.mxu0 0
      %3531 = vmatpush1.bf16.msra.mxu0 %v3507
      %3532 = vmatprep.subr.bf16.mxu0 0
      %3533 = vmatpush1.bf16.msra.mxu0 0
      %3534 = vmatprep.subr.bf16.mxu0 0
      %3535 = vmatpush1.bf16.msra.mxu0 0
      %3536 = vmatprep.subr.bf16.mxu0 0
      %3537 = vmatpush1.bf16.msra.mxu0 0
      %3538 = vmatprep.subr.bf16.mxu0 0
      %3539 = vmatpush1.bf16.msra.mxu0 0
      %3540 = vmatprep.subr.bf16.mxu0 0
      %3541 = vmatpush1.bf16.msra.mxu0 0
      %3542 = vmatprep.subr.bf16.mxu0 0
      %3543 = vmatpush1.bf16.msra.mxu0 0
      %3544 = vmatprep.subr.bf16.mxu0 0
      %3545 = vmatpush1.bf16.msra.mxu0 0
      %3546 = vmatprep.subr.bf16.mxu0 0
      %3547 = vmatpush1.bf16.msra.mxu0 0
      %3548 = vmatprep.mubr.bf16.mxu0 0
      %3549 = vmatmul.mubr.bf16.gmra.mrb[0].mxu0 %v2541
      %v3550 = vpop.f32.mrb[0].mxu0
      %v3551 = vadd.f32 0.0, %v3550
      %v3552 = vpop.f32.mrb[0].mxu0
      %v3553 = vpop.f32.mrb[0].mxu0
      %v3554 = vadd.f32 0.0, %v3553
      %v3555 = vpop.f32.mrb[0].mxu0
      %3556 = vmatprep.mubr.bf16.mxu0 0
      %3557 = vmatmul.mubr.bf16.gmra.mrb[0].mxu0 %v2542
      %v3558 = vpop.f32.mrb[0].mxu0
      %v3559 = vadd.f32 0.0, %v3558
      %v3560 = vpop.f32.mrb[0].mxu0
      %v3561 = vpop.f32.mrb[0].mxu0
      %v3562 = vadd.f32 0.0, %v3561
      %v3563 = vpop.f32.mrb[0].mxu0
      %3564 = vmatprep.mubr.bf16.mxu0 0
      %3565 = vmatmul.mubr.bf16.gmra.mrb[0].mxu0 %v2543
      %v3566 = vpop.f32.mrb[0].mxu0
      %v3567 = vadd.f32 0.0, %v3566
      %v3568 = vpop.f32.mrb[0].mxu0
      %v3569 = vpop.f32.mrb[0].mxu0
      %v3570 = vadd.f32 0.0, %v3569
      %v3571 = vpop.f32.mrb[0].mxu0
      %3572 = vmatprep.mubr.bf16.mxu0 0
      %3573 = vmatmul.mubr.bf16.gmra.mrb[0].mxu0 %v2544
      %v3574 = vpop.f32.mrb[0].mxu0
      %v3575 = vadd.f32 0.0, %v3574
      %v3576 = vpop.f32.mrb[0].mxu0
      %v3577 = vpop.f32.mrb[0].mxu0
      %v3578 = vadd.f32 0.0, %v3577
      %v3579 = vpop.f32.mrb[0].mxu0
      %3580 = vmatprep.mubr.bf16.mxu0 0
      %3581 = vmatmul.mubr.bf16.gmra.mrb[0].mxu0 %v2545
      %v3582 = vpop.f32.mrb[0].mxu0
      %v3583 = vadd.f32 0.0, %v3582
      %v3584 = vpop.f32.mrb[0].mxu0
      %v3585 = vpop.f32.mrb[0].mxu0
      %v3586 = vadd.f32 0.0, %v3585
      %v3587 = vpop.f32.mrb[0].mxu0
      %3588 = vmatprep.mubr.bf16.mxu0 0
      %3589 = vmatmul.mubr.bf16.gmra.mrb[0].mxu0 %v2546
      %v3590 = vpop.f32.mrb[0].mxu0
      %v3591 = vadd.f32 0.0, %v3590
      %v3592 = vpop.f32.mrb[0].mxu0
      %v3593 = vpop.f32.mrb[0].mxu0
      %v3594 = vadd.f32 0.0, %v3593
      %v3595 = vpop.f32.mrb[0].mxu0
      %3596 = vmatprep.mubr.bf16.mxu0 0
      %3597 = vmatmul.mubr.bf16.gmra.mrb[0].mxu0 %v2547
      %v3598 = vpop.f32.mrb[0].mxu0
      %v3599 = vadd.f32 0.0, %v3598
      %v3600 = vpop.f32.mrb[0].mxu0
      %v3601 = vpop.f32.mrb[0].mxu0
      %v3602 = vadd.f32 0.0, %v3601
      %v3603 = vpop.f32.mrb[0].mxu0
      %3604 = vmatprep.mubr.bf16.mxu0 0
      %3605 = vmatmul.mubr.bf16.gmra.mrb[0].mxu0 %v2548
      %v3606 = vpop.f32.mrb[0].mxu0
      %v3607 = vadd.f32 0.0, %v3606
      %v3608 = vpop.f32.mrb[0].mxu0
      %v3609 = vpop.f32.mrb[0].mxu0
      %v3610 = vadd.f32 0.0, %v3609
      %v3611 = vpop.f32.mrb[0].mxu0
      %3612 = vmatprep.mubr.bf16.mxu0 0
      %3613 = vmatmul.mubr.bf16.gmra.mrb[0].mxu0 %v2549
      %v3614 = vpop.f32.mrb[0].mxu0
      %v3615 = vadd.f32 0.0, %v3614
      %v3616 = vpop.f32.mrb[0].mxu0
      %v3617 = vpop.f32.mrb[0].mxu0
      %v3618 = vadd.f32 0.0, %v3617
      %v3619 = vpop.f32.mrb[0].mxu0
      %3620 = vmatprep.mubr.bf16.mxu0 0
      %3621 = vmatmul.mubr.bf16.gmra.mrb[0].mxu0 %v2550
      %v3622 = vpop.f32.mrb[0].mxu0
      %v3623 = vadd.f32 0.0, %v3622
      %v3624 = vpop.f32.mrb[0].mxu0
      %v3625 = vpop.f32.mrb[0].mxu0
      %v3626 = vadd.f32 0.0, %v3625
      %v3627 = vpop.f32.mrb[0].mxu0
      %3628 = vmatprep.mubr.bf16.mxu0 0
      %3629 = vmatmul.mubr.bf16.gmra.mrb[0].mxu0 %v2551
      %v3630 = vpop.f32.mrb[0].mxu0
      %v3631 = vadd.f32 0.0, %v3630
      %v3632 = vpop.f32.mrb[0].mxu0
      %v3633 = vpop.f32.mrb[0].mxu0
      %v3634 = vadd.f32 0.0, %v3633
      %v3635 = vpop.f32.mrb[0].mxu0
      %3636 = vmatprep.mubr.bf16.mxu0 0
      %3637 = vmatmul.mubr.bf16.gmra.mrb[0].mxu0 %v2552
      %v3638 = vpop.f32.mrb[0].mxu0
      %v3639 = vadd.f32 0.0, %v3638
      %v3640 = vpop.f32.mrb[0].mxu0
      %v3641 = vpop.f32.mrb[0].mxu0
      %v3642 = vadd.f32 0.0, %v3641
      %v3643 = vpop.f32.mrb[0].mxu0
      %3644 = vmatprep.mubr.bf16.mxu0 0
      %3645 = vmatmul.mubr.bf16.gmra.mrb[0].mxu0 %v2553
      %v3646 = vpop.f32.mrb[0].mxu0
      %v3647 = vadd.f32 0.0, %v3646
      %v3648 = vpop.f32.mrb[0].mxu0
      %v3649 = vpop.f32.mrb[0].mxu0
      %v3650 = vadd.f32 0.0, %v3649
      %v3651 = vpop.f32.mrb[0].mxu0
      %3652 = vmatprep.mubr.bf16.mxu0 0
      %3653 = vmatmul.mubr.bf16.gmra.mrb[0].mxu0 %v2554
      %v3654 = vpop.f32.mrb[0].mxu0
      %v3655 = vadd.f32 0.0, %v3654
      %v3656 = vpop.f32.mrb[0].mxu0
      %v3657 = vpop.f32.mrb[0].mxu0
      %v3658 = vadd.f32 0.0, %v3657
      %v3659 = vpop.f32.mrb[0].mxu0
      %3660 = vmatprep.mubr.bf16.mxu0 0
      %3661 = vmatmul.mubr.bf16.gmra.mrb[0].mxu0 %v2555
      %v3662 = vpop.f32.mrb[0].mxu0
      %v3663 = vadd.f32 0.0, %v3662
      %v3664 = vpop.f32.mrb[0].mxu0
      %v3665 = vpop.f32.mrb[0].mxu0
      %v3666 = vadd.f32 0.0, %v3665
      %v3667 = vpop.f32.mrb[0].mxu0
      %3668 = vmatprep.mubr.bf16.mxu0 0
      %3669 = vmatmul.mubr.bf16.gmra.mrb[0].mxu0 %v2556
      %v3670 = vpop.f32.mrb[0].mxu0
      %v3671 = vadd.f32 0.0, %v3670
      %v3672 = vpop.f32.mrb[0].mxu0
      %v3673 = vpop.f32.mrb[0].mxu0
      %v3674 = vadd.f32 0.0, %v3673
      %v3675 = vpop.f32.mrb[0].mxu0
      %3676 = vmatprep.mubr.bf16.mxu0 0
      %3677 = vmatmul.mubr.bf16.gmra.mrb[0].mxu0 %v2557
      %v3678 = vpop.f32.mrb[0].mxu0
      %v3679 = vadd.f32 0.0, %v3678
      %v3680 = vpop.f32.mrb[0].mxu0
      %v3681 = vpop.f32.mrb[0].mxu0
      %v3682 = vadd.f32 0.0, %v3681
      %v3683 = vpop.f32.mrb[0].mxu0
      %3684 = vmatprep.mubr.bf16.mxu0 0
      %3685 = vmatmul.mubr.bf16.gmra.mrb[0].mxu0 %v2558
      %v3686 = vpop.f32.mrb[0].mxu0
      %v3687 = vadd.f32 0.0, %v3686
      %v3688 = vpop.f32.mrb[0].mxu0
      %v3689 = vpop.f32.mrb[0].mxu0
      %v3690 = vadd.f32 0.0, %v3689
      %v3691 = vpop.f32.mrb[0].mxu0
      %3692 = vmatprep.mubr.bf16.mxu0 0
      %3693 = vmatmul.mubr.bf16.gmra.mrb[0].mxu0 %v2559
      %v3694 = vpop.f32.mrb[0].mxu0
      %v3695 = vadd.f32 0.0, %v3694
      %v3696 = vpop.f32.mrb[0].mxu0
      %v3697 = vpop.f32.mrb[0].mxu0
      %v3698 = vadd.f32 0.0, %v3697
      %v3699 = vpop.f32.mrb[0].mxu0
      %3700 = vmatprep.mubr.bf16.mxu0 0
      %3701 = vmatmul.mubr.bf16.gmra.mrb[0].mxu0 %v2560
      %v3702 = vpop.f32.mrb[0].mxu0
      %v3703 = vadd.f32 0.0, %v3702
      %v3704 = vpop.f32.mrb[0].mxu0
      %v3705 = vpop.f32.mrb[0].mxu0
      %v3706 = vadd.f32 0.0, %v3705
      %v3707 = vpop.f32.mrb[0].mxu0
      %3708 = vmatprep.mubr.bf16.mxu0 0
      %3709 = vmatmul.mubr.bf16.gmra.mrb[0].mxu0 %v2561
      %v3710 = vpop.f32.mrb[0].mxu0
      %v3711 = vadd.f32 0.0, %v3710
      %v3712 = vpop.f32.mrb[0].mxu0
      %v3713 = vpop.f32.mrb[0].mxu0
      %v3714 = vadd.f32 0.0, %v3713
      %v3715 = vpop.f32.mrb[0].mxu0
      %3716 = vmatprep.mubr.bf16.mxu0 0
      %3717 = vmatmul.mubr.bf16.gmra.mrb[0].mxu0 %v2562
      %v3718 = vpop.f32.mrb[0].mxu0
      %v3719 = vadd.f32 0.0, %v3718
      %v3720 = vpop.f32.mrb[0].mxu0
      %v3721 = vpop.f32.mrb[0].mxu0
      %v3722 = vadd.f32 0.0, %v3721
      %v3723 = vpop.f32.mrb[0].mxu0
      %3724 = vmatprep.mubr.bf16.mxu0 0
      %3725 = vmatmul.mubr.bf16.gmra.mrb[0].mxu0 %v2563
      %v3726 = vpop.f32.mrb[0].mxu0
      %v3727 = vadd.f32 0.0, %v3726
      %v3728 = vpop.f32.mrb[0].mxu0
      %v3729 = vpop.f32.mrb[0].mxu0
      %v3730 = vadd.f32 0.0, %v3729
      %v3731 = vpop.f32.mrb[0].mxu0
      %3732 = vmatprep.mubr.bf16.mxu0 0
      %3733 = vmatmul.mubr.bf16.gmra.mrb[0].mxu0 %v2564
      %v3734 = vpop.f32.mrb[0].mxu0
      %v3735 = vadd.f32 0.0, %v3734
      %v3736 = vpop.f32.mrb[0].mxu0
      %v3737 = vpop.f32.mrb[0].mxu0
      %v3738 = vadd.f32 0.0, %v3737
      %v3739 = vpop.f32.mrb[0].mxu0
      %3740 = vdwg.mxu0
      %v3741 = vadd.f32 %v3261, %v3551
      %v3742 = vadd.f32 %v3264, %v3554
      %v3743 = vadd.f32 %v3269, %v3559
      %v3744 = vadd.f32 %v3272, %v3562
      %v3745 = vadd.f32 %v3277, %v3567
      %v3746 = vadd.f32 %v3280, %v3570
      %v3747 = vadd.f32 %v3285, %v3575
      %v3748 = vadd.f32 %v3288, %v3578
      %v3749 = vadd.f32 %v3293, %v3583
      %v3750 = vadd.f32 %v3296, %v3586
      %v3751 = vadd.f32 %v3301, %v3591
      %v3752 = vadd.f32 %v3304, %v3594
      %v3753 = vadd.f32 %v3309, %v3599
      %v3754 = vadd.f32 %v3312, %v3602
      %v3755 = vadd.f32 %v3317, %v3607
      %v3756 = vadd.f32 %v3320, %v3610
      %v3757 = vadd.f32 %v3325, %v3615
      %v3758 = vadd.f32 %v3328, %v3618
      %v3759 = vadd.f32 %v3333, %v3623
      %v3760 = vadd.f32 %v3336, %v3626
      %v3761 = vadd.f32 %v3341, %v3631
      %v3762 = vadd.f32 %v3344, %v3634
      %v3763 = vadd.f32 %v3349, %v3639
      %v3764 = vadd.f32 %v3352, %v3642
      %v3765 = vadd.f32 %v3357, %v3647
      %v3766 = vadd.f32 %v3360, %v3650
      %v3767 = vadd.f32 %v3365, %v3655
      %v3768 = vadd.f32 %v3368, %v3658
      %v3769 = vadd.f32 %v3373, %v3663
      %v3770 = vadd.f32 %v3376, %v3666
      %v3771 = vadd.f32 %v3381, %v3671
      %v3772 = vadd.f32 %v3384, %v3674
      %v3773 = vadd.f32 %v3389, %v3679
      %v3774 = vadd.f32 %v3392, %v3682
      %v3775 = vadd.f32 %v3397, %v3687
      %v3776 = vadd.f32 %v3400, %v3690
      %v3777 = vadd.f32 %v3405, %v3695
      %v3778 = vadd.f32 %v3408, %v3698
      %v3779 = vadd.f32 %v3413, %v3703
      %v3780 = vadd.f32 %v3416, %v3706
      %v3781 = vadd.f32 %v3421, %v3711
      %v3782 = vadd.f32 %v3424, %v3714
      %v3783 = vadd.f32 %v3429, %v3719
      %v3784 = vadd.f32 %v3432, %v3722
      %v3785 = vadd.f32 %v3437, %v3727
      %v3786 = vadd.f32 %v3440, %v3730
      %v3787 = vadd.f32 %v3445, %v3735
      %v3788 = vadd.f32 %v3448, %v3738
      %vm3837 = vcmask 1046528
      %v3838 = vrot.slane %v3741, 1
      %v3839 = vrot.slane %v3742, 1
      %v3840 = vsel %vm3837, %v3838, %v3839
      %v3841 = vrot.slane %v3743, 1
      %v3842 = vsel %vm3837, %v3839, %v3841
      %v3843 = vrot.slane %v3744, 1
      %v3844 = vrot.slane %v3745, 1
      %v3845 = vsel %vm3837, %v3843, %v3844
      %v3846 = vrot.slane %v3746, 1
      %v3847 = vsel %vm3837, %v3844, %v3846
      %v3848 = vrot.slane %v3747, 1
      %v3849 = vrot.slane %v3748, 1
      %v3850 = vsel %vm3837, %v3848, %v3849
      %v3851 = vrot.slane %v3749, 1
      %v3852 = vsel %vm3837, %v3849, %v3851
      %v3853 = vrot.slane %v3750, 1
      %v3854 = vrot.slane %v3751, 1
      %v3855 = vsel %vm3837, %v3853, %v3854
      %v3856 = vrot.slane %v3752, 1
      %v3857 = vsel %vm3837, %v3854, %v3856
      %v3858 = vrot.slane %v3753, 1
      %v3859 = vrot.slane %v3754, 1
      %v3860 = vsel %vm3837, %v3858, %v3859
      %v3861 = vrot.slane %v3755, 1
      %v3862 = vsel %vm3837, %v3859, %v3861
      %v3863 = vrot.slane %v3756, 1
      %v3864 = vrot.slane %v3757, 1
      %v3865 = vsel %vm3837, %v3863, %v3864
      %v3866 = vrot.slane %v3758, 1
      %v3867 = vsel %vm3837, %v3864, %v3866
      %v3868 = vrot.slane %v3759, 1
      %v3869 = vrot.slane %v3760, 1
      %v3870 = vsel %vm3837, %v3868, %v3869
      %v3871 = vrot.slane %v3761, 1
      %v3872 = vsel %vm3837, %v3869, %v3871
      %v3873 = vrot.slane %v3762, 1
      %v3874 = vrot.slane %v3763, 1
      %v3875 = vsel %vm3837, %v3873, %v3874
      %v3876 = vrot.slane %v3764, 1
      %v3877 = vsel %vm3837, %v3874, %v3876
      %v3878 = vrot.slane %v3765, 1
      %v3879 = vrot.slane %v3766, 1
      %v3880 = vsel %vm3837, %v3878, %v3879
      %v3881 = vrot.slane %v3767, 1
      %v3882 = vsel %vm3837, %v3879, %v3881
      %v3883 = vrot.slane %v3768, 1
      %v3884 = vrot.slane %v3769, 1
      %v3885 = vsel %vm3837, %v3883, %v3884
      %v3886 = vrot.slane %v3770, 1
      %v3887 = vsel %vm3837, %v3884, %v3886
      %v3888 = vrot.slane %v3771, 1
      %v3889 = vrot.slane %v3772, 1
      %v3890 = vsel %vm3837, %v3888, %v3889
      %v3891 = vrot.slane %v3773, 1
      %v3892 = vsel %vm3837, %v3889, %v3891
      %v3893 = vrot.slane %v3774, 1
      %v3894 = vrot.slane %v3775, 1
      %v3895 = vsel %vm3837, %v3893, %v3894
      %v3896 = vrot.slane %v3776, 1
      %v3897 = vsel %vm3837, %v3894, %v3896
      %v3898 = vrot.slane %v3777, 1
      %v3899 = vrot.slane %v3778, 1
      %v3900 = vsel %vm3837, %v3898, %v3899
      %v3901 = vrot.slane %v3779, 1
      %v3902 = vsel %vm3837, %v3899, %v3901
      %v3903 = vrot.slane %v3780, 1
      %v3904 = vrot.slane %v3781, 1
      %v3905 = vsel %vm3837, %v3903, %v3904
      %v3906 = vrot.slane %v3782, 1
      %v3907 = vsel %vm3837, %v3904, %v3906
      %v3908 = vrot.slane %v3783, 1
      %v3909 = vrot.slane %v3784, 1
      %v3910 = vsel %vm3837, %v3908, %v3909
      %v3911 = vrot.slane %v3785, 1
      %v3912 = vsel %vm3837, %v3909, %v3911
      %v3913 = vrot.slane %v3786, 1
      %v3914 = vrot.slane %v3787, 1
      %v3915 = vsel %vm3837, %v3913, %v3914
      %v3916 = vrot.slane %v3788, 1
      %v3917 = vsel %vm3837, %v3914, %v3916
      %v3950 = vadd.f32 %v2839, %v3840
      %v3951 = vadd.f32 %v2840, %v3842
      %v3952 = vadd.f32 %v2841, %v3845
      %v3953 = vadd.f32 %v2842, %v3847
      %v3954 = vadd.f32 %v2843, %v3850
      %v3955 = vadd.f32 %v2844, %v3852
      %v3956 = vadd.f32 %v2845, %v3855
      %v3957 = vadd.f32 %v2846, %v3857
      %v3958 = vadd.f32 %v2847, %v3860
      %v3959 = vadd.f32 %v2848, %v3862
      %v3960 = vadd.f32 %v2849, %v3865
      %v3961 = vadd.f32 %v2850, %v3867
      %v3962 = vadd.f32 %v2851, %v3870
      %v3963 = vadd.f32 %v2852, %v3872
      %v3964 = vadd.f32 %v2853, %v3875
      %v3965 = vadd.f32 %v2854, %v3877
      %v3966 = vadd.f32 %v2855, %v3880
      %v3967 = vadd.f32 %v2856, %v3882
      %v3968 = vadd.f32 %v2857, %v3885
      %v3969 = vadd.f32 %v2858, %v3887
      %v3970 = vadd.f32 %v2859, %v3890
      %v3971 = vadd.f32 %v2860, %v3892
      %v3972 = vadd.f32 %v2861, %v3895
      %v3973 = vadd.f32 %v2862, %v3897
      %v3974 = vadd.f32 %v2863, %v3900
      %v3975 = vadd.f32 %v2864, %v3902
      %v3976 = vadd.f32 %v2865, %v3905
      %v3977 = vadd.f32 %v2866, %v3907
      %v3978 = vadd.f32 %v2867, %v3910
      %v3979 = vadd.f32 %v2868, %v3912
      %v3980 = vadd.f32 %v2869, %v3915
      %v3981 = vadd.f32 %v2870, %v3917
      %s3982 = scalar_lea.vmem %s5, 128
      %v3983 = vld [vmem:[%s3982] sm:$0xf]
      %v3984 = vld [vmem:[%s3982 + $0x4] sm:$0xf]
      %v3985 = vld [vmem:[%s3982 + $0x8] sm:$0xf]
      %v3986 = vld [vmem:[%s3982 + $0xc] sm:$0xf]
      %v3987 = vld [vmem:[%s3982 + $0x10] sm:$0xf]
      %v3988 = vld [vmem:[%s3982 + $0x14] sm:$0xf]
      %v3989 = vld [vmem:[%s3982 + $0x18] sm:$0xf]
      %v3990 = vld [vmem:[%s3982 + $0x1c] sm:$0xf]
      %v3991 = vld [vmem:[%s3982 + $0x20] sm:$0xf]
      %v3992 = vld [vmem:[%s3982 + $0x24] sm:$0xf]
      %v3993 = vld [vmem:[%s3982 + $0x28] sm:$0xf]
      %v3994 = vld [vmem:[%s3982 + $0x2c] sm:$0xf]
      %v3995 = vld [vmem:[%s3982 + $0x30] sm:$0xf]
      %v3996 = vld [vmem:[%s3982 + $0x34] sm:$0xf]
      %v3997 = vld [vmem:[%s3982 + $0x38] sm:$0xf]
      %v3998 = vld [vmem:[%s3982 + $0x3c] sm:$0xf]
      %s3999 = scalar_lea.vmem %s5, 320
      %v4000 = vld [vmem:[%s3999] sm:$0xf]
      %v4001 = vld [vmem:[%s3999 + $0x4] sm:$0xf]
      %v4002 = vld [vmem:[%s3999 + $0x8] sm:$0xf]
      %v4003 = vld [vmem:[%s3999 + $0xc] sm:$0xf]
      %v4004 = vld [vmem:[%s3999 + $0x10] sm:$0xf]
      %v4005 = vld [vmem:[%s3999 + $0x14] sm:$0xf]
      %v4006 = vld [vmem:[%s3999 + $0x18] sm:$0xf]
      %v4007 = vld [vmem:[%s3999 + $0x1c] sm:$0xf]
      %v4008 = vld [vmem:[%s3999 + $0x20] sm:$0xf]
      %v4009 = vld [vmem:[%s3999 + $0x24] sm:$0xf]
      %v4010 = vld [vmem:[%s3999 + $0x28] sm:$0xf]
      %v4011 = vld [vmem:[%s3999 + $0x2c] sm:$0xf]
      %v4012 = vld [vmem:[%s3999 + $0x30] sm:$0xf]
      %v4013 = vld [vmem:[%s3999 + $0x34] sm:$0xf]
      %v4014 = vld [vmem:[%s3999 + $0x38] sm:$0xf]
      %v4015 = vld [vmem:[%s3999 + $0x3c] sm:$0xf]
      %v4032 = vunpack.c.l.b16 %v4000
      %v4033 = vunpack.c.l.b16 %v4001
      %v4034 = vunpack.c.l.b16 %v4002
      %v4035 = vunpack.c.l.b16 %v4003
      %v4036 = vunpack.c.l.b16 %v4004
      %v4037 = vunpack.c.l.b16 %v4005
      %v4038 = vunpack.c.l.b16 %v4006
      %v4039 = vunpack.c.l.b16 %v4007
      %v4040 = vunpack.c.l.b16 %v4008
      %v4041 = vunpack.c.l.b16 %v4009
      %v4042 = vunpack.c.l.b16 %v4010
      %v4043 = vunpack.c.l.b16 %v4011
      %v4044 = vunpack.c.l.b16 %v4012
      %v4045 = vunpack.c.l.b16 %v4013
      %v4046 = vunpack.c.l.b16 %v4014
      %v4047 = vunpack.c.l.b16 %v4015
      %v4048 = vpack.c.b16 %v4033, %v4032
      %v4049 = vpack.c.b16 %v4035, %v4034
      %v4050 = vpack.c.b16 %v4037, %v4036
      %v4051 = vpack.c.b16 %v4039, %v4038
      %v4052 = vpack.c.b16 %v4041, %v4040
      %v4053 = vpack.c.b16 %v4043, %v4042
      %v4054 = vpack.c.b16 %v4045, %v4044
      %v4055 = vpack.c.b16 %v4047, %v4046
      %4064 = vmatprep.subr.bf16.mxu0 0
      %4065 = vmatpush1.bf16.msra.mxu0 %v4048
      %4066 = vmatprep.subr.bf16.mxu0 0
      %4067 = vmatpush1.bf16.msra.mxu0 %v4049
      %4068 = vmatprep.subr.bf16.mxu0 0
      %4069 = vmatpush1.bf16.msra.mxu0 %v4050
      %4070 = vmatprep.subr.bf16.mxu0 0
      %4071 = vmatpush1.bf16.msra.mxu0 %v4051
      %4072 = vmatprep.subr.bf16.mxu0 0
      %4073 = vmatpush1.bf16.msra.mxu0 %v4052
      %4074 = vmatprep.subr.bf16.mxu0 0
      %4075 = vmatpush1.bf16.msra.mxu0 %v4053
      %4076 = vmatprep.subr.bf16.mxu0 0
      %4077 = vmatpush1.bf16.msra.mxu0 %v4054
      %4078 = vmatprep.subr.bf16.mxu0 0
      %4079 = vmatpush1.bf16.msra.mxu0 %v4055
      %4080 = vmatprep.subr.bf16.mxu0 0
      %4081 = vmatpush1.bf16.msra.mxu0 0
      %4082 = vmatprep.subr.bf16.mxu0 0
      %4083 = vmatpush1.bf16.msra.mxu0 0
      %4084 = vmatprep.subr.bf16.mxu0 0
      %4085 = vmatpush1.bf16.msra.mxu0 0
      %4086 = vmatprep.subr.bf16.mxu0 0
      %4087 = vmatpush1.bf16.msra.mxu0 0
      %4088 = vmatprep.subr.bf16.mxu0 0
      %4089 = vmatpush1.bf16.msra.mxu0 0
      %4090 = vmatprep.subr.bf16.mxu0 0
      %4091 = vmatpush1.bf16.msra.mxu0 0
      %4092 = vmatprep.subr.bf16.mxu0 0
      %4093 = vmatpush1.bf16.msra.mxu0 0
      %4094 = vmatprep.subr.bf16.mxu0 0
      %4095 = vmatpush1.bf16.msra.mxu0 0
      %4096 = vmatprep.mubr.bf16.mxu0 0
      %4097 = vmatmul.mubr.bf16.gmra.mrb[0].mxu0 %v1956
      %v4098 = vpop.f32.mrb[0].mxu0
      %v4099 = vadd.f32 0.0, %v4098
      %v4100 = vpop.f32.mrb[0].mxu0
      %v4101 = vpop.f32.mrb[0].mxu0
      %v4102 = vadd.f32 0.0, %v4101
      %v4103 = vpop.f32.mrb[0].mxu0
      %4104 = vmatprep.mubr.bf16.mxu0 0
      %4105 = vmatmul.mubr.bf16.gmra.mrb[0].mxu0 %v1958
      %v4106 = vpop.f32.mrb[0].mxu0
      %v4107 = vadd.f32 0.0, %v4106
      %v4108 = vpop.f32.mrb[0].mxu0
      %v4109 = vpop.f32.mrb[0].mxu0
      %v4110 = vadd.f32 0.0, %v4109
      %v4111 = vpop.f32.mrb[0].mxu0
      %4112 = vmatprep.mubr.bf16.mxu0 0
      %4113 = vmatmul.mubr.bf16.gmra.mrb[0].mxu0 %v1960
      %v4114 = vpop.f32.mrb[0].mxu0
      %v4115 = vadd.f32 0.0, %v4114
      %v4116 = vpop.f32.mrb[0].mxu0
      %v4117 = vpop.f32.mrb[0].mxu0
      %v4118 = vadd.f32 0.0, %v4117
      %v4119 = vpop.f32.mrb[0].mxu0
      %4120 = vmatprep.mubr.bf16.mxu0 0
      %4121 = vmatmul.mubr.bf16.gmra.mrb[0].mxu0 %v1962
      %v4122 = vpop.f32.mrb[0].mxu0
      %v4123 = vadd.f32 0.0, %v4122
      %v4124 = vpop.f32.mrb[0].mxu0
      %v4125 = vpop.f32.mrb[0].mxu0
      %v4126 = vadd.f32 0.0, %v4125
      %v4127 = vpop.f32.mrb[0].mxu0
      %4128 = vmatprep.mubr.bf16.mxu0 0
      %4129 = vmatmul.mubr.bf16.gmra.mrb[0].mxu0 %v1964
      %v4130 = vpop.f32.mrb[0].mxu0
      %v4131 = vadd.f32 0.0, %v4130
      %v4132 = vpop.f32.mrb[0].mxu0
      %v4133 = vpop.f32.mrb[0].mxu0
      %v4134 = vadd.f32 0.0, %v4133
      %v4135 = vpop.f32.mrb[0].mxu0
      %4136 = vmatprep.mubr.bf16.mxu0 0
      %4137 = vmatmul.mubr.bf16.gmra.mrb[0].mxu0 %v1966
      %v4138 = vpop.f32.mrb[0].mxu0
      %v4139 = vadd.f32 0.0, %v4138
      %v4140 = vpop.f32.mrb[0].mxu0
      %v4141 = vpop.f32.mrb[0].mxu0
      %v4142 = vadd.f32 0.0, %v4141
      %v4143 = vpop.f32.mrb[0].mxu0
      %4144 = vmatprep.mubr.bf16.mxu0 0
      %4145 = vmatmul.mubr.bf16.gmra.mrb[0].mxu0 %v1968
      %v4146 = vpop.f32.mrb[0].mxu0
      %v4147 = vadd.f32 0.0, %v4146
      %v4148 = vpop.f32.mrb[0].mxu0
      %v4149 = vpop.f32.mrb[0].mxu0
      %v4150 = vadd.f32 0.0, %v4149
      %v4151 = vpop.f32.mrb[0].mxu0
      %4152 = vmatprep.mubr.bf16.mxu0 0
      %4153 = vmatmul.mubr.bf16.gmra.mrb[0].mxu0 %v1970
      %v4154 = vpop.f32.mrb[0].mxu0
      %v4155 = vadd.f32 0.0, %v4154
      %v4156 = vpop.f32.mrb[0].mxu0
      %v4157 = vpop.f32.mrb[0].mxu0
      %v4158 = vadd.f32 0.0, %v4157
      %v4159 = vpop.f32.mrb[0].mxu0
      %4160 = vmatprep.mubr.bf16.mxu0 0
      %4161 = vmatmul.mubr.bf16.gmra.mrb[0].mxu0 %v1972
      %v4162 = vpop.f32.mrb[0].mxu0
      %v4163 = vadd.f32 0.0, %v4162
      %v4164 = vpop.f32.mrb[0].mxu0
      %v4165 = vpop.f32.mrb[0].mxu0
      %v4166 = vadd.f32 0.0, %v4165
      %v4167 = vpop.f32.mrb[0].mxu0
      %4168 = vmatprep.mubr.bf16.mxu0 0
      %4169 = vmatmul.mubr.bf16.gmra.mrb[0].mxu0 %v1974
      %v4170 = vpop.f32.mrb[0].mxu0
      %v4171 = vadd.f32 0.0, %v4170
      %v4172 = vpop.f32.mrb[0].mxu0
      %v4173 = vpop.f32.mrb[0].mxu0
      %v4174 = vadd.f32 0.0, %v4173
      %v4175 = vpop.f32.mrb[0].mxu0
      %4176 = vmatprep.mubr.bf16.mxu0 0
      %4177 = vmatmul.mubr.bf16.gmra.mrb[0].mxu0 %v1976
      %v4178 = vpop.f32.mrb[0].mxu0
      %v4179 = vadd.f32 0.0, %v4178
      %v4180 = vpop.f32.mrb[0].mxu0
      %v4181 = vpop.f32.mrb[0].mxu0
      %v4182 = vadd.f32 0.0, %v4181
      %v4183 = vpop.f32.mrb[0].mxu0
      %4184 = vmatprep.mubr.bf16.mxu0 0
      %4185 = vmatmul.mubr.bf16.gmra.mrb[0].mxu0 %v1978
      %v4186 = vpop.f32.mrb[0].mxu0
      %v4187 = vadd.f32 0.0, %v4186
      %v4188 = vpop.f32.mrb[0].mxu0
      %v4189 = vpop.f32.mrb[0].mxu0
      %v4190 = vadd.f32 0.0, %v4189
      %v4191 = vpop.f32.mrb[0].mxu0
      %4192 = vmatprep.mubr.bf16.mxu0 0
      %4193 = vmatmul.mubr.bf16.gmra.mrb[0].mxu0 %v1980
      %v4194 = vpop.f32.mrb[0].mxu0
      %v4195 = vadd.f32 0.0, %v4194
      %v4196 = vpop.f32.mrb[0].mxu0
      %v4197 = vpop.f32.mrb[0].mxu0
      %v4198 = vadd.f32 0.0, %v4197
      %v4199 = vpop.f32.mrb[0].mxu0
      %4200 = vmatprep.mubr.bf16.mxu0 0
      %4201 = vmatmul.mubr.bf16.gmra.mrb[0].mxu0 %v1982
      %v4202 = vpop.f32.mrb[0].mxu0
      %v4203 = vadd.f32 0.0, %v4202
      %v4204 = vpop.f32.mrb[0].mxu0
      %v4205 = vpop.f32.mrb[0].mxu0
      %v4206 = vadd.f32 0.0, %v4205
      %v4207 = vpop.f32.mrb[0].mxu0
      %4208 = vmatprep.mubr.bf16.mxu0 0
      %4209 = vmatmul.mubr.bf16.gmra.mrb[0].mxu0 %v1984
      %v4210 = vpop.f32.mrb[0].mxu0
      %v4211 = vadd.f32 0.0, %v4210
      %v4212 = vpop.f32.mrb[0].mxu0
      %v4213 = vpop.f32.mrb[0].mxu0
      %v4214 = vadd.f32 0.0, %v4213
      %v4215 = vpop.f32.mrb[0].mxu0
      %4216 = vmatprep.mubr.bf16.mxu0 0
      %4217 = vmatmul.mubr.bf16.gmra.mrb[0].mxu0 %v1986
      %v4218 = vpop.f32.mrb[0].mxu0
      %v4219 = vadd.f32 0.0, %v4218
      %v4220 = vpop.f32.mrb[0].mxu0
      %v4221 = vpop.f32.mrb[0].mxu0
      %v4222 = vadd.f32 0.0, %v4221
      %v4223 = vpop.f32.mrb[0].mxu0
      %4224 = vmatprep.mubr.bf16.mxu0 0
      %4225 = vmatmul.mubr.bf16.gmra.mrb[0].mxu0 %v1988
      %v4226 = vpop.f32.mrb[0].mxu0
      %v4227 = vadd.f32 0.0, %v4226
      %v4228 = vpop.f32.mrb[0].mxu0
      %v4229 = vpop.f32.mrb[0].mxu0
      %v4230 = vadd.f32 0.0, %v4229
      %v4231 = vpop.f32.mrb[0].mxu0
      %4232 = vmatprep.mubr.bf16.mxu0 0
      %4233 = vmatmul.mubr.bf16.gmra.mrb[0].mxu0 %v1990
      %v4234 = vpop.f32.mrb[0].mxu0
      %v4235 = vadd.f32 0.0, %v4234
      %v4236 = vpop.f32.mrb[0].mxu0
      %v4237 = vpop.f32.mrb[0].mxu0
      %v4238 = vadd.f32 0.0, %v4237
      %v4239 = vpop.f32.mrb[0].mxu0
      %4240 = vmatprep.mubr.bf16.mxu0 0
      %4241 = vmatmul.mubr.bf16.gmra.mrb[0].mxu0 %v1992
      %v4242 = vpop.f32.mrb[0].mxu0
      %v4243 = vadd.f32 0.0, %v4242
      %v4244 = vpop.f32.mrb[0].mxu0
      %v4245 = vpop.f32.mrb[0].mxu0
      %v4246 = vadd.f32 0.0, %v4245
      %v4247 = vpop.f32.mrb[0].mxu0
      %4248 = vmatprep.mubr.bf16.mxu0 0
      %4249 = vmatmul.mubr.bf16.gmra.mrb[0].mxu0 %v1994
      %v4250 = vpop.f32.mrb[0].mxu0
      %v4251 = vadd.f32 0.0, %v4250
      %v4252 = vpop.f32.mrb[0].mxu0
      %v4253 = vpop.f32.mrb[0].mxu0
      %v4254 = vadd.f32 0.0, %v4253
      %v4255 = vpop.f32.mrb[0].mxu0
      %4256 = vmatprep.mubr.bf16.mxu0 0
      %4257 = vmatmul.mubr.bf16.gmra.mrb[0].mxu0 %v1996
      %v4258 = vpop.f32.mrb[0].mxu0
      %v4259 = vadd.f32 0.0, %v4258
      %v4260 = vpop.f32.mrb[0].mxu0
      %v4261 = vpop.f32.mrb[0].mxu0
      %v4262 = vadd.f32 0.0, %v4261
      %v4263 = vpop.f32.mrb[0].mxu0
      %4264 = vmatprep.mubr.bf16.mxu0 0
      %4265 = vmatmul.mubr.bf16.gmra.mrb[0].mxu0 %v1998
      %v4266 = vpop.f32.mrb[0].mxu0
      %v4267 = vadd.f32 0.0, %v4266
      %v4268 = vpop.f32.mrb[0].mxu0
      %v4269 = vpop.f32.mrb[0].mxu0
      %v4270 = vadd.f32 0.0, %v4269
      %v4271 = vpop.f32.mrb[0].mxu0
      %4272 = vmatprep.mubr.bf16.mxu0 0
      %4273 = vmatmul.mubr.bf16.gmra.mrb[0].mxu0 %v2000
      %v4274 = vpop.f32.mrb[0].mxu0
      %v4275 = vadd.f32 0.0, %v4274
      %v4276 = vpop.f32.mrb[0].mxu0
      %v4277 = vpop.f32.mrb[0].mxu0
      %v4278 = vadd.f32 0.0, %v4277
      %v4279 = vpop.f32.mrb[0].mxu0
      %4280 = vmatprep.mubr.bf16.mxu0 0
      %4281 = vmatmul.mubr.bf16.gmra.mrb[0].mxu0 %v2002
      %v4282 = vpop.f32.mrb[0].mxu0
      %v4283 = vadd.f32 0.0, %v4282
      %v4284 = vpop.f32.mrb[0].mxu0
      %v4285 = vpop.f32.mrb[0].mxu0
      %v4286 = vadd.f32 0.0, %v4285
      %v4287 = vpop.f32.mrb[0].mxu0
      %4288 = vdwg.mxu0
      %v4305 = vunpack.c.l.b16 %v3983
      %v4306 = vunpack.c.l.b16 %v3984
      %v4307 = vunpack.c.l.b16 %v3985
      %v4308 = vunpack.c.l.b16 %v3986
      %v4309 = vunpack.c.l.b16 %v3987
      %v4310 = vunpack.c.l.b16 %v3988
      %v4311 = vunpack.c.l.b16 %v3989
      %v4312 = vunpack.c.l.b16 %v3990
      %v4313 = vunpack.c.l.b16 %v3991
      %v4314 = vunpack.c.l.b16 %v3992
      %v4315 = vunpack.c.l.b16 %v3993
      %v4316 = vunpack.c.l.b16 %v3994
      %v4317 = vunpack.c.l.b16 %v3995
      %v4318 = vunpack.c.l.b16 %v3996
      %v4319 = vunpack.c.l.b16 %v3997
      %v4320 = vunpack.c.l.b16 %v3998
      %v4321 = vpack.c.b16 %v4306, %v4305
      %v4322 = vpack.c.b16 %v4308, %v4307
      %v4323 = vpack.c.b16 %v4310, %v4309
      %v4324 = vpack.c.b16 %v4312, %v4311
      %v4325 = vpack.c.b16 %v4314, %v4313
      %v4326 = vpack.c.b16 %v4316, %v4315
      %v4327 = vpack.c.b16 %v4318, %v4317
      %v4328 = vpack.c.b16 %v4320, %v4319
      %4337 = vmatprep.subr.bf16.mxu0 0
      %4338 = vmatpush1.bf16.msra.mxu0 %v4321
      %4339 = vmatprep.subr.bf16.mxu0 0
      %4340 = vmatpush1.bf16.msra.mxu0 %v4322
      %4341 = vmatprep.subr.bf16.mxu0 0
      %4342 = vmatpush1.bf16.msra.mxu0 %v4323
      %4343 = vmatprep.subr.bf16.mxu0 0
      %4344 = vmatpush1.bf16.msra.mxu0 %v4324
      %4345 = vmatprep.subr.bf16.mxu0 0
      %4346 = vmatpush1.bf16.msra.mxu0 %v4325
      %4347 = vmatprep.subr.bf16.mxu0 0
      %4348 = vmatpush1.bf16.msra.mxu0 %v4326
      %4349 = vmatprep.subr.bf16.mxu0 0
      %4350 = vmatpush1.bf16.msra.mxu0 %v4327
      %4351 = vmatprep.subr.bf16.mxu0 0
      %4352 = vmatpush1.bf16.msra.mxu0 %v4328
      %4353 = vmatprep.subr.bf16.mxu0 0
      %4354 = vmatpush1.bf16.msra.mxu0 0
      %4355 = vmatprep.subr.bf16.mxu0 0
      %4356 = vmatpush1.bf16.msra.mxu0 0
      %4357 = vmatprep.subr.bf16.mxu0 0
      %4358 = vmatpush1.bf16.msra.mxu0 0
      %4359 = vmatprep.subr.bf16.mxu0 0
      %4360 = vmatpush1.bf16.msra.mxu0 0
      %4361 = vmatprep.subr.bf16.mxu0 0
      %4362 = vmatpush1.bf16.msra.mxu0 0
      %4363 = vmatprep.subr.bf16.mxu0 0
      %4364 = vmatpush1.bf16.msra.mxu0 0
      %4365 = vmatprep.subr.bf16.mxu0 0
      %4366 = vmatpush1.bf16.msra.mxu0 0
      %4367 = vmatprep.subr.bf16.mxu0 0
      %4368 = vmatpush1.bf16.msra.mxu0 0
      %4369 = vmatprep.mubr.bf16.mxu0 0
      %4370 = vmatmul.mubr.bf16.gmra.mrb[0].mxu0 %v1869
      %v4371 = vpop.f32.mrb[0].mxu0
      %v4372 = vadd.f32 %v4099, %v4371
      %v4373 = vpop.f32.mrb[0].mxu0
      %v4374 = vpop.f32.mrb[0].mxu0
      %v4375 = vadd.f32 %v4102, %v4374
      %v4376 = vpop.f32.mrb[0].mxu0
      %4377 = vmatprep.mubr.bf16.mxu0 0
      %4378 = vmatmul.mubr.bf16.gmra.mrb[0].mxu0 %v1870
      %v4379 = vpop.f32.mrb[0].mxu0
      %v4380 = vadd.f32 %v4107, %v4379
      %v4381 = vpop.f32.mrb[0].mxu0
      %v4382 = vpop.f32.mrb[0].mxu0
      %v4383 = vadd.f32 %v4110, %v4382
      %v4384 = vpop.f32.mrb[0].mxu0
      %4385 = vmatprep.mubr.bf16.mxu0 0
      %4386 = vmatmul.mubr.bf16.gmra.mrb[0].mxu0 %v1871
      %v4387 = vpop.f32.mrb[0].mxu0
      %v4388 = vadd.f32 %v4115, %v4387
      %v4389 = vpop.f32.mrb[0].mxu0
      %v4390 = vpop.f32.mrb[0].mxu0
      %v4391 = vadd.f32 %v4118, %v4390
      %v4392 = vpop.f32.mrb[0].mxu0
      %4393 = vmatprep.mubr.bf16.mxu0 0
      %4394 = vmatmul.mubr.bf16.gmra.mrb[0].mxu0 %v1872
      %v4395 = vpop.f32.mrb[0].mxu0
      %v4396 = vadd.f32 %v4123, %v4395
      %v4397 = vpop.f32.mrb[0].mxu0
      %v4398 = vpop.f32.mrb[0].mxu0
      %v4399 = vadd.f32 %v4126, %v4398
      %v4400 = vpop.f32.mrb[0].mxu0
      %4401 = vmatprep.mubr.bf16.mxu0 0
      %4402 = vmatmul.mubr.bf16.gmra.mrb[0].mxu0 %v1873
      %v4403 = vpop.f32.mrb[0].mxu0
      %v4404 = vadd.f32 %v4131, %v4403
      %v4405 = vpop.f32.mrb[0].mxu0
      %v4406 = vpop.f32.mrb[0].mxu0
      %v4407 = vadd.f32 %v4134, %v4406
      %v4408 = vpop.f32.mrb[0].mxu0
      %4409 = vmatprep.mubr.bf16.mxu0 0
      %4410 = vmatmul.mubr.bf16.gmra.mrb[0].mxu0 %v1874
      %v4411 = vpop.f32.mrb[0].mxu0
      %v4412 = vadd.f32 %v4139, %v4411
      %v4413 = vpop.f32.mrb[0].mxu0
      %v4414 = vpop.f32.mrb[0].mxu0
      %v4415 = vadd.f32 %v4142, %v4414
      %v4416 = vpop.f32.mrb[0].mxu0
      %4417 = vmatprep.mubr.bf16.mxu0 0
      %4418 = vmatmul.mubr.bf16.gmra.mrb[0].mxu0 %v1875
      %v4419 = vpop.f32.mrb[0].mxu0
      %v4420 = vadd.f32 %v4147, %v4419
      %v4421 = vpop.f32.mrb[0].mxu0
      %v4422 = vpop.f32.mrb[0].mxu0
      %v4423 = vadd.f32 %v4150, %v4422
      %v4424 = vpop.f32.mrb[0].mxu0
      %4425 = vmatprep.mubr.bf16.mxu0 0
      %4426 = vmatmul.mubr.bf16.gmra.mrb[0].mxu0 %v1876
      %v4427 = vpop.f32.mrb[0].mxu0
      %v4428 = vadd.f32 %v4155, %v4427
      %v4429 = vpop.f32.mrb[0].mxu0
      %v4430 = vpop.f32.mrb[0].mxu0
      %v4431 = vadd.f32 %v4158, %v4430
      %v4432 = vpop.f32.mrb[0].mxu0
      %4433 = vmatprep.mubr.bf16.mxu0 0
      %4434 = vmatmul.mubr.bf16.gmra.mrb[0].mxu0 %v1877
      %v4435 = vpop.f32.mrb[0].mxu0
      %v4436 = vadd.f32 %v4163, %v4435
      %v4437 = vpop.f32.mrb[0].mxu0
      %v4438 = vpop.f32.mrb[0].mxu0
      %v4439 = vadd.f32 %v4166, %v4438
      %v4440 = vpop.f32.mrb[0].mxu0
      %4441 = vmatprep.mubr.bf16.mxu0 0
      %4442 = vmatmul.mubr.bf16.gmra.mrb[0].mxu0 %v1878
      %v4443 = vpop.f32.mrb[0].mxu0
      %v4444 = vadd.f32 %v4171, %v4443
      %v4445 = vpop.f32.mrb[0].mxu0
      %v4446 = vpop.f32.mrb[0].mxu0
      %v4447 = vadd.f32 %v4174, %v4446
      %v4448 = vpop.f32.mrb[0].mxu0
      %4449 = vmatprep.mubr.bf16.mxu0 0
      %4450 = vmatmul.mubr.bf16.gmra.mrb[0].mxu0 %v1879
      %v4451 = vpop.f32.mrb[0].mxu0
      %v4452 = vadd.f32 %v4179, %v4451
      %v4453 = vpop.f32.mrb[0].mxu0
      %v4454 = vpop.f32.mrb[0].mxu0
      %v4455 = vadd.f32 %v4182, %v4454
      %v4456 = vpop.f32.mrb[0].mxu0
      %4457 = vmatprep.mubr.bf16.mxu0 0
      %4458 = vmatmul.mubr.bf16.gmra.mrb[0].mxu0 %v1880
      %v4459 = vpop.f32.mrb[0].mxu0
      %v4460 = vadd.f32 %v4187, %v4459
      %v4461 = vpop.f32.mrb[0].mxu0
      %v4462 = vpop.f32.mrb[0].mxu0
      %v4463 = vadd.f32 %v4190, %v4462
      %v4464 = vpop.f32.mrb[0].mxu0
      %4465 = vmatprep.mubr.bf16.mxu0 0
      %4466 = vmatmul.mubr.bf16.gmra.mrb[0].mxu0 %v1881
      %v4467 = vpop.f32.mrb[0].mxu0
      %v4468 = vadd.f32 %v4195, %v4467
      %v4469 = vpop.f32.mrb[0].mxu0
      %v4470 = vpop.f32.mrb[0].mxu0
      %v4471 = vadd.f32 %v4198, %v4470
      %v4472 = vpop.f32.mrb[0].mxu0
      %4473 = vmatprep.mubr.bf16.mxu0 0
      %4474 = vmatmul.mubr.bf16.gmra.mrb[0].mxu0 %v1882
      %v4475 = vpop.f32.mrb[0].mxu0
      %v4476 = vadd.f32 %v4203, %v4475
      %v4477 = vpop.f32.mrb[0].mxu0
      %v4478 = vpop.f32.mrb[0].mxu0
      %v4479 = vadd.f32 %v4206, %v4478
      %v4480 = vpop.f32.mrb[0].mxu0
      %4481 = vmatprep.mubr.bf16.mxu0 0
      %4482 = vmatmul.mubr.bf16.gmra.mrb[0].mxu0 %v1883
      %v4483 = vpop.f32.mrb[0].mxu0
      %v4484 = vadd.f32 %v4211, %v4483
      %v4485 = vpop.f32.mrb[0].mxu0
      %v4486 = vpop.f32.mrb[0].mxu0
      %v4487 = vadd.f32 %v4214, %v4486
      %v4488 = vpop.f32.mrb[0].mxu0
      %4489 = vmatprep.mubr.bf16.mxu0 0
      %4490 = vmatmul.mubr.bf16.gmra.mrb[0].mxu0 %v1884
      %v4491 = vpop.f32.mrb[0].mxu0
      %v4492 = vadd.f32 %v4219, %v4491
      %v4493 = vpop.f32.mrb[0].mxu0
      %v4494 = vpop.f32.mrb[0].mxu0
      %v4495 = vadd.f32 %v4222, %v4494
      %v4496 = vpop.f32.mrb[0].mxu0
      %4497 = vmatprep.mubr.bf16.mxu0 0
      %4498 = vmatmul.mubr.bf16.gmra.mrb[0].mxu0 %v1885
      %v4499 = vpop.f32.mrb[0].mxu0
      %v4500 = vadd.f32 %v4227, %v4499
      %v4501 = vpop.f32.mrb[0].mxu0
      %v4502 = vpop.f32.mrb[0].mxu0
      %v4503 = vadd.f32 %v4230, %v4502
      %v4504 = vpop.f32.mrb[0].mxu0
      %4505 = vmatprep.mubr.bf16.mxu0 0
      %4506 = vmatmul.mubr.bf16.gmra.mrb[0].mxu0 %v1886
      %v4507 = vpop.f32.mrb[0].mxu0
      %v4508 = vadd.f32 %v4235, %v4507
      %v4509 = vpop.f32.mrb[0].mxu0
      %v4510 = vpop.f32.mrb[0].mxu0
      %v4511 = vadd.f32 %v4238, %v4510
      %v4512 = vpop.f32.mrb[0].mxu0
      %4513 = vmatprep.mubr.bf16.mxu0 0
      %4514 = vmatmul.mubr.bf16.gmra.mrb[0].mxu0 %v1887
      %v4515 = vpop.f32.mrb[0].mxu0
      %v4516 = vadd.f32 %v4243, %v4515
      %v4517 = vpop.f32.mrb[0].mxu0
      %v4518 = vpop.f32.mrb[0].mxu0
      %v4519 = vadd.f32 %v4246, %v4518
      %v4520 = vpop.f32.mrb[0].mxu0
      %4521 = vmatprep.mubr.bf16.mxu0 0
      %4522 = vmatmul.mubr.bf16.gmra.mrb[0].mxu0 %v1888
      %v4523 = vpop.f32.mrb[0].mxu0
      %v4524 = vadd.f32 %v4251, %v4523
      %v4525 = vpop.f32.mrb[0].mxu0
      %v4526 = vpop.f32.mrb[0].mxu0
      %v4527 = vadd.f32 %v4254, %v4526
      %v4528 = vpop.f32.mrb[0].mxu0
      %4529 = vmatprep.mubr.bf16.mxu0 0
      %4530 = vmatmul.mubr.bf16.gmra.mrb[0].mxu0 %v1889
      %v4531 = vpop.f32.mrb[0].mxu0
      %v4532 = vadd.f32 %v4259, %v4531
      %v4533 = vpop.f32.mrb[0].mxu0
      %v4534 = vpop.f32.mrb[0].mxu0
      %v4535 = vadd.f32 %v4262, %v4534
      %v4536 = vpop.f32.mrb[0].mxu0
      %4537 = vmatprep.mubr.bf16.mxu0 0
      %4538 = vmatmul.mubr.bf16.gmra.mrb[0].mxu0 %v1890
      %v4539 = vpop.f32.mrb[0].mxu0
      %v4540 = vadd.f32 %v4267, %v4539
      %v4541 = vpop.f32.mrb[0].mxu0
      %v4542 = vpop.f32.mrb[0].mxu0
      %v4543 = vadd.f32 %v4270, %v4542
      %v4544 = vpop.f32.mrb[0].mxu0
      %4545 = vmatprep.mubr.bf16.mxu0 0
      %4546 = vmatmul.mubr.bf16.gmra.mrb[0].mxu0 %v1891
      %v4547 = vpop.f32.mrb[0].mxu0
      %v4548 = vadd.f32 %v4275, %v4547
      %v4549 = vpop.f32.mrb[0].mxu0
      %v4550 = vpop.f32.mrb[0].mxu0
      %v4551 = vadd.f32 %v4278, %v4550
      %v4552 = vpop.f32.mrb[0].mxu0
      %4553 = vmatprep.mubr.bf16.mxu0 0
      %4554 = vmatmul.mubr.bf16.gmra.mrb[0].mxu0 %v1892
      %v4555 = vpop.f32.mrb[0].mxu0
      %v4556 = vadd.f32 %v4283, %v4555
      %v4557 = vpop.f32.mrb[0].mxu0
      %v4558 = vpop.f32.mrb[0].mxu0
      %v4559 = vadd.f32 %v4286, %v4558
      %v4560 = vpop.f32.mrb[0].mxu0
      %4561 = vdwg.mxu0
      %s4562 = scalar_lea.vmem %s5, 512
      %v4563 = vld [vmem:[%s4562] sm:$0xf]
      %v4564 = vld [vmem:[%s4562 + $0x4] sm:$0xf]
      %v4565 = vld [vmem:[%s4562 + $0x8] sm:$0xf]
      %v4566 = vld [vmem:[%s4562 + $0xc] sm:$0xf]
      %v4567 = vld [vmem:[%s4562 + $0x10] sm:$0xf]
      %v4568 = vld [vmem:[%s4562 + $0x14] sm:$0xf]
      %v4569 = vld [vmem:[%s4562 + $0x18] sm:$0xf]
      %v4570 = vld [vmem:[%s4562 + $0x1c] sm:$0xf]
      %v4571 = vld [vmem:[%s4562 + $0x20] sm:$0xf]
      %v4572 = vld [vmem:[%s4562 + $0x24] sm:$0xf]
      %v4573 = vld [vmem:[%s4562 + $0x28] sm:$0xf]
      %v4574 = vld [vmem:[%s4562 + $0x2c] sm:$0xf]
      %v4575 = vld [vmem:[%s4562 + $0x30] sm:$0xf]
      %v4576 = vld [vmem:[%s4562 + $0x34] sm:$0xf]
      %v4577 = vld [vmem:[%s4562 + $0x38] sm:$0xf]
      %v4578 = vld [vmem:[%s4562 + $0x3c] sm:$0xf]
      %v4595 = vunpack.c.l.b16 %v4563
      %v4596 = vunpack.c.l.b16 %v4564
      %v4597 = vunpack.c.l.b16 %v4565
      %v4598 = vunpack.c.l.b16 %v4566
      %v4599 = vunpack.c.l.b16 %v4567
      %v4600 = vunpack.c.l.b16 %v4568
      %v4601 = vunpack.c.l.b16 %v4569
      %v4602 = vunpack.c.l.b16 %v4570
      %v4603 = vunpack.c.l.b16 %v4571
      %v4604 = vunpack.c.l.b16 %v4572
      %v4605 = vunpack.c.l.b16 %v4573
      %v4606 = vunpack.c.l.b16 %v4574
      %v4607 = vunpack.c.l.b16 %v4575
      %v4608 = vunpack.c.l.b16 %v4576
      %v4609 = vunpack.c.l.b16 %v4577
      %v4610 = vunpack.c.l.b16 %v4578
      %v4611 = vpack.c.b16 %v4596, %v4595
      %v4612 = vpack.c.b16 %v4598, %v4597
      %v4613 = vpack.c.b16 %v4600, %v4599
      %v4614 = vpack.c.b16 %v4602, %v4601
      %v4615 = vpack.c.b16 %v4604, %v4603
      %v4616 = vpack.c.b16 %v4606, %v4605
      %v4617 = vpack.c.b16 %v4608, %v4607
      %v4618 = vpack.c.b16 %v4610, %v4609
      %4627 = vmatprep.subr.bf16.mxu0 0
      %4628 = vmatpush1.bf16.msra.mxu0 %v4611
      %4629 = vmatprep.subr.bf16.mxu0 0
      %4630 = vmatpush1.bf16.msra.mxu0 %v4612
      %4631 = vmatprep.subr.bf16.mxu0 0
      %4632 = vmatpush1.bf16.msra.mxu0 %v4613
      %4633 = vmatprep.subr.bf16.mxu0 0
      %4634 = vmatpush1.bf16.msra.mxu0 %v4614
      %4635 = vmatprep.subr.bf16.mxu0 0
      %4636 = vmatpush1.bf16.msra.mxu0 %v4615
      %4637 = vmatprep.subr.bf16.mxu0 0
      %4638 = vmatpush1.bf16.msra.mxu0 %v4616
      %4639 = vmatprep.subr.bf16.mxu0 0
      %4640 = vmatpush1.bf16.msra.mxu0 %v4617
      %4641 = vmatprep.subr.bf16.mxu0 0
      %4642 = vmatpush1.bf16.msra.mxu0 %v4618
      %4643 = vmatprep.subr.bf16.mxu0 0
      %4644 = vmatpush1.bf16.msra.mxu0 0
      %4645 = vmatprep.subr.bf16.mxu0 0
      %4646 = vmatpush1.bf16.msra.mxu0 0
      %4647 = vmatprep.subr.bf16.mxu0 0
      %4648 = vmatpush1.bf16.msra.mxu0 0
      %4649 = vmatprep.subr.bf16.mxu0 0
      %4650 = vmatpush1.bf16.msra.mxu0 0
      %4651 = vmatprep.subr.bf16.mxu0 0
      %4652 = vmatpush1.bf16.msra.mxu0 0
      %4653 = vmatprep.subr.bf16.mxu0 0
      %4654 = vmatpush1.bf16.msra.mxu0 0
      %4655 = vmatprep.subr.bf16.mxu0 0
      %4656 = vmatpush1.bf16.msra.mxu0 0
      %4657 = vmatprep.subr.bf16.mxu0 0
      %4658 = vmatpush1.bf16.msra.mxu0 0
      %4659 = vmatprep.mubr.bf16.mxu0 0
      %4660 = vmatmul.mubr.bf16.gmra.mrb[0].mxu0 %v2541
      %v4661 = vpop.f32.mrb[0].mxu0
      %v4662 = vadd.f32 0.0, %v4661
      %v4663 = vpop.f32.mrb[0].mxu0
      %v4664 = vpop.f32.mrb[0].mxu0
      %v4665 = vadd.f32 0.0, %v4664
      %v4666 = vpop.f32.mrb[0].mxu0
      %4667 = vmatprep.mubr.bf16.mxu0 0
      %4668 = vmatmul.mubr.bf16.gmra.mrb[0].mxu0 %v2542
      %v4669 = vpop.f32.mrb[0].mxu0
      %v4670 = vadd.f32 0.0, %v4669
      %v4671 = vpop.f32.mrb[0].mxu0
      %v4672 = vpop.f32.mrb[0].mxu0
      %v4673 = vadd.f32 0.0, %v4672
      %v4674 = vpop.f32.mrb[0].mxu0
      %4675 = vmatprep.mubr.bf16.mxu0 0
      %4676 = vmatmul.mubr.bf16.gmra.mrb[0].mxu0 %v2543
      %v4677 = vpop.f32.mrb[0].mxu0
      %v4678 = vadd.f32 0.0, %v4677
      %v4679 = vpop.f32.mrb[0].mxu0
      %v4680 = vpop.f32.mrb[0].mxu0
      %v4681 = vadd.f32 0.0, %v4680
      %v4682 = vpop.f32.mrb[0].mxu0
      %4683 = vmatprep.mubr.bf16.mxu0 0
      %4684 = vmatmul.mubr.bf16.gmra.mrb[0].mxu0 %v2544
      %v4685 = vpop.f32.mrb[0].mxu0
      %v4686 = vadd.f32 0.0, %v4685
      %v4687 = vpop.f32.mrb[0].mxu0
      %v4688 = vpop.f32.mrb[0].mxu0
      %v4689 = vadd.f32 0.0, %v4688
      %v4690 = vpop.f32.mrb[0].mxu0
      %4691 = vmatprep.mubr.bf16.mxu0 0
      %4692 = vmatmul.mubr.bf16.gmra.mrb[0].mxu0 %v2545
      %v4693 = vpop.f32.mrb[0].mxu0
      %v4694 = vadd.f32 0.0, %v4693
      %v4695 = vpop.f32.mrb[0].mxu0
      %v4696 = vpop.f32.mrb[0].mxu0
      %v4697 = vadd.f32 0.0, %v4696
      %v4698 = vpop.f32.mrb[0].mxu0
      %4699 = vmatprep.mubr.bf16.mxu0 0
      %4700 = vmatmul.mubr.bf16.gmra.mrb[0].mxu0 %v2546
      %v4701 = vpop.f32.mrb[0].mxu0
      %v4702 = vadd.f32 0.0, %v4701
      %v4703 = vpop.f32.mrb[0].mxu0
      %v4704 = vpop.f32.mrb[0].mxu0
      %v4705 = vadd.f32 0.0, %v4704
      %v4706 = vpop.f32.mrb[0].mxu0
      %4707 = vmatprep.mubr.bf16.mxu0 0
      %4708 = vmatmul.mubr.bf16.gmra.mrb[0].mxu0 %v2547
      %v4709 = vpop.f32.mrb[0].mxu0
      %v4710 = vadd.f32 0.0, %v4709
      %v4711 = vpop.f32.mrb[0].mxu0
      %v4712 = vpop.f32.mrb[0].mxu0
      %v4713 = vadd.f32 0.0, %v4712
      %v4714 = vpop.f32.mrb[0].mxu0
      %4715 = vmatprep.mubr.bf16.mxu0 0
      %4716 = vmatmul.mubr.bf16.gmra.mrb[0].mxu0 %v2548
      %v4717 = vpop.f32.mrb[0].mxu0
      %v4718 = vadd.f32 0.0, %v4717
      %v4719 = vpop.f32.mrb[0].mxu0
      %v4720 = vpop.f32.mrb[0].mxu0
      %v4721 = vadd.f32 0.0, %v4720
      %v4722 = vpop.f32.mrb[0].mxu0
      %4723 = vmatprep.mubr.bf16.mxu0 0
      %4724 = vmatmul.mubr.bf16.gmra.mrb[0].mxu0 %v2549
      %v4725 = vpop.f32.mrb[0].mxu0
      %v4726 = vadd.f32 0.0, %v4725
      %v4727 = vpop.f32.mrb[0].mxu0
      %v4728 = vpop.f32.mrb[0].mxu0
      %v4729 = vadd.f32 0.0, %v4728
      %v4730 = vpop.f32.mrb[0].mxu0
      %4731 = vmatprep.mubr.bf16.mxu0 0
      %4732 = vmatmul.mubr.bf16.gmra.mrb[0].mxu0 %v2550
      %v4733 = vpop.f32.mrb[0].mxu0
      %v4734 = vadd.f32 0.0, %v4733
      %v4735 = vpop.f32.mrb[0].mxu0
      %v4736 = vpop.f32.mrb[0].mxu0
      %v4737 = vadd.f32 0.0, %v4736
      %v4738 = vpop.f32.mrb[0].mxu0
      %4739 = vmatprep.mubr.bf16.mxu0 0
      %4740 = vmatmul.mubr.bf16.gmra.mrb[0].mxu0 %v2551
      %v4741 = vpop.f32.mrb[0].mxu0
      %v4742 = vadd.f32 0.0, %v4741
      %v4743 = vpop.f32.mrb[0].mxu0
      %v4744 = vpop.f32.mrb[0].mxu0
      %v4745 = vadd.f32 0.0, %v4744
      %v4746 = vpop.f32.mrb[0].mxu0
      %4747 = vmatprep.mubr.bf16.mxu0 0
      %4748 = vmatmul.mubr.bf16.gmra.mrb[0].mxu0 %v2552
      %v4749 = vpop.f32.mrb[0].mxu0
      %v4750 = vadd.f32 0.0, %v4749
      %v4751 = vpop.f32.mrb[0].mxu0
      %v4752 = vpop.f32.mrb[0].mxu0
      %v4753 = vadd.f32 0.0, %v4752
      %v4754 = vpop.f32.mrb[0].mxu0
      %4755 = vmatprep.mubr.bf16.mxu0 0
      %4756 = vmatmul.mubr.bf16.gmra.mrb[0].mxu0 %v2553
      %v4757 = vpop.f32.mrb[0].mxu0
      %v4758 = vadd.f32 0.0, %v4757
      %v4759 = vpop.f32.mrb[0].mxu0
      %v4760 = vpop.f32.mrb[0].mxu0
      %v4761 = vadd.f32 0.0, %v4760
      %v4762 = vpop.f32.mrb[0].mxu0
      %4763 = vmatprep.mubr.bf16.mxu0 0
      %4764 = vmatmul.mubr.bf16.gmra.mrb[0].mxu0 %v2554
      %v4765 = vpop.f32.mrb[0].mxu0
      %v4766 = vadd.f32 0.0, %v4765
      %v4767 = vpop.f32.mrb[0].mxu0
      %v4768 = vpop.f32.mrb[0].mxu0
      %v4769 = vadd.f32 0.0, %v4768
      %v4770 = vpop.f32.mrb[0].mxu0
      %4771 = vmatprep.mubr.bf16.mxu0 0
      %4772 = vmatmul.mubr.bf16.gmra.mrb[0].mxu0 %v2555
      %v4773 = vpop.f32.mrb[0].mxu0
      %v4774 = vadd.f32 0.0, %v4773
      %v4775 = vpop.f32.mrb[0].mxu0
      %v4776 = vpop.f32.mrb[0].mxu0
      %v4777 = vadd.f32 0.0, %v4776
      %v4778 = vpop.f32.mrb[0].mxu0
      %4779 = vmatprep.mubr.bf16.mxu0 0
      %4780 = vmatmul.mubr.bf16.gmra.mrb[0].mxu0 %v2556
      %v4781 = vpop.f32.mrb[0].mxu0
      %v4782 = vadd.f32 0.0, %v4781
      %v4783 = vpop.f32.mrb[0].mxu0
      %v4784 = vpop.f32.mrb[0].mxu0
      %v4785 = vadd.f32 0.0, %v4784
      %v4786 = vpop.f32.mrb[0].mxu0
      %4787 = vmatprep.mubr.bf16.mxu0 0
      %4788 = vmatmul.mubr.bf16.gmra.mrb[0].mxu0 %v2557
      %v4789 = vpop.f32.mrb[0].mxu0
      %v4790 = vadd.f32 0.0, %v4789
      %v4791 = vpop.f32.mrb[0].mxu0
      %v4792 = vpop.f32.mrb[0].mxu0
      %v4793 = vadd.f32 0.0, %v4792
      %v4794 = vpop.f32.mrb[0].mxu0
      %4795 = vmatprep.mubr.bf16.mxu0 0
      %4796 = vmatmul.mubr.bf16.gmra.mrb[0].mxu0 %v2558
      %v4797 = vpop.f32.mrb[0].mxu0
      %v4798 = vadd.f32 0.0, %v4797
      %v4799 = vpop.f32.mrb[0].mxu0
      %v4800 = vpop.f32.mrb[0].mxu0
      %v4801 = vadd.f32 0.0, %v4800
      %v4802 = vpop.f32.mrb[0].mxu0
      %4803 = vmatprep.mubr.bf16.mxu0 0
      %4804 = vmatmul.mubr.bf16.gmra.mrb[0].mxu0 %v2559
      %v4805 = vpop.f32.mrb[0].mxu0
      %v4806 = vadd.f32 0.0, %v4805
      %v4807 = vpop.f32.mrb[0].mxu0
      %v4808 = vpop.f32.mrb[0].mxu0
      %v4809 = vadd.f32 0.0, %v4808
      %v4810 = vpop.f32.mrb[0].mxu0
      %4811 = vmatprep.mubr.bf16.mxu0 0
      %4812 = vmatmul.mubr.bf16.gmra.mrb[0].mxu0 %v2560
      %v4813 = vpop.f32.mrb[0].mxu0
      %v4814 = vadd.f32 0.0, %v4813
      %v4815 = vpop.f32.mrb[0].mxu0
      %v4816 = vpop.f32.mrb[0].mxu0
      %v4817 = vadd.f32 0.0, %v4816
      %v4818 = vpop.f32.mrb[0].mxu0
      %4819 = vmatprep.mubr.bf16.mxu0 0
      %4820 = vmatmul.mubr.bf16.gmra.mrb[0].mxu0 %v2561
      %v4821 = vpop.f32.mrb[0].mxu0
      %v4822 = vadd.f32 0.0, %v4821
      %v4823 = vpop.f32.mrb[0].mxu0
      %v4824 = vpop.f32.mrb[0].mxu0
      %v4825 = vadd.f32 0.0, %v4824
      %v4826 = vpop.f32.mrb[0].mxu0
      %4827 = vmatprep.mubr.bf16.mxu0 0
      %4828 = vmatmul.mubr.bf16.gmra.mrb[0].mxu0 %v2562
      %v4829 = vpop.f32.mrb[0].mxu0
      %v4830 = vadd.f32 0.0, %v4829
      %v4831 = vpop.f32.mrb[0].mxu0
      %v4832 = vpop.f32.mrb[0].mxu0
      %v4833 = vadd.f32 0.0, %v4832
      %v4834 = vpop.f32.mrb[0].mxu0
      %4835 = vmatprep.mubr.bf16.mxu0 0
      %4836 = vmatmul.mubr.bf16.gmra.mrb[0].mxu0 %v2563
      %v4837 = vpop.f32.mrb[0].mxu0
      %v4838 = vadd.f32 0.0, %v4837
      %v4839 = vpop.f32.mrb[0].mxu0
      %v4840 = vpop.f32.mrb[0].mxu0
      %v4841 = vadd.f32 0.0, %v4840
      %v4842 = vpop.f32.mrb[0].mxu0
      %4843 = vmatprep.mubr.bf16.mxu0 0
      %4844 = vmatmul.mubr.bf16.gmra.mrb[0].mxu0 %v2564
      %v4845 = vpop.f32.mrb[0].mxu0
      %v4846 = vadd.f32 0.0, %v4845
      %v4847 = vpop.f32.mrb[0].mxu0
      %v4848 = vpop.f32.mrb[0].mxu0
      %v4849 = vadd.f32 0.0, %v4848
      %v4850 = vpop.f32.mrb[0].mxu0
      %4851 = vdwg.mxu0
      %v4852 = vadd.f32 %v4372, %v4662
      %v4853 = vadd.f32 %v4375, %v4665
      %v4854 = vadd.f32 %v4380, %v4670
      %v4855 = vadd.f32 %v4383, %v4673
      %v4856 = vadd.f32 %v4388, %v4678
      %v4857 = vadd.f32 %v4391, %v4681
      %v4858 = vadd.f32 %v4396, %v4686
      %v4859 = vadd.f32 %v4399, %v4689
      %v4860 = vadd.f32 %v4404, %v4694
      %v4861 = vadd.f32 %v4407, %v4697
      %v4862 = vadd.f32 %v4412, %v4702
      %v4863 = vadd.f32 %v4415, %v4705
      %v4864 = vadd.f32 %v4420, %v4710
      %v4865 = vadd.f32 %v4423, %v4713
      %v4866 = vadd.f32 %v4428, %v4718
      %v4867 = vadd.f32 %v4431, %v4721
      %v4868 = vadd.f32 %v4436, %v4726
      %v4869 = vadd.f32 %v4439, %v4729
      %v4870 = vadd.f32 %v4444, %v4734
      %v4871 = vadd.f32 %v4447, %v4737
      %v4872 = vadd.f32 %v4452, %v4742
      %v4873 = vadd.f32 %v4455, %v4745
      %v4874 = vadd.f32 %v4460, %v4750
      %v4875 = vadd.f32 %v4463, %v4753
      %v4876 = vadd.f32 %v4468, %v4758
      %v4877 = vadd.f32 %v4471, %v4761
      %v4878 = vadd.f32 %v4476, %v4766
      %v4879 = vadd.f32 %v4479, %v4769
      %v4880 = vadd.f32 %v4484, %v4774
      %v4881 = vadd.f32 %v4487, %v4777
      %v4882 = vadd.f32 %v4492, %v4782
      %v4883 = vadd.f32 %v4495, %v4785
      %v4884 = vadd.f32 %v4500, %v4790
      %v4885 = vadd.f32 %v4503, %v4793
      %v4886 = vadd.f32 %v4508, %v4798
      %v4887 = vadd.f32 %v4511, %v4801
      %v4888 = vadd.f32 %v4516, %v4806
      %v4889 = vadd.f32 %v4519, %v4809
      %v4890 = vadd.f32 %v4524, %v4814
      %v4891 = vadd.f32 %v4527, %v4817
      %v4892 = vadd.f32 %v4532, %v4822
      %v4893 = vadd.f32 %v4535, %v4825
      %v4894 = vadd.f32 %v4540, %v4830
      %v4895 = vadd.f32 %v4543, %v4833
      %v4896 = vadd.f32 %v4548, %v4838
      %v4897 = vadd.f32 %v4551, %v4841
      %v4898 = vadd.f32 %v4556, %v4846
      %v4899 = vadd.f32 %v4559, %v4849
      %vm4948 = vcmask 1045504
      %v4949 = vrot.slane %v4852, 2
      %v4950 = vrot.slane %v4853, 2
      %v4951 = vsel %vm4948, %v4949, %v4950
      %v4952 = vrot.slane %v4854, 2
      %v4953 = vsel %vm4948, %v4950, %v4952
      %v4954 = vrot.slane %v4855, 2
      %v4955 = vrot.slane %v4856, 2
      %v4956 = vsel %vm4948, %v4954, %v4955
      %v4957 = vrot.slane %v4857, 2
      %v4958 = vsel %vm4948, %v4955, %v4957
      %v4959 = vrot.slane %v4858, 2
      %v4960 = vrot.slane %v4859, 2
      %v4961 = vsel %vm4948, %v4959, %v4960
      %v4962 = vrot.slane %v4860, 2
      %v4963 = vsel %vm4948, %v4960, %v4962
      %v4964 = vrot.slane %v4861, 2
      %v4965 = vrot.slane %v4862, 2
      %v4966 = vsel %vm4948, %v4964, %v4965
      %v4967 = vrot.slane %v4863, 2
      %v4968 = vsel %vm4948, %v4965, %v4967
      %v4969 = vrot.slane %v4864, 2
      %v4970 = vrot.slane %v4865, 2
      %v4971 = vsel %vm4948, %v4969, %v4970
      %v4972 = vrot.slane %v4866, 2
      %v4973 = vsel %vm4948, %v4970, %v4972
      %v4974 = vrot.slane %v4867, 2
      %v4975 = vrot.slane %v4868, 2
      %v4976 = vsel %vm4948, %v4974, %v4975
      %v4977 = vrot.slane %v4869, 2
      %v4978 = vsel %vm4948, %v4975, %v4977
      %v4979 = vrot.slane %v4870, 2
      %v4980 = vrot.slane %v4871, 2
      %v4981 = vsel %vm4948, %v4979, %v4980
      %v4982 = vrot.slane %v4872, 2
      %v4983 = vsel %vm4948, %v4980, %v4982
      %v4984 = vrot.slane %v4873, 2
      %v4985 = vrot.slane %v4874, 2
      %v4986 = vsel %vm4948, %v4984, %v4985
      %v4987 = vrot.slane %v4875, 2
      %v4988 = vsel %vm4948, %v4985, %v4987
      %v4989 = vrot.slane %v4876, 2
      %v4990 = vrot.slane %v4877, 2
      %v4991 = vsel %vm4948, %v4989, %v4990
      %v4992 = vrot.slane %v4878, 2
      %v4993 = vsel %vm4948, %v4990, %v4992
      %v4994 = vrot.slane %v4879, 2
      %v4995 = vrot.slane %v4880, 2
      %v4996 = vsel %vm4948, %v4994, %v4995
      %v4997 = vrot.slane %v4881, 2
      %v4998 = vsel %vm4948, %v4995, %v4997
      %v4999 = vrot.slane %v4882, 2
      %v5000 = vrot.slane %v4883, 2
      %v5001 = vsel %vm4948, %v4999, %v5000
      %v5002 = vrot.slane %v4884, 2
      %v5003 = vsel %vm4948, %v5000, %v5002
      %v5004 = vrot.slane %v4885, 2
      %v5005 = vrot.slane %v4886, 2
      %v5006 = vsel %vm4948, %v5004, %v5005
      %v5007 = vrot.slane %v4887, 2
      %v5008 = vsel %vm4948, %v5005, %v5007
      %v5009 = vrot.slane %v4888, 2
      %v5010 = vrot.slane %v4889, 2
      %v5011 = vsel %vm4948, %v5009, %v5010
      %v5012 = vrot.slane %v4890, 2
      %v5013 = vsel %vm4948, %v5010, %v5012
      %v5014 = vrot.slane %v4891, 2
      %v5015 = vrot.slane %v4892, 2
      %v5016 = vsel %vm4948, %v5014, %v5015
      %v5017 = vrot.slane %v4893, 2
      %v5018 = vsel %vm4948, %v5015, %v5017
      %v5019 = vrot.slane %v4894, 2
      %v5020 = vrot.slane %v4895, 2
      %v5021 = vsel %vm4948, %v5019, %v5020
      %v5022 = vrot.slane %v4896, 2
      %v5023 = vsel %vm4948, %v5020, %v5022
      %v5024 = vrot.slane %v4897, 2
      %v5025 = vrot.slane %v4898, 2
      %v5026 = vsel %vm4948, %v5024, %v5025
      %v5027 = vrot.slane %v4899, 2
      %v5028 = vsel %vm4948, %v5025, %v5027
      %v5061 = vadd.f32 %v3950, %v4951
      %v5062 = vadd.f32 %v3951, %v4953
      %v5063 = vadd.f32 %v3952, %v4956
      %v5064 = vadd.f32 %v3953, %v4958
      %v5065 = vadd.f32 %v3954, %v4961
      %v5066 = vadd.f32 %v3955, %v4963
      %v5067 = vadd.f32 %v3956, %v4966
      %v5068 = vadd.f32 %v3957, %v4968
      %v5069 = vadd.f32 %v3958, %v4971
      %v5070 = vadd.f32 %v3959, %v4973
      %v5071 = vadd.f32 %v3960, %v4976
      %v5072 = vadd.f32 %v3961, %v4978
      %v5073 = vadd.f32 %v3962, %v4981
      %v5074 = vadd.f32 %v3963, %v4983
      %v5075 = vadd.f32 %v3964, %v4986
      %v5076 = vadd.f32 %v3965, %v4988
      %v5077 = vadd.f32 %v3966, %v4991
      %v5078 = vadd.f32 %v3967, %v4993
      %v5079 = vadd.f32 %v3968, %v4996
      %v5080 = vadd.f32 %v3969, %v4998
      %v5081 = vadd.f32 %v3970, %v5001
      %v5082 = vadd.f32 %v3971, %v5003
      %v5083 = vadd.f32 %v3972, %v5006
      %v5084 = vadd.f32 %v3973, %v5008
      %v5085 = vadd.f32 %v3974, %v5011
      %v5086 = vadd.f32 %v3975, %v5013
      %v5087 = vadd.f32 %v3976, %v5016
      %v5088 = vadd.f32 %v3977, %v5018
      %v5089 = vadd.f32 %v3978, %v5021
      %v5090 = vadd.f32 %v3979, %v5023
      %v5091 = vadd.f32 %v3980, %v5026
      %v5092 = vadd.f32 %v3981, %v5028
      %v5093 = vld [vmem:[%s6] sm:$0x1]
      %v5095 = vlaneseq
      %v5096 = vshrl.u32 %v5095, 7
      %v5097 = vsub.s32 0, %v5096
      %v5098 = vrot.slane %v5093, %v5097
      %v5100 = vadd.f32 %v5061, %v5098
      %v5101 = vadd.f32 %v5062, %v5098
      %v5102 = vadd.f32 %v5063, %v5098
      %v5103 = vadd.f32 %v5064, %v5098
      %v5104 = vadd.f32 %v5065, %v5098
      %v5105 = vadd.f32 %v5066, %v5098
      %v5106 = vadd.f32 %v5067, %v5098
      %v5107 = vadd.f32 %v5068, %v5098
      %v5108 = vadd.f32 %v5069, %v5098
      %v5109 = vadd.f32 %v5070, %v5098
      %v5110 = vadd.f32 %v5071, %v5098
      %v5111 = vadd.f32 %v5072, %v5098
      %v5112 = vadd.f32 %v5073, %v5098
      %v5113 = vadd.f32 %v5074, %v5098
      %v5114 = vadd.f32 %v5075, %v5098
      %v5115 = vadd.f32 %v5076, %v5098
      %v5116 = vadd.f32 %v5077, %v5098
      %v5117 = vadd.f32 %v5078, %v5098
      %v5118 = vadd.f32 %v5079, %v5098
      %v5119 = vadd.f32 %v5080, %v5098
      %v5120 = vadd.f32 %v5081, %v5098
      %v5121 = vadd.f32 %v5082, %v5098
      %v5122 = vadd.f32 %v5083, %v5098
      %v5123 = vadd.f32 %v5084, %v5098
      %v5124 = vadd.f32 %v5085, %v5098
      %v5125 = vadd.f32 %v5086, %v5098
      %v5126 = vadd.f32 %v5087, %v5098
      %v5127 = vadd.f32 %v5088, %v5098
      %v5128 = vadd.f32 %v5089, %v5098
      %v5129 = vadd.f32 %v5090, %v5098
      %v5130 = vadd.f32 %v5091, %v5098
      %v5131 = vadd.f32 %v5092, %v5098
      %vm5132 = vcmp.gt.f32.partialorder %v5100, 0.0
      %vm5133 = vcmp.gt.f32.partialorder %v5101, 0.0
      %vm5134 = vcmp.gt.f32.partialorder %v5102, 0.0
      %vm5135 = vcmp.gt.f32.partialorder %v5103, 0.0
      %vm5136 = vcmp.gt.f32.partialorder %v5104, 0.0
      %vm5137 = vcmp.gt.f32.partialorder %v5105, 0.0
      %vm5138 = vcmp.gt.f32.partialorder %v5106, 0.0
      %vm5139 = vcmp.gt.f32.partialorder %v5107, 0.0
      %vm5140 = vcmp.gt.f32.partialorder %v5108, 0.0
      %vm5141 = vcmp.gt.f32.partialorder %v5109, 0.0
      %vm5142 = vcmp.gt.f32.partialorder %v5110, 0.0
      %vm5143 = vcmp.gt.f32.partialorder %v5111, 0.0
      %vm5144 = vcmp.gt.f32.partialorder %v5112, 0.0
      %vm5145 = vcmp.gt.f32.partialorder %v5113, 0.0
      %vm5146 = vcmp.gt.f32.partialorder %v5114, 0.0
      %vm5147 = vcmp.gt.f32.partialorder %v5115, 0.0
      %vm5148 = vcmp.gt.f32.partialorder %v5116, 0.0
      %vm5149 = vcmp.gt.f32.partialorder %v5117, 0.0
      %vm5150 = vcmp.gt.f32.partialorder %v5118, 0.0
      %vm5151 = vcmp.gt.f32.partialorder %v5119, 0.0
      %vm5152 = vcmp.gt.f32.partialorder %v5120, 0.0
      %vm5153 = vcmp.gt.f32.partialorder %v5121, 0.0
      %vm5154 = vcmp.gt.f32.partialorder %v5122, 0.0
      %vm5155 = vcmp.gt.f32.partialorder %v5123, 0.0
      %vm5156 = vcmp.gt.f32.partialorder %v5124, 0.0
      %vm5157 = vcmp.gt.f32.partialorder %v5125, 0.0
      %vm5158 = vcmp.gt.f32.partialorder %v5126, 0.0
      %vm5159 = vcmp.gt.f32.partialorder %v5127, 0.0
      %vm5160 = vcmp.gt.f32.partialorder %v5128, 0.0
      %vm5161 = vcmp.gt.f32.partialorder %v5129, 0.0
      %vm5162 = vcmp.gt.f32.partialorder %v5130, 0.0
      %vm5163 = vcmp.gt.f32.partialorder %v5131, 0.0
      %v5164 = vmul.f32 %v5100, 0.1
      %v5165 = vmul.f32 %v5101, 0.1
      %v5166 = vmul.f32 %v5102, 0.1
      %v5167 = vmul.f32 %v5103, 0.1
      %v5168 = vmul.f32 %v5104, 0.1
      %v5169 = vmul.f32 %v5105, 0.1
      %v5170 = vmul.f32 %v5106, 0.1
      %v5171 = vmul.f32 %v5107, 0.1
      %v5172 = vmul.f32 %v5108, 0.1
      %v5173 = vmul.f32 %v5109, 0.1
      %v5174 = vmul.f32 %v5110, 0.1
      %v5175 = vmul.f32 %v5111, 0.1
      %v5176 = vmul.f32 %v5112, 0.1
      %v5177 = vmul.f32 %v5113, 0.1
      %v5178 = vmul.f32 %v5114, 0.1
      %v5179 = vmul.f32 %v5115, 0.1
      %v5180 = vmul.f32 %v5116, 0.1
      %v5181 = vmul.f32 %v5117, 0.1
      %v5182 = vmul.f32 %v5118, 0.1
      %v5183 = vmul.f32 %v5119, 0.1
      %v5184 = vmul.f32 %v5120, 0.1
      %v5185 = vmul.f32 %v5121, 0.1
      %v5186 = vmul.f32 %v5122, 0.1
      %v5187 = vmul.f32 %v5123, 0.1
      %v5188 = vmul.f32 %v5124, 0.1
      %v5189 = vmul.f32 %v5125, 0.1
      %v5190 = vmul.f32 %v5126, 0.1
      %v5191 = vmul.f32 %v5127, 0.1
      %v5192 = vmul.f32 %v5128, 0.1
      %v5193 = vmul.f32 %v5129, 0.1
      %v5194 = vmul.f32 %v5130, 0.1
      %v5195 = vmul.f32 %v5131, 0.1
      %v5196 = vsel %vm5132, %v5100, %v5164
      %v5197 = vsel %vm5133, %v5101, %v5165
      %v5198 = vsel %vm5134, %v5102, %v5166
      %v5199 = vsel %vm5135, %v5103, %v5167
      %v5200 = vsel %vm5136, %v5104, %v5168
      %v5201 = vsel %vm5137, %v5105, %v5169
      %v5202 = vsel %vm5138, %v5106, %v5170
      %v5203 = vsel %vm5139, %v5107, %v5171
      %v5204 = vsel %vm5140, %v5108, %v5172
      %v5205 = vsel %vm5141, %v5109, %v5173
      %v5206 = vsel %vm5142, %v5110, %v5174
      %v5207 = vsel %vm5143, %v5111, %v5175
      %v5208 = vsel %vm5144, %v5112, %v5176
      %v5209 = vsel %vm5145, %v5113, %v5177
      %v5210 = vsel %vm5146, %v5114, %v5178
      %v5211 = vsel %vm5147, %v5115, %v5179
      %v5212 = vsel %vm5148, %v5116, %v5180
      %v5213 = vsel %vm5149, %v5117, %v5181
      %v5214 = vsel %vm5150, %v5118, %v5182
      %v5215 = vsel %vm5151, %v5119, %v5183
      %v5216 = vsel %vm5152, %v5120, %v5184
      %v5217 = vsel %vm5153, %v5121, %v5185
      %v5218 = vsel %vm5154, %v5122, %v5186
      %v5219 = vsel %vm5155, %v5123, %v5187
      %v5220 = vsel %vm5156, %v5124, %v5188
      %v5221 = vsel %vm5157, %v5125, %v5189
      %v5222 = vsel %vm5158, %v5126, %v5190
      %v5223 = vsel %vm5159, %v5127, %v5191
      %v5224 = vsel %vm5160, %v5128, %v5192
      %v5225 = vsel %vm5161, %v5129, %v5193
      %v5226 = vsel %vm5162, %v5130, %v5194
      %v5227 = vsel %vm5163, %v5131, %v5195
      %v5228 = vld [vmem:[%s417] sm:$0xf]
      %v5229 = vld [vmem:[%s417 + $0x4] sm:$0xf]
      %v5230 = vld [vmem:[%s417 + $0x8] sm:$0x1]
      %v5231 = vld [vmem:[%s417 + $0xc] sm:$0xf]
      %v5232 = vld [vmem:[%s417 + $0x10] sm:$0xf]
      %v5233 = vld [vmem:[%s417 + $0x14] sm:$0x1]
      %v5234 = vld [vmem:[%s417 + $0x18] sm:$0xf]
      %v5235 = vld [vmem:[%s417 + $0x1c] sm:$0xf]
      %v5236 = vld [vmem:[%s417 + $0x20] sm:$0x1]
      %v5237 = vld [vmem:[%s417 + $0x24] sm:$0xf]
      %v5238 = vld [vmem:[%s417 + $0x28] sm:$0xf]
      %v5239 = vld [vmem:[%s417 + $0x2c] sm:$0x1]
      %v5240 = vld [vmem:[%s417 + $0x30] sm:$0xf]
      %v5241 = vld [vmem:[%s417 + $0x34] sm:$0xf]
      %v5242 = vld [vmem:[%s417 + $0x38] sm:$0x1]
      %v5243 = vld [vmem:[%s417 + $0x3c] sm:$0xf]
      %v5244 = vld [vmem:[%s417 + $0x40] sm:$0xf]
      %v5245 = vld [vmem:[%s417 + $0x44] sm:$0x1]
      %v5246 = vld [vmem:[%s417 + $0x48] sm:$0xf]
      %v5247 = vld [vmem:[%s417 + $0x4c] sm:$0xf]
      %v5248 = vld [vmem:[%s417 + $0x50] sm:$0x1]
      %v5249 = vld [vmem:[%s417 + $0x54] sm:$0xf]
      %v5250 = vld [vmem:[%s417 + $0x58] sm:$0xf]
      %v5251 = vld [vmem:[%s417 + $0x5c] sm:$0x1]
      %v5252 = vld [vmem:[%s417 + $0x60] sm:$0xf]
      %v5253 = vld [vmem:[%s417 + $0x64] sm:$0xf]
      %v5254 = vld [vmem:[%s417 + $0x68] sm:$0x1]
      %v5255 = vld [vmem:[%s417 + $0x6c] sm:$0xf]
      %v5256 = vld [vmem:[%s417 + $0x70] sm:$0xf]
      %v5257 = vld [vmem:[%s417 + $0x74] sm:$0x1]
      %v5258 = vld [vmem:[%s417 + $0x78] sm:$0xf]
      %v5259 = vld [vmem:[%s417 + $0x7c] sm:$0xf]
      %v5260 = vld [vmem:[%s417 + $0x80] sm:$0x1]
      %v5261 = vld [vmem:[%s417 + $0x84] sm:$0xf]
      %v5262 = vld [vmem:[%s417 + $0x88] sm:$0xf]
      %v5263 = vld [vmem:[%s417 + $0x8c] sm:$0x1]
      %v5264 = vld [vmem:[%s417 + $0x90] sm:$0xf]
      %v5265 = vld [vmem:[%s417 + $0x94] sm:$0xf]
      %v5266 = vld [vmem:[%s417 + $0x98] sm:$0x1]
      %v5267 = vld [vmem:[%s417 + $0x9c] sm:$0xf]
      %v5268 = vld [vmem:[%s417 + $0xa0] sm:$0xf]
      %v5269 = vld [vmem:[%s417 + $0xa4] sm:$0x1]
      %v5270 = vld [vmem:[%s417 + $0xa8] sm:$0xf]
      %v5271 = vld [vmem:[%s417 + $0xac] sm:$0xf]
      %v5272 = vld [vmem:[%s417 + $0xb0] sm:$0x1]
      %v5273 = vld [vmem:[%s417 + $0xb4] sm:$0xf]
      %v5274 = vld [vmem:[%s417 + $0xb8] sm:$0xf]
      %v5275 = vld [vmem:[%s417 + $0xbc] sm:$0x1]
      %v5276 = vunpack.c.l.bf16 %v5228
      %v5277 = vunpack.c.l.bf16 %v5229
      %v5278 = vunpack.c.l.bf16 %v5230
      %v5279 = vunpack.c.l.bf16 %v5231
      %v5280 = vunpack.c.l.bf16 %v5232
      %v5281 = vunpack.c.l.bf16 %v5233
      %v5282 = vunpack.c.l.bf16 %v5234
      %v5283 = vunpack.c.l.bf16 %v5235
      %v5284 = vunpack.c.l.bf16 %v5236
      %v5285 = vunpack.c.l.bf16 %v5237
      %v5286 = vunpack.c.l.bf16 %v5238
      %v5287 = vunpack.c.l.bf16 %v5239
      %v5288 = vunpack.c.l.bf16 %v5240
      %v5289 = vunpack.c.l.bf16 %v5241
      %v5290 = vunpack.c.l.bf16 %v5242
      %v5291 = vunpack.c.l.bf16 %v5243
      %v5292 = vunpack.c.l.bf16 %v5244
      %v5293 = vunpack.c.l.bf16 %v5245
      %v5294 = vunpack.c.l.bf16 %v5246
      %v5295 = vunpack.c.l.bf16 %v5247
      %v5296 = vunpack.c.l.bf16 %v5248
      %v5297 = vunpack.c.l.bf16 %v5249
      %v5298 = vunpack.c.l.bf16 %v5250
      %v5299 = vunpack.c.l.bf16 %v5251
      %v5300 = vunpack.c.l.bf16 %v5252
      %v5301 = vunpack.c.l.bf16 %v5253
      %v5302 = vunpack.c.l.bf16 %v5254
      %v5303 = vunpack.c.l.bf16 %v5255
      %v5304 = vunpack.c.l.bf16 %v5256
      %v5305 = vunpack.c.l.bf16 %v5257
      %v5306 = vunpack.c.l.bf16 %v5258
      %v5307 = vunpack.c.l.bf16 %v5259
      %v5308 = vunpack.c.l.bf16 %v5260
      %v5309 = vunpack.c.l.bf16 %v5261
      %v5310 = vunpack.c.l.bf16 %v5262
      %v5311 = vunpack.c.l.bf16 %v5263
      %v5312 = vunpack.c.l.bf16 %v5264
      %v5313 = vunpack.c.l.bf16 %v5265
      %v5314 = vunpack.c.l.bf16 %v5266
      %v5315 = vunpack.c.l.bf16 %v5267
      %v5316 = vunpack.c.l.bf16 %v5268
      %v5317 = vunpack.c.l.bf16 %v5269
      %v5318 = vunpack.c.l.bf16 %v5270
      %v5319 = vunpack.c.l.bf16 %v5271
      %v5320 = vunpack.c.l.bf16 %v5272
      %v5321 = vunpack.c.l.bf16 %v5273
      %v5322 = vunpack.c.l.bf16 %v5274
      %v5323 = vunpack.c.l.bf16 %v5275
      %v5372 = vrot.slane %v5276, 1
      %v5373 = vrot.slane %v5277, 1
      %v5374 = vsel %vm3837, %v5372, %v5373
      %v5375 = vrot.slane %v5278, 1
      %v5376 = vsel %vm3837, %v5373, %v5375
      %v5377 = vrot.slane %v5279, 1
      %v5378 = vrot.slane %v5280, 1
      %v5379 = vsel %vm3837, %v5377, %v5378
      %v5380 = vrot.slane %v5281, 1
      %v5381 = vsel %vm3837, %v5378, %v5380
      %v5382 = vrot.slane %v5282, 1
      %v5383 = vrot.slane %v5283, 1
      %v5384 = vsel %vm3837, %v5382, %v5383
      %v5385 = vrot.slane %v5284, 1
      %v5386 = vsel %vm3837, %v5383, %v5385
      %v5387 = vrot.slane %v5285, 1
      %v5388 = vrot.slane %v5286, 1
      %v5389 = vsel %vm3837, %v5387, %v5388
      %v5390 = vrot.slane %v5287, 1
      %v5391 = vsel %vm3837, %v5388, %v5390
      %v5392 = vrot.slane %v5288, 1
      %v5393 = vrot.slane %v5289, 1
      %v5394 = vsel %vm3837, %v5392, %v5393
      %v5395 = vrot.slane %v5290, 1
      %v5396 = vsel %vm3837, %v5393, %v5395
      %v5397 = vrot.slane %v5291, 1
      %v5398 = vrot.slane %v5292, 1
      %v5399 = vsel %vm3837, %v5397, %v5398
      %v5400 = vrot.slane %v5293, 1
      %v5401 = vsel %vm3837, %v5398, %v5400
      %v5402 = vrot.slane %v5294, 1
      %v5403 = vrot.slane %v5295, 1
      %v5404 = vsel %vm3837, %v5402, %v5403
      %v5405 = vrot.slane %v5296, 1
      %v5406 = vsel %vm3837, %v5403, %v5405
      %v5407 = vrot.slane %v5297, 1
      %v5408 = vrot.slane %v5298, 1
      %v5409 = vsel %vm3837, %v5407, %v5408
      %v5410 = vrot.slane %v5299, 1
      %v5411 = vsel %vm3837, %v5408, %v5410
      %v5412 = vrot.slane %v5300, 1
      %v5413 = vrot.slane %v5301, 1
      %v5414 = vsel %vm3837, %v5412, %v5413
      %v5415 = vrot.slane %v5302, 1
      %v5416 = vsel %vm3837, %v5413, %v5415
      %v5417 = vrot.slane %v5303, 1
      %v5418 = vrot.slane %v5304, 1
      %v5419 = vsel %vm3837, %v5417, %v5418
      %v5420 = vrot.slane %v5305, 1
      %v5421 = vsel %vm3837, %v5418, %v5420
      %v5422 = vrot.slane %v5306, 1
      %v5423 = vrot.slane %v5307, 1
      %v5424 = vsel %vm3837, %v5422, %v5423
      %v5425 = vrot.slane %v5308, 1
      %v5426 = vsel %vm3837, %v5423, %v5425
      %v5427 = vrot.slane %v5309, 1
      %v5428 = vrot.slane %v5310, 1
      %v5429 = vsel %vm3837, %v5427, %v5428
      %v5430 = vrot.slane %v5311, 1
      %v5431 = vsel %vm3837, %v5428, %v5430
      %v5432 = vrot.slane %v5312, 1
      %v5433 = vrot.slane %v5313, 1
      %v5434 = vsel %vm3837, %v5432, %v5433
      %v5435 = vrot.slane %v5314, 1
      %v5436 = vsel %vm3837, %v5433, %v5435
      %v5437 = vrot.slane %v5315, 1
      %v5438 = vrot.slane %v5316, 1
      %v5439 = vsel %vm3837, %v5437, %v5438
      %v5440 = vrot.slane %v5317, 1
      %v5441 = vsel %vm3837, %v5438, %v5440
      %v5442 = vrot.slane %v5318, 1
      %v5443 = vrot.slane %v5319, 1
      %v5444 = vsel %vm3837, %v5442, %v5443
      %v5445 = vrot.slane %v5320, 1
      %v5446 = vsel %vm3837, %v5443, %v5445
      %v5447 = vrot.slane %v5321, 1
      %v5448 = vrot.slane %v5322, 1
      %v5449 = vsel %vm3837, %v5447, %v5448
      %v5450 = vrot.slane %v5323, 1
      %v5451 = vsel %vm3837, %v5448, %v5450
      %v5484 = vadd.f32 %v5196, %v5374
      %v5485 = vadd.f32 %v5197, %v5376
      %v5486 = vadd.f32 %v5198, %v5379
      %v5487 = vadd.f32 %v5199, %v5381
      %v5488 = vadd.f32 %v5200, %v5384
      %v5489 = vadd.f32 %v5201, %v5386
      %v5490 = vadd.f32 %v5202, %v5389
      %v5491 = vadd.f32 %v5203, %v5391
      %v5492 = vadd.f32 %v5204, %v5394
      %v5493 = vadd.f32 %v5205, %v5396
      %v5494 = vadd.f32 %v5206, %v5399
      %v5495 = vadd.f32 %v5207, %v5401
      %v5496 = vadd.f32 %v5208, %v5404
      %v5497 = vadd.f32 %v5209, %v5406
      %v5498 = vadd.f32 %v5210, %v5409
      %v5499 = vadd.f32 %v5211, %v5411
      %v5500 = vadd.f32 %v5212, %v5414
      %v5501 = vadd.f32 %v5213, %v5416
      %v5502 = vadd.f32 %v5214, %v5419
      %v5503 = vadd.f32 %v5215, %v5421
      %v5504 = vadd.f32 %v5216, %v5424
      %v5505 = vadd.f32 %v5217, %v5426
      %v5506 = vadd.f32 %v5218, %v5429
      %v5507 = vadd.f32 %v5219, %v5431
      %v5508 = vadd.f32 %v5220, %v5434
      %v5509 = vadd.f32 %v5221, %v5436
      %v5510 = vadd.f32 %v5222, %v5439
      %v5511 = vadd.f32 %v5223, %v5441
      %v5512 = vadd.f32 %v5224, %v5444
      %v5513 = vadd.f32 %v5225, %v5446
      %v5514 = vadd.f32 %v5226, %v5449
      %v5515 = vadd.f32 %v5227, %v5451
      %5516 = vst [vmem:[%s445] sm:$0xff] %v5484
      %5517 = vst [vmem:[%s445 + $0x8] sm:$0xff] %v5485
      %5518 = vst [vmem:[%s445 + $0x10] sm:$0xff] %v5486
      %5519 = vst [vmem:[%s445 + $0x18] sm:$0xff] %v5487
      %5520 = vst [vmem:[%s445 + $0x20] sm:$0xff] %v5488
      %5521 = vst [vmem:[%s445 + $0x28] sm:$0xff] %v5489
      %5522 = vst [vmem:[%s445 + $0x30] sm:$0xff] %v5490
      %5523 = vst [vmem:[%s445 + $0x38] sm:$0xff] %v5491
      %5524 = vst [vmem:[%s445 + $0x40] sm:$0xff] %v5492
      %5525 = vst [vmem:[%s445 + $0x48] sm:$0xff] %v5493
      %5526 = vst [vmem:[%s445 + $0x50] sm:$0xff] %v5494
      %5527 = vst [vmem:[%s445 + $0x58] sm:$0xff] %v5495
      %5528 = vst [vmem:[%s445 + $0x60] sm:$0xff] %v5496
      %5529 = vst [vmem:[%s445 + $0x68] sm:$0xff] %v5497
      %5530 = vst [vmem:[%s445 + $0x70] sm:$0xff] %v5498
      %5531 = vst [vmem:[%s445 + $0x78] sm:$0xff] %v5499
      %5532 = vst [vmem:[%s445 + $0x80] sm:$0xff] %v5500
      %5533 = vst [vmem:[%s445 + $0x88] sm:$0xff] %v5501
      %5534 = vst [vmem:[%s445 + $0x90] sm:$0xff] %v5502
      %5535 = vst [vmem:[%s445 + $0x98] sm:$0xff] %v5503
      %5536 = vst [vmem:[%s445 + $0xa0] sm:$0xff] %v5504
      %5537 = vst [vmem:[%s445 + $0xa8] sm:$0xff] %v5505
      %5538 = vst [vmem:[%s445 + $0xb0] sm:$0xff] %v5506
      %5539 = vst [vmem:[%s445 + $0xb8] sm:$0xff] %v5507
      %5540 = vst [vmem:[%s445 + $0xc0] sm:$0xff] %v5508
      %5541 = vst [vmem:[%s445 + $0xc8] sm:$0xff] %v5509
      %5542 = vst [vmem:[%s445 + $0xd0] sm:$0xff] %v5510
      %5543 = vst [vmem:[%s445 + $0xd8] sm:$0xff] %v5511
      %5544 = vst [vmem:[%s445 + $0xe0] sm:$0xff] %v5512
      %5545 = vst [vmem:[%s445 + $0xe8] sm:$0xff] %v5513
      %5546 = vst [vmem:[%s445 + $0xf0] sm:$0xff] %v5514
      %5547 = vst [vmem:[%s445 + $0xf8] sm:$0xff] %v5515
      %s5548 = smul.u32 16, %s23
      %p5549 = scmp.lt.s32.totalorder %s22, 1
      %s5550 = scalar_select %p5549, %s22, 1
      %p5551 = scmp.lt.s32.totalorder %s5548, 15
      %s5552 = scalar_select %p5551, %s5548, 15
      %s5553 = smul.addr %s5552, 2
      %s5554 = smul.addr %s5550, 32
      %s5555 = sadd.s32 %s5553, %s5554
      %s5556 = smul.addr %s5555, 8
      %s5557 = scalar_lea.vmem %s7, %s5556
      // Predicated region
      $region49: #{darknet_bottleneck_forward.1} parent=47 // pred_check
        %p5558 = pneg %p234
      $region50: #{darknet_bottleneck_forward.1} parent=47 // pred_check_branch
        %5560 = sbr.rel (%p5558) target = $region52
      $region51: #{darknet_bottleneck_forward.1} parent=47 // pred_region
        %s5561 = smul.u32 16, %s23
      $region52: #{darknet_bottleneck_forward.1} parent=47 // pred_fallthru
        _
    $region48: #{darknet_bottleneck_forward.1} parent=5 // pred_fallthru
      _
    %p5562 = scmp.le.s32.totalorder 2, %s13
    // Predicated region
    $region53: #{darknet_bottleneck_forward.1} parent=5 // pred_check
      %p5563 = pneg %p5562
    $region54: #{darknet_bottleneck_forward.1} parent=5 // pred_check_branch
      %5565 = sbr.rel (%p5563) target = $region56
    $region55: #{darknet_bottleneck_forward.1} parent=5 // pred_region
      %s5566 = ssub.s32 %s13, 2
      // Predicated region
      $region57: #{darknet_bottleneck_forward.1} parent=55 // pred_check
        %p5567 = pneg %p240
      $region58: #{darknet_bottleneck_forward.1} parent=55 // pred_check_branch
        %5569 = sbr.rel (%p5567) target = $region60
      $region59: #{darknet_bottleneck_forward.1} parent=55 // pred_region
        %s5570 = smul.u32 16, %s25
        %p5571 = scmp.lt.s32.totalorder %s24, 1
        %s5572 = scalar_select %p5571, %s24, 1
        %p5573 = scmp.lt.s32.totalorder %s5570, 15
        %s5574 = scalar_select %p5573, %s5570, 15
        %s5575 = smul.addr %s5574, 2
        %s5576 = smul.addr %s5572, 32
        %s5577 = sadd.s32 %s5575, %s5576
        %s5578 = smul.addr %s5577, 8
        %s5579 = scalar_lea.vmem %s7, %s5578
      $region60: #{darknet_bottleneck_forward.1} parent=55 // pred_fallthru
        _
    $region56: #{darknet_bottleneck_forward.1} parent=5 // pred_fallthru
      _
  $region6: #{darknet_bottleneck_forward.1} parent=0 // loop_footer
    %s17 = sadd.s32 1, %s13
  $region7: #{darknet_bottleneck_forward.1} parent=0 // loop_footer_branch
    %12 = sbr.rel target = $region3
  $region8: #{darknet_bottleneck_forward.1} parent=0 // loop_exit
    _

</llo_original>
